<compile_context>
chip_gen: v5e
topology: v5e:2x2
jax: 0.10.0
libtpu: 0.0.40
codegen_flags: <defaults>
</compile_context>

<pallas_src>
import numpy as np
import jax
import jax.numpy as jnp
from jax.experimental import pallas as pl
from jax.experimental.pallas import tpu as pltpu

# ----------------------------------------------------------------------------
# Model dimensions (faithful to the module: forward hard-codes 784).
# ----------------------------------------------------------------------------
X_DIM = 784          # 28*28, fixed by x.view(-1, 784)
X_PAD = 896          # 7*128: lane-padded feature width (full-vreg loads/stores)
H_DIM1 = 128
H_DIM2 = 64
Z_DIM = 16
MULV_PAD = 128       # lane-padded width of the packed [mu | log_var] slab
BATCH = 16


def _batch_tile(B):
    """Rows per grid step.

    Small batches run as a single grid step (fills the MXU row dimension as
    much as possible and avoids per-step pipeline overhead).  Large batches use
    128-row tiles so VMEM stays bounded and the grid has >= 2 parallel steps,
    which lets v7x shard across its two TensorCores.
    """
    assert B % 8 == 0, "batch must be a multiple of 8"
    if B <= 128:
        return B
    for tb in (128, 64, 32, 16, 8):
        if B % tb == 0:
            return tb
    return 8


# ----------------------------------------------------------------------------
# Kernel
# ----------------------------------------------------------------------------
def _vae_kernel(x_ref, eps_ref,
                w1_ref, b1_ref, w2_ref, b2_ref, w3_ref, b3_ref,
                w4_ref, b4_ref, w5_ref, b5_ref, w6_ref, b6_ref,
                recon_ref, mulv_ref):
    # MXU matmuls consume bf16 and accumulate in f32; all elementwise math
    # (bias add, ReLU, exp, sigmoid, eps*std+mu) stays f32 (v5e-safe).
    x = x_ref[...].astype(jnp.bfloat16)                      # (TB, X_PAD)

    # ---- encoder ----
    h = jnp.dot(x, w1_ref[...], preferred_element_type=jnp.float32) + b1_ref[...]
    h = jnp.maximum(h, 0.0)
    h = jnp.dot(h.astype(jnp.bfloat16), w2_ref[...],
                preferred_element_type=jnp.float32) + b2_ref[...]
    h = jnp.maximum(h, 0.0)
    # fc31 | fc32 fused into a single lane-padded matmul.
    mu_lv = jnp.dot(h.astype(jnp.bfloat16), w3_ref[...],
                    preferred_element_type=jnp.float32) + b3_ref[...]
    mu = mu_lv[:, :Z_DIM]
    log_var = mu_lv[:, Z_DIM:2 * Z_DIM]

    # ---- sampling (reparameterization): z = eps * exp(0.5*log_var) + mu ----
    z = eps_ref[...] * jnp.exp(0.5 * log_var) + mu           # (TB, Z_DIM) f32

    # ---- decoder ----
    d = jnp.dot(z.astype(jnp.bfloat16), w4_ref[...],
                preferred_element_type=jnp.float32) + b4_ref[...]
    d = jnp.maximum(d, 0.0)
    d = jnp.dot(d.astype(jnp.bfloat16), w5_ref[...],
                preferred_element_type=jnp.float32) + b5_ref[...]
    d = jnp.maximum(d, 0.0)
    logits = jnp.dot(d.astype(jnp.bfloat16), w6_ref[...],
                     preferred_element_type=jnp.float32) + b6_ref[...]

    recon_ref[...] = jax.nn.sigmoid(logits)                  # lane-dense 896-wide store
    mulv_ref[...] = mu_lv                                    # full 128-lane slab store


# ----------------------------------------------------------------------------
# Wrapper
# ----------------------------------------------------------------------------
def pack_params(params):
    """Pad / pack / cast raw f32 params into the kernel layout.

    - fc31|fc32 fused into one (H_DIM2, MULV_PAD) weight (zero-padded lanes).
    - fc1 rows / fc6 cols + bias lane-padded 784 -> 896 with zeros (neutral:
      padded x lanes are zero, so extra fc1 rows contribute nothing; padded
      fc6 cols/bias only affect output lanes that the wrapper slices away).
    - Weights cast to bf16 for the MXU; biases stay f32 so elementwise work
      remains f32.
    """
    (w1, b1, w2, b2, w31, b31, w32, b32, w4, b4, w5, b5, w6, b6) = params

    w1p = jnp.pad(w1, ((0, X_PAD - X_DIM), (0, 0))).astype(jnp.bfloat16)
    w2p = w2.astype(jnp.bfloat16)
    w3p = jnp.pad(jnp.concatenate([w31, w32], axis=1),
                  ((0, 0), (0, MULV_PAD - 2 * Z_DIM))).astype(jnp.bfloat16)
    b3p = jnp.pad(jnp.concatenate([b31, b32], axis=1),
                  ((0, 0), (0, MULV_PAD - 2 * Z_DIM)))
    w4p = w4.astype(jnp.bfloat16)
    w5p = w5.astype(jnp.bfloat16)
    w6p = jnp.pad(w6, ((0, 0), (0, X_PAD - X_DIM))).astype(jnp.bfloat16)
    b6p = jnp.pad(b6, ((0, 0), (0, X_PAD - X_DIM)))
    return (w1p, b1, w2p, b2, w3p, b3p, w4p, b4, w5p, b5, w6p, b6p)


def vae_forward(x_nchw, eps, packed_params, *, single_buffer_weights=True):
    """Fused VAE forward.  x_nchw: (B,1,28,28) f32.  Returns (recon, mu, log_var)."""
    B = x_nchw.shape[0]
    TB = _batch_tile(B)

    x2d = x_nchw.reshape(B, X_DIM)                        # == x.view(-1, 784)
    x_pad = jnp.pad(x2d, ((0, 0), (0, X_PAD - X_DIM)))    # lane-pad 784 -> 896

    (w1, b1, w2, b2, w3, b3, w4, b4, w5, b5, w6, b6) = packed_params

    def batch_spec(width):
        return pl.BlockSpec((TB, width), lambda i: (i, 0))

    def build(single_buffer):
        def weight_spec(a):
            # Grid-invariant weights/biases: one VMEM buffer is enough; avoids
            # double-buffering weights that are never re-fetched (matters as TB
            # grows and on v7x's smaller 64 MiB VMEM).
            if single_buffer:
                try:
                    return pl.BlockSpec(a.shape, lambda i: (0, 0),
                                        pipeline_mode=pl.Buffered(1))
                except Exception:
                    pass
            return pl.BlockSpec(a.shape, lambda i: (0, 0))

        in_specs = [
            batch_spec(X_PAD),               # x (lane-padded)
            batch_spec(Z_DIM),               # eps
            weight_spec(w1), weight_spec(b1),
            weight_spec(w2), weight_spec(b2),
            weight_spec(w3), weight_spec(b3),
            weight_spec(w4), weight_spec(b4),
            weight_spec(w5), weight_spec(b5),
            weight_spec(w6), weight_spec(b6),
        ]
        out_specs = [
            batch_spec(X_PAD),               # recon (lane-padded)
            batch_spec(MULV_PAD),            # [mu | log_var | zero pad]
        ]
        out_shape = [
            jax.ShapeDtypeStruct((B, X_PAD), jnp.float32),
            jax.ShapeDtypeStruct((B, MULV_PAD), jnp.float32),
        ]
        return pl.pallas_call(
            _vae_kernel,
            out_shape=out_shape,
            grid_spec=pltpu.PrefetchScalarGridSpec(
                num_scalar_prefetch=0,
                grid=(B // TB,),
                in_specs=in_specs,
                out_specs=out_specs,
            ),
            compiler_params=pltpu.CompilerParams(
                dimension_semantics=("parallel",)),
        )

    args = (x_pad, eps, w1, b1, w2, b2, w3, b3, w4, b4, w5, b5, w6, b6)
    try:
        recon_pad, mu_lv = build(single_buffer_weights)(*args)
    except Exception:
        # Fallback if pipeline_mode=pl.Buffered(1) is unsupported by the
        # installed JAX; default double-buffering is only a small VMEM cost.
        recon_pad, mu_lv = build(False)(*args)

    recon = recon_pad[:, :X_DIM]
    mu = mu_lv[:, :Z_DIM]
    log_var = mu_lv[:, Z_DIM:2 * Z_DIM]
    return recon, mu, log_var


# ----------------------------------------------------------------------------
# Deterministic parameter init (PyTorch nn.Linear default: U(-1/sqrt(fan_in),.)).
# Weights stored already transposed to (in, out) for the x @ W kernel layout.
# ----------------------------------------------------------------------------
def init_params(key):
    dims = [
        (X_DIM, H_DIM1),   # fc1
        (H_DIM1, H_DIM2),  # fc2
        (H_DIM2, Z_DIM),   # fc31
        (H_DIM2, Z_DIM),   # fc32
        (Z_DIM, H_DIM2),   # fc4
        (H_DIM2, H_DIM1),  # fc5
        (H_DIM1, X_DIM),   # fc6
    ]
    params = []
    for (fan_in, fan_out) in dims:
        key, kw, kb = jax.random.split(key, 3)
        bound = 1.0 / np.sqrt(fan_in)
        w = jax.random.uniform(kw, (fan_in, fan_out), jnp.float32, -bound, bound)
        b = jax.random.uniform(kb, (1, fan_out), jnp.float32, -bound, bound)
        params.extend([w, b])
    return tuple(params)


# ----------------------------------------------------------------------------
# Plain-JAX references for correctness checking.
# ----------------------------------------------------------------------------
def vae_forward_ref(x_nchw, eps, params):
    """Pure f32 reference (same math as the PyTorch module)."""
    (w1, b1, w2, b2, w31, b31, w32, b32, w4, b4, w5, b5, w6, b6) = params
    x = x_nchw.reshape(-1, X_DIM)
    h = jax.nn.relu(x @ w1 + b1)
    h = jax.nn.relu(h @ w2 + b2)
    mu = h @ w31 + b31
    log_var = h @ w32 + b32
    z = eps * jnp.exp(0.5 * log_var) + mu
    d = jax.nn.relu(z @ w4 + b4)
    d = jax.nn.relu(d @ w5 + b5)
    recon = jax.nn.sigmoid(d @ w6 + b6)
    return recon, mu, log_var


def vae_forward_ref_bf16(x_nchw, eps, params):
    """Reference with the same dtype path as the kernel (bf16 MXU, f32 accum)."""
    (w1, b1, w2, b2, w31, b31, w32, b32, w4, b4, w5, b5, w6, b6) = params

    def lin(a, w, b):
        return jnp.dot(a.astype(jnp.bfloat16), w.astype(jnp.bfloat16),
                       preferred_element_type=jnp.float32) + b

    x = x_nchw.reshape(-1, X_DIM)
    h = jax.nn.relu(lin(x, w1, b1))
    h = jax.nn.relu(lin(h, w2, b2))
    mu = lin(h, w31, b31)
    log_var = lin(h, w32, b32)
    z = eps * jnp.exp(0.5 * log_var) + mu
    d = jax.nn.relu(lin(z, w4, b4))
    d = jax.nn.relu(lin(d, w5, b5))
    recon = jax.nn.sigmoid(lin(d, w6, b6))
    return recon, mu, log_var


if __name__ == "__main__":
    key = jax.random.PRNGKey(0)
    kp, kx, ke = jax.random.split(key, 3)

    params = init_params(kp)
    packed = pack_params(params)

    # MNIST-like NCHW input, values in [0, 1)
    x = jax.random.uniform(kx, (BATCH, 1, 28, 28), jnp.float32)
    # eps ~ N(0,1), precomputed (torch.randn_like equivalent) and fed in.
    eps = jax.random.normal(ke, (BATCH, Z_DIM), jnp.float32)

    recon, mu, log_var = vae_forward(x, eps, packed)
    jax.block_until_ready((recon, mu, log_var))

    # Tight check vs. a reference using the identical bf16-MXU / f32-accum path.
    r_b, m_b, l_b = vae_forward_ref_bf16(x, eps, params)
    assert np.allclose(np.asarray(recon), np.asarray(r_b), atol=5e-3, rtol=5e-3)
    assert np.allclose(np.asarray(mu), np.asarray(m_b), atol=5e-3, rtol=5e-3)
    assert np.allclose(np.asarray(log_var), np.asarray(l_b), atol=5e-3, rtol=5e-3)

    # Loose sanity check vs. the pure-f32 reference (bf16 weight quantization).
    r_f, m_f, l_f = vae_forward_ref(x, eps, params)
    assert np.allclose(np.asarray(recon), np.asarray(r_f), atol=5e-2)
    assert np.allclose(np.asarray(mu), np.asarray(m_f), atol=5e-2)
    assert np.allclose(np.asarray(log_var), np.asarray(l_f), atol=5e-2)

    print("KERNEL_OK")
</pallas_src>

<mosaic_0001>
module attributes {stable_mosaic.version = 11 : i64} {
  func.func @_vae_kernel(%arg0: i32, %arg1: memref<16x896xf32, #tpu.memory_space<vmem>>, %arg2: memref<16x16xf32, #tpu.memory_space<vmem>>, %arg3: memref<896x128xbf16, #tpu.memory_space<vmem>>, %arg4: memref<1x128xf32, #tpu.memory_space<vmem>>, %arg5: memref<128x64xbf16, #tpu.memory_space<vmem>>, %arg6: memref<1x64xf32, #tpu.memory_space<vmem>>, %arg7: memref<64x128xbf16, #tpu.memory_space<vmem>>, %arg8: memref<1x128xf32, #tpu.memory_space<vmem>>, %arg9: memref<16x64xbf16, #tpu.memory_space<vmem>>, %arg10: memref<1x64xf32, #tpu.memory_space<vmem>>, %arg11: memref<64x128xbf16, #tpu.memory_space<vmem>>, %arg12: memref<1x128xf32, #tpu.memory_space<vmem>>, %arg13: memref<128x896xbf16, #tpu.memory_space<vmem>>, %arg14: memref<1x896xf32, #tpu.memory_space<vmem>>, %arg15: memref<16x896xf32, #tpu.memory_space<vmem>>, %arg16: memref<16x128xf32, #tpu.memory_space<vmem>>) attributes {dimension_semantics = [#tpu.dimension_semantics<parallel>], iteration_bounds = array<i64: 1>, scalar_prefetch = 0 : i64, scratch_operands = 0 : i64, tpu.core_type = #tpu.core_type<tc>, window_params = [{transform_indices = @transform_0, window_bounds = array<i64: 16, 896>}, {transform_indices = @transform_1, window_bounds = array<i64: 16, 16>}, {pipeline_mode = #tpu.pipeline_mode<synchronous>, transform_indices = @transform_2, window_bounds = array<i64: 896, 128>}, {pipeline_mode = #tpu.pipeline_mode<synchronous>, transform_indices = @transform_3, window_bounds = array<i64: 1, 128>}, {pipeline_mode = #tpu.pipeline_mode<synchronous>, transform_indices = @transform_4, window_bounds = array<i64: 128, 64>}, {pipeline_mode = #tpu.pipeline_mode<synchronous>, transform_indices = @transform_5, window_bounds = array<i64: 1, 64>}, {pipeline_mode = #tpu.pipeline_mode<synchronous>, transform_indices = @transform_6, window_bounds = array<i64: 64, 128>}, {pipeline_mode = #tpu.pipeline_mode<synchronous>, transform_indices = @transform_7, window_bounds = array<i64: 1, 128>}, {pipeline_mode = #tpu.pipeline_mode<synchronous>, transform_indices = @transform_8, window_bounds = array<i64: 16, 64>}, {pipeline_mode = #tpu.pipeline_mode<synchronous>, transform_indices = @transform_9, window_bounds = array<i64: 1, 64>}, {pipeline_mode = #tpu.pipeline_mode<synchronous>, transform_indices = @transform_10, window_bounds = array<i64: 64, 128>}, {pipeline_mode = #tpu.pipeline_mode<synchronous>, transform_indices = @transform_11, window_bounds = array<i64: 1, 128>}, {pipeline_mode = #tpu.pipeline_mode<synchronous>, transform_indices = @transform_12, window_bounds = array<i64: 128, 896>}, {pipeline_mode = #tpu.pipeline_mode<synchronous>, transform_indices = @transform_13, window_bounds = array<i64: 1, 896>}, {transform_indices = @transform_14, window_bounds = array<i64: 16, 896>}, {transform_indices = @transform_15, window_bounds = array<i64: 16, 128>}]} {
    %c0 = arith.constant 0 : index
    %c0_0 = arith.constant 0 : index
    %0 = vector.load %arg1[%c0, %c0_0] : memref<16x896xf32, #tpu.memory_space<vmem>>, vector<16x896xf32>
    %1 = arith.truncf %0 : vector<16x896xf32> to vector<16x896xbf16>
    %c0_1 = arith.constant 0 : index
    %c0_2 = arith.constant 0 : index
    %2 = vector.load %arg3[%c0_1, %c0_2] : memref<896x128xbf16, #tpu.memory_space<vmem>>, vector<896x128xbf16>
    %cst = arith.constant dense<0.000000e+00> : vector<16x128xf32>
    %3 = tpu.matmul %1, %2, %cst {dimension_numbers = #tpu.dot_dimension_numbers<[1], [0], [0], [1], [0, 0, 1, 1], [], []>} : vector<16x896xbf16>, vector<896x128xbf16>, vector<16x128xf32> -> vector<16x128xf32>
    %c0_3 = arith.constant 0 : index
    %c0_4 = arith.constant 0 : index
    %4 = vector.load %arg4[%c0_3, %c0_4] : memref<1x128xf32, #tpu.memory_space<vmem>>, vector<1x128xf32>
    %5 = vector.broadcast %4 : vector<1x128xf32> to vector<16x128xf32>
    %6 = arith.addf %3, %5 : vector<16x128xf32>
    %cst_5 = arith.constant 0.000000e+00 : f32
    %7 = vector.broadcast %cst_5 : f32 to vector<16x128xf32>
    %8 = arith.maximumf %6, %7 : vector<16x128xf32>
    %9 = arith.truncf %8 : vector<16x128xf32> to vector<16x128xbf16>
    %c0_6 = arith.constant 0 : index
    %c0_7 = arith.constant 0 : index
    %10 = vector.load %arg5[%c0_6, %c0_7] : memref<128x64xbf16, #tpu.memory_space<vmem>>, vector<128x64xbf16>
    %cst_8 = arith.constant dense<0.000000e+00> : vector<16x64xf32>
    %11 = tpu.matmul %9, %10, %cst_8 {dimension_numbers = #tpu.dot_dimension_numbers<[1], [0], [0], [1], [0, 0, 1, 1], [], []>} : vector<16x128xbf16>, vector<128x64xbf16>, vector<16x64xf32> -> vector<16x64xf32>
    %c0_9 = arith.constant 0 : index
    %c0_10 = arith.constant 0 : index
    %12 = vector.load %arg6[%c0_9, %c0_10] : memref<1x64xf32, #tpu.memory_space<vmem>>, vector<1x64xf32>
    %13 = vector.broadcast %12 : vector<1x64xf32> to vector<16x64xf32>
    %14 = arith.addf %11, %13 : vector<16x64xf32>
    %cst_11 = arith.constant 0.000000e+00 : f32
    %15 = vector.broadcast %cst_11 : f32 to vector<16x64xf32>
    %16 = arith.maximumf %14, %15 : vector<16x64xf32>
    %17 = arith.truncf %16 : vector<16x64xf32> to vector<16x64xbf16>
    %c0_12 = arith.constant 0 : index
    %c0_13 = arith.constant 0 : index
    %18 = vector.load %arg7[%c0_12, %c0_13] : memref<64x128xbf16, #tpu.memory_space<vmem>>, vector<64x128xbf16>
    %cst_14 = arith.constant dense<0.000000e+00> : vector<16x128xf32>
    %19 = tpu.matmul %17, %18, %cst_14 {dimension_numbers = #tpu.dot_dimension_numbers<[1], [0], [0], [1], [0, 0, 1, 1], [], []>} : vector<16x64xbf16>, vector<64x128xbf16>, vector<16x128xf32> -> vector<16x128xf32>
    %c0_15 = arith.constant 0 : index
    %c0_16 = arith.constant 0 : index
    %20 = vector.load %arg8[%c0_15, %c0_16] : memref<1x128xf32, #tpu.memory_space<vmem>>, vector<1x128xf32>
    %21 = vector.broadcast %20 : vector<1x128xf32> to vector<16x128xf32>
    %22 = arith.addf %19, %21 : vector<16x128xf32>
    %23 = vector.extract_strided_slice %22 {offsets = [0, 0], sizes = [16, 16], strides = [1, 1]} : vector<16x128xf32> to vector<16x16xf32>
    %24 = vector.extract_strided_slice %22 {offsets = [0, 16], sizes = [16, 16], strides = [1, 1]} : vector<16x128xf32> to vector<16x16xf32>
    %c0_17 = arith.constant 0 : index
    %c0_18 = arith.constant 0 : index
    %25 = vector.load %arg2[%c0_17, %c0_18] : memref<16x16xf32, #tpu.memory_space<vmem>>, vector<16x16xf32>
    %cst_19 = arith.constant 5.000000e-01 : f32
    %26 = vector.broadcast %cst_19 : f32 to vector<16x16xf32>
    %27 = arith.mulf %26, %24 : vector<16x16xf32>
    %28 = math.exp %27 : vector<16x16xf32>
    %29 = arith.mulf %25, %28 : vector<16x16xf32>
    %30 = arith.addf %29, %23 : vector<16x16xf32>
    %31 = arith.truncf %30 : vector<16x16xf32> to vector<16x16xbf16>
    %c0_20 = arith.constant 0 : index
    %c0_21 = arith.constant 0 : index
    %32 = vector.load %arg9[%c0_20, %c0_21] : memref<16x64xbf16, #tpu.memory_space<vmem>>, vector<16x64xbf16>
    %cst_22 = arith.constant dense<0.000000e+00> : vector<16x64xf32>
    %33 = tpu.matmul %31, %32, %cst_22 {dimension_numbers = #tpu.dot_dimension_numbers<[1], [0], [0], [1], [0, 0, 1, 1], [], []>} : vector<16x16xbf16>, vector<16x64xbf16>, vector<16x64xf32> -> vector<16x64xf32>
    %c0_23 = arith.constant 0 : index
    %c0_24 = arith.constant 0 : index
    %34 = vector.load %arg10[%c0_23, %c0_24] : memref<1x64xf32, #tpu.memory_space<vmem>>, vector<1x64xf32>
    %35 = vector.broadcast %34 : vector<1x64xf32> to vector<16x64xf32>
    %36 = arith.addf %33, %35 : vector<16x64xf32>
    %cst_25 = arith.constant 0.000000e+00 : f32
    %37 = vector.broadcast %cst_25 : f32 to vector<16x64xf32>
    %38 = arith.maximumf %36, %37 : vector<16x64xf32>
    %39 = arith.truncf %38 : vector<16x64xf32> to vector<16x64xbf16>
    %c0_26 = arith.constant 0 : index
    %c0_27 = arith.constant 0 : index
    %40 = vector.load %arg11[%c0_26, %c0_27] : memref<64x128xbf16, #tpu.memory_space<vmem>>, vector<64x128xbf16>
    %cst_28 = arith.constant dense<0.000000e+00> : vector<16x128xf32>
    %41 = tpu.matmul %39, %40, %cst_28 {dimension_numbers = #tpu.dot_dimension_numbers<[1], [0], [0], [1], [0, 0, 1, 1], [], []>} : vector<16x64xbf16>, vector<64x128xbf16>, vector<16x128xf32> -> vector<16x128xf32>
    %c0_29 = arith.constant 0 : index
    %c0_30 = arith.constant 0 : index
    %42 = vector.load %arg12[%c0_29, %c0_30] : memref<1x128xf32, #tpu.memory_space<vmem>>, vector<1x128xf32>
    %43 = vector.broadcast %42 : vector<1x128xf32> to vector<16x128xf32>
    %44 = arith.addf %41, %43 : vector<16x128xf32>
    %cst_31 = arith.constant 0.000000e+00 : f32
    %45 = vector.broadcast %cst_31 : f32 to vector<16x128xf32>
    %46 = arith.maximumf %44, %45 : vector<16x128xf32>
    %47 = arith.truncf %46 : vector<16x128xf32> to vector<16x128xbf16>
    %c0_32 = arith.constant 0 : index
    %c0_33 = arith.constant 0 : index
    %48 = vector.load %arg13[%c0_32, %c0_33] : memref<128x896xbf16, #tpu.memory_space<vmem>>, vector<128x896xbf16>
    %cst_34 = arith.constant dense<0.000000e+00> : vector<16x896xf32>
    %49 = tpu.matmul %47, %48, %cst_34 {dimension_numbers = #tpu.dot_dimension_numbers<[1], [0], [0], [1], [0, 0, 1, 1], [], []>} : vector<16x128xbf16>, vector<128x896xbf16>, vector<16x896xf32> -> vector<16x896xf32>
    %c0_35 = arith.constant 0 : index
    %c0_36 = arith.constant 0 : index
    %50 = vector.load %arg14[%c0_35, %c0_36] : memref<1x896xf32, #tpu.memory_space<vmem>>, vector<1x896xf32>
    %51 = vector.broadcast %50 : vector<1x896xf32> to vector<16x896xf32>
    %52 = arith.addf %49, %51 : vector<16x896xf32>
    %53 = arith.negf %52 : vector<16x896xf32>
    %54 = math.exp %53 : vector<16x896xf32>
    %cst_37 = arith.constant 1.000000e+00 : f32
    %55 = vector.broadcast %cst_37 : f32 to vector<16x896xf32>
    %56 = arith.addf %55, %54 : vector<16x896xf32>
    %57 = arith.divf %55, %56 : vector<16x896xf32>
    %c0_38 = arith.constant 0 : index
    %c0_39 = arith.constant 0 : index
    %58 = vector.load %arg15[%c0_38, %c0_39] : memref<16x896xf32, #tpu.memory_space<vmem>>, vector<16x896xf32>
    tpu.vector_store %arg15[%c0_38, %c0_39], %57 {strides = array<i32>} : memref<16x896xf32, #tpu.memory_space<vmem>>, vector<16x896xf32>,
    %c0_40 = arith.constant 0 : index
    %c0_41 = arith.constant 0 : index
    %59 = vector.load %arg16[%c0_40, %c0_41] : memref<16x128xf32, #tpu.memory_space<vmem>>, vector<16x128xf32>
    tpu.vector_store %arg16[%c0_40, %c0_41], %22 {strides = array<i32>} : memref<16x128xf32, #tpu.memory_space<vmem>>, vector<16x128xf32>,
    return
  }
  func.func @transform_0(%arg0: i32) -> (i32, i32) {
    %c0_i32 = arith.constant 0 : i32
    %c0_i32_0 = arith.constant 0 : i32
    return %arg0, %c0_i32 : i32, i32
  }
  func.func @transform_1(%arg0: i32) -> (i32, i32) {
    %c0_i32 = arith.constant 0 : i32
    %c0_i32_0 = arith.constant 0 : i32
    return %arg0, %c0_i32 : i32, i32
  }
  func.func @transform_2(%arg0: i32) -> (i32, i32) {
    %c0_i32 = arith.constant 0 : i32
    %c0_i32_0 = arith.constant 0 : i32
    %c0_i32_1 = arith.constant 0 : i32
    return %c0_i32, %c0_i32_0 : i32, i32
  }
  func.func @transform_3(%arg0: i32) -> (i32, i32) {
    %c0_i32 = arith.constant 0 : i32
    %c0_i32_0 = arith.constant 0 : i32
    %c0_i32_1 = arith.constant 0 : i32
    return %c0_i32, %c0_i32_0 : i32, i32
  }
  func.func @transform_4(%arg0: i32) -> (i32, i32) {
    %c0_i32 = arith.constant 0 : i32
    %c0_i32_0 = arith.constant 0 : i32
    %c0_i32_1 = arith.constant 0 : i32
    return %c0_i32, %c0_i32_0 : i32, i32
  }
  func.func @transform_5(%arg0: i32) -> (i32, i32) {
    %c0_i32 = arith.constant 0 : i32
    %c0_i32_0 = arith.constant 0 : i32
    %c0_i32_1 = arith.constant 0 : i32
    return %c0_i32, %c0_i32_0 : i32, i32
  }
  func.func @transform_6(%arg0: i32) -> (i32, i32) {
    %c0_i32 = arith.constant 0 : i32
    %c0_i32_0 = arith.constant 0 : i32
    %c0_i32_1 = arith.constant 0 : i32
    return %c0_i32, %c0_i32_0 : i32, i32
  }
  func.func @transform_7(%arg0: i32) -> (i32, i32) {
    %c0_i32 = arith.constant 0 : i32
    %c0_i32_0 = arith.constant 0 : i32
    %c0_i32_1 = arith.constant 0 : i32
    return %c0_i32, %c0_i32_0 : i32, i32
  }
  func.func @transform_8(%arg0: i32) -> (i32, i32) {
    %c0_i32 = arith.constant 0 : i32
    %c0_i32_0 = arith.constant 0 : i32
    %c0_i32_1 = arith.constant 0 : i32
    return %c0_i32, %c0_i32_0 : i32, i32
  }
  func.func @transform_9(%arg0: i32) -> (i32, i32) {
    %c0_i32 = arith.constant 0 : i32
    %c0_i32_0 = arith.constant 0 : i32
    %c0_i32_1 = arith.constant 0 : i32
    return %c0_i32, %c0_i32_0 : i32, i32
  }
  func.func @transform_10(%arg0: i32) -> (i32, i32) {
    %c0_i32 = arith.constant 0 : i32
    %c0_i32_0 = arith.constant 0 : i32
    %c0_i32_1 = arith.constant 0 : i32
    return %c0_i32, %c0_i32_0 : i32, i32
  }
  func.func @transform_11(%arg0: i32) -> (i32, i32) {
    %c0_i32 = arith.constant 0 : i32
    %c0_i32_0 = arith.constant 0 : i32
    %c0_i32_1 = arith.constant 0 : i32
    return %c0_i32, %c0_i32_0 : i32, i32
  }
  func.func @transform_12(%arg0: i32) -> (i32, i32) {
    %c0_i32 = arith.constant 0 : i32
    %c0_i32_0 = arith.constant 0 : i32
    %c0_i32_1 = arith.constant 0 : i32
    return %c0_i32, %c0_i32_0 : i32, i32
  }
  func.func @transform_13(%arg0: i32) -> (i32, i32) {
    %c0_i32 = arith.constant 0 : i32
    %c0_i32_0 = arith.constant 0 : i32
    %c0_i32_1 = arith.constant 0 : i32
    return %c0_i32, %c0_i32_0 : i32, i32
  }
  func.func @transform_14(%arg0: i32) -> (i32, i32) {
    %c0_i32 = arith.constant 0 : i32
    %c0_i32_0 = arith.constant 0 : i32
    return %arg0, %c0_i32 : i32, i32
  }
  func.func @transform_15(%arg0: i32) -> (i32, i32) {
    %c0_i32 = arith.constant 0 : i32
    %c0_i32_0 = arith.constant 0 : i32
    return %arg0, %c0_i32 : i32, i32
  }
}

module attributes {stable_mosaic.version = 11 : i64} {
  func.func @_vae_kernel(%arg0: i32, %arg1: memref<16x896xf32, #tpu.memory_space<vmem>>, %arg2: memref<16x16xf32, #tpu.memory_space<vmem>>, %arg3: memref<896x128xbf16, #tpu.memory_space<vmem>>, %arg4: memref<1x128xf32, #tpu.memory_space<vmem>>, %arg5: memref<128x64xbf16, #tpu.memory_space<vmem>>, %arg6: memref<1x64xf32, #tpu.memory_space<vmem>>, %arg7: memref<64x128xbf16, #tpu.memory_space<vmem>>, %arg8: memref<1x128xf32, #tpu.memory_space<vmem>>, %arg9: memref<16x64xbf16, #tpu.memory_space<vmem>>, %arg10: memref<1x64xf32, #tpu.memory_space<vmem>>, %arg11: memref<64x128xbf16, #tpu.memory_space<vmem>>, %arg12: memref<1x128xf32, #tpu.memory_space<vmem>>, %arg13: memref<128x896xbf16, #tpu.memory_space<vmem>>, %arg14: memref<1x896xf32, #tpu.memory_space<vmem>>, %arg15: memref<16x896xf32, #tpu.memory_space<vmem>>, %arg16: memref<16x128xf32, #tpu.memory_space<vmem>>) attributes {dimension_semantics = [#tpu.dimension_semantics<parallel>], iteration_bounds = array<i64: 1>, scalar_prefetch = 0 : i64, scratch_operands = 0 : i64, tpu.core_type = #tpu.core_type<tc>, window_params = [{transform_indices = @transform_0, window_bounds = array<i64: 16, 896>}, {transform_indices = @transform_1, window_bounds = array<i64: 16, 16>}, {pipeline_mode = #tpu.pipeline_mode<synchronous>, transform_indices = @transform_2, window_bounds = array<i64: 896, 128>}, {pipeline_mode = #tpu.pipeline_mode<synchronous>, transform_indices = @transform_3, window_bounds = array<i64: 1, 128>}, {pipeline_mode = #tpu.pipeline_mode<synchronous>, transform_indices = @transform_4, window_bounds = array<i64: 128, 64>}, {pipeline_mode = #tpu.pipeline_mode<synchronous>, transform_indices = @transform_5, window_bounds = array<i64: 1, 64>}, {pipeline_mode = #tpu.pipeline_mode<synchronous>, transform_indices = @transform_6, window_bounds = array<i64: 64, 128>}, {pipeline_mode = #tpu.pipeline_mode<synchronous>, transform_indices = @transform_7, window_bounds = array<i64: 1, 128>}, {pipeline_mode = #tpu.pipeline_mode<synchronous>, transform_indices = @transform_8, window_bounds = array<i64: 16, 64>}, {pipeline_mode = #tpu.pipeline_mode<synchronous>, transform_indices = @transform_9, window_bounds = array<i64: 1, 64>}, {pipeline_mode = #tpu.pipeline_mode<synchronous>, transform_indices = @transform_10, window_bounds = array<i64: 64, 128>}, {pipeline_mode = #tpu.pipeline_mode<synchronous>, transform_indices = @transform_11, window_bounds = array<i64: 1, 128>}, {pipeline_mode = #tpu.pipeline_mode<synchronous>, transform_indices = @transform_12, window_bounds = array<i64: 128, 896>}, {pipeline_mode = #tpu.pipeline_mode<synchronous>, transform_indices = @transform_13, window_bounds = array<i64: 1, 896>}, {transform_indices = @transform_14, window_bounds = array<i64: 16, 896>}, {transform_indices = @transform_15, window_bounds = array<i64: 16, 128>}]} {
    %c0 = arith.constant 0 : index
    %c0_0 = arith.constant 0 : index
    %0 = vector.load %arg1[%c0, %c0_0] : memref<16x896xf32, #tpu.memory_space<vmem>>, vector<16x896xf32>
    %1 = arith.truncf %0 : vector<16x896xf32> to vector<16x896xbf16>
    %c0_1 = arith.constant 0 : index
    %c0_2 = arith.constant 0 : index
    %2 = vector.load %arg3[%c0_1, %c0_2] : memref<896x128xbf16, #tpu.memory_space<vmem>>, vector<896x128xbf16>
    %cst = arith.constant dense<0.000000e+00> : vector<16x128xf32>
    %3 = tpu.matmul %1, %2, %cst {dimension_numbers = #tpu.dot_dimension_numbers<[1], [0], [0], [1], [0, 0, 1, 1], [], []>} : vector<16x896xbf16>, vector<896x128xbf16>, vector<16x128xf32> -> vector<16x128xf32>
    %c0_3 = arith.constant 0 : index
    %c0_4 = arith.constant 0 : index
    %4 = vector.load %arg4[%c0_3, %c0_4] : memref<1x128xf32, #tpu.memory_space<vmem>>, vector<1x128xf32>
    %5 = vector.broadcast %4 : vector<1x128xf32> to vector<16x128xf32>
    %6 = arith.addf %3, %5 : vector<16x128xf32>
    %cst_5 = arith.constant 0.000000e+00 : f32
    %7 = vector.broadcast %cst_5 : f32 to vector<16x128xf32>
    %8 = arith.maximumf %6, %7 : vector<16x128xf32>
    %9 = arith.truncf %8 : vector<16x128xf32> to vector<16x128xbf16>
    %c0_6 = arith.constant 0 : index
    %c0_7 = arith.constant 0 : index
    %10 = vector.load %arg5[%c0_6, %c0_7] : memref<128x64xbf16, #tpu.memory_space<vmem>>, vector<128x64xbf16>
    %cst_8 = arith.constant dense<0.000000e+00> : vector<16x64xf32>
    %11 = tpu.matmul %9, %10, %cst_8 {dimension_numbers = #tpu.dot_dimension_numbers<[1], [0], [0], [1], [0, 0, 1, 1], [], []>} : vector<16x128xbf16>, vector<128x64xbf16>, vector<16x64xf32> -> vector<16x64xf32>
    %c0_9 = arith.constant 0 : index
    %c0_10 = arith.constant 0 : index
    %12 = vector.load %arg6[%c0_9, %c0_10] : memref<1x64xf32, #tpu.memory_space<vmem>>, vector<1x64xf32>
    %13 = vector.broadcast %12 : vector<1x64xf32> to vector<16x64xf32>
    %14 = arith.addf %11, %13 : vector<16x64xf32>
    %cst_11 = arith.constant 0.000000e+00 : f32
    %15 = vector.broadcast %cst_11 : f32 to vector<16x64xf32>
    %16 = arith.maximumf %14, %15 : vector<16x64xf32>
    %17 = arith.truncf %16 : vector<16x64xf32> to vector<16x64xbf16>
    %c0_12 = arith.constant 0 : index
    %c0_13 = arith.constant 0 : index
    %18 = vector.load %arg7[%c0_12, %c0_13] : memref<64x128xbf16, #tpu.memory_space<vmem>>, vector<64x128xbf16>
    %cst_14 = arith.constant dense<0.000000e+00> : vector<16x128xf32>
    %19 = tpu.matmul %17, %18, %cst_14 {dimension_numbers = #tpu.dot_dimension_numbers<[1], [0], [0], [1], [0, 0, 1, 1], [], []>} : vector<16x64xbf16>, vector<64x128xbf16>, vector<16x128xf32> -> vector<16x128xf32>
    %c0_15 = arith.constant 0 : index
    %c0_16 = arith.constant 0 : index
    %20 = vector.load %arg8[%c0_15, %c0_16] : memref<1x128xf32, #tpu.memory_space<vmem>>, vector<1x128xf32>
    %21 = vector.broadcast %20 : vector<1x128xf32> to vector<16x128xf32>
    %22 = arith.addf %19, %21 : vector<16x128xf32>
    %23 = vector.extract_strided_slice %22 {offsets = [0, 0], sizes = [16, 16], strides = [1, 1]} : vector<16x128xf32> to vector<16x16xf32>
    %24 = vector.extract_strided_slice %22 {offsets = [0, 16], sizes = [16, 16], strides = [1, 1]} : vector<16x128xf32> to vector<16x16xf32>
    %c0_17 = arith.constant 0 : index
    %c0_18 = arith.constant 0 : index
    %25 = vector.load %arg2[%c0_17, %c0_18] : memref<16x16xf32, #tpu.memory_space<vmem>>, vector<16x16xf32>
    %cst_19 = arith.constant 5.000000e-01 : f32
    %26 = vector.broadcast %cst_19 : f32 to vector<16x16xf32>
    %27 = arith.mulf %26, %24 : vector<16x16xf32>
    %28 = math.exp %27 : vector<16x16xf32>
    %29 = arith.mulf %25, %28 : vector<16x16xf32>
    %30 = arith.addf %29, %23 : vector<16x16xf32>
    %31 = arith.truncf %30 : vector<16x16xf32> to vector<16x16xbf16>
    %c0_20 = arith.constant 0 : index
    %c0_21 = arith.constant 0 : index
    %32 = vector.load %arg9[%c0_20, %c0_21] : memref<16x64xbf16, #tpu.memory_space<vmem>>, vector<16x64xbf16>
    %cst_22 = arith.constant dense<0.000000e+00> : vector<16x64xf32>
    %33 = tpu.matmul %31, %32, %cst_22 {dimension_numbers = #tpu.dot_dimension_numbers<[1], [0], [0], [1], [0, 0, 1, 1], [], []>} : vector<16x16xbf16>, vector<16x64xbf16>, vector<16x64xf32> -> vector<16x64xf32>
    %c0_23 = arith.constant 0 : index
    %c0_24 = arith.constant 0 : index
    %34 = vector.load %arg10[%c0_23, %c0_24] : memref<1x64xf32, #tpu.memory_space<vmem>>, vector<1x64xf32>
    %35 = vector.broadcast %34 : vector<1x64xf32> to vector<16x64xf32>
    %36 = arith.addf %33, %35 : vector<16x64xf32>
    %cst_25 = arith.constant 0.000000e+00 : f32
    %37 = vector.broadcast %cst_25 : f32 to vector<16x64xf32>
    %38 = arith.maximumf %36, %37 : vector<16x64xf32>
    %39 = arith.truncf %38 : vector<16x64xf32> to vector<16x64xbf16>
    %c0_26 = arith.constant 0 : index
    %c0_27 = arith.constant 0 : index
    %40 = vector.load %arg11[%c0_26, %c0_27] : memref<64x128xbf16, #tpu.memory_space<vmem>>, vector<64x128xbf16>
    %cst_28 = arith.constant dense<0.000000e+00> : vector<16x128xf32>
    %41 = tpu.matmul %39, %40, %cst_28 {dimension_numbers = #tpu.dot_dimension_numbers<[1], [0], [0], [1], [0, 0, 1, 1], [], []>} : vector<16x64xbf16>, vector<64x128xbf16>, vector<16x128xf32> -> vector<16x128xf32>
    %c0_29 = arith.constant 0 : index
    %c0_30 = arith.constant 0 : index
    %42 = vector.load %arg12[%c0_29, %c0_30] : memref<1x128xf32, #tpu.memory_space<vmem>>, vector<1x128xf32>
    %43 = vector.broadcast %42 : vector<1x128xf32> to vector<16x128xf32>
    %44 = arith.addf %41, %43 : vector<16x128xf32>
    %cst_31 = arith.constant 0.000000e+00 : f32
    %45 = vector.broadcast %cst_31 : f32 to vector<16x128xf32>
    %46 = arith.maximumf %44, %45 : vector<16x128xf32>
    %47 = arith.truncf %46 : vector<16x128xf32> to vector<16x128xbf16>
    %c0_32 = arith.constant 0 : index
    %c0_33 = arith.constant 0 : index
    %48 = vector.load %arg13[%c0_32, %c0_33] : memref<128x896xbf16, #tpu.memory_space<vmem>>, vector<128x896xbf16>
    %cst_34 = arith.constant dense<0.000000e+00> : vector<16x896xf32>
    %49 = tpu.matmul %47, %48, %cst_34 {dimension_numbers = #tpu.dot_dimension_numbers<[1], [0], [0], [1], [0, 0, 1, 1], [], []>} : vector<16x128xbf16>, vector<128x896xbf16>, vector<16x896xf32> -> vector<16x896xf32>
    %c0_35 = arith.constant 0 : index
    %c0_36 = arith.constant 0 : index
    %50 = vector.load %arg14[%c0_35, %c0_36] : memref<1x896xf32, #tpu.memory_space<vmem>>, vector<1x896xf32>
    %51 = vector.broadcast %50 : vector<1x896xf32> to vector<16x896xf32>
    %52 = arith.addf %49, %51 : vector<16x896xf32>
    %53 = arith.negf %52 : vector<16x896xf32>
    %54 = math.exp %53 : vector<16x896xf32>
    %cst_37 = arith.constant 1.000000e+00 : f32
    %55 = vector.broadcast %cst_37 : f32 to vector<16x896xf32>
    %56 = arith.addf %55, %54 : vector<16x896xf32>
    %57 = arith.divf %55, %56 : vector<16x896xf32>
    %c0_38 = arith.constant 0 : index
    %c0_39 = arith.constant 0 : index
    %58 = vector.load %arg15[%c0_38, %c0_39] : memref<16x896xf32, #tpu.memory_space<vmem>>, vector<16x896xf32>
    tpu.vector_store %arg15[%c0_38, %c0_39], %57 {strides = array<i32>} : memref<16x896xf32, #tpu.memory_space<vmem>>, vector<16x896xf32>,
    %c0_40 = arith.constant 0 : index
    %c0_41 = arith.constant 0 : index
    %59 = vector.load %arg16[%c0_40, %c0_41] : memref<16x128xf32, #tpu.memory_space<vmem>>, vector<16x128xf32>
    tpu.vector_store %arg16[%c0_40, %c0_41], %22 {strides = array<i32>} : memref<16x128xf32, #tpu.memory_space<vmem>>, vector<16x128xf32>,
    return
  }
  func.func @transform_0(%arg0: i32) -> (i32, i32) {
    %c0_i32 = arith.constant 0 : i32
    %c0_i32_0 = arith.constant 0 : i32
    return %arg0, %c0_i32 : i32, i32
  }
  func.func @transform_1(%arg0: i32) -> (i32, i32) {
    %c0_i32 = arith.constant 0 : i32
    %c0_i32_0 = arith.constant 0 : i32
    return %arg0, %c0_i32 : i32, i32
  }
  func.func @transform_2(%arg0: i32) -> (i32, i32) {
    %c0_i32 = arith.constant 0 : i32
    %c0_i32_0 = arith.constant 0 : i32
    %c0_i32_1 = arith.constant 0 : i32
    return %c0_i32, %c0_i32_0 : i32, i32
  }
  func.func @transform_3(%arg0: i32) -> (i32, i32) {
    %c0_i32 = arith.constant 0 : i32
    %c0_i32_0 = arith.constant 0 : i32
    %c0_i32_1 = arith.constant 0 : i32
    return %c0_i32, %c0_i32_0 : i32, i32
  }
  func.func @transform_4(%arg0: i32) -> (i32, i32) {
    %c0_i32 = arith.constant 0 : i32
    %c0_i32_0 = arith.constant 0 : i32
    %c0_i32_1 = arith.constant 0 : i32
    return %c0_i32, %c0_i32_0 : i32, i32
  }
  func.func @transform_5(%arg0: i32) -> (i32, i32) {
    %c0_i32 = arith.constant 0 : i32
    %c0_i32_0 = arith.constant 0 : i32
    %c0_i32_1 = arith.constant 0 : i32
    return %c0_i32, %c0_i32_0 : i32, i32
  }
  func.func @transform_6(%arg0: i32) -> (i32, i32) {
    %c0_i32 = arith.constant 0 : i32
    %c0_i32_0 = arith.constant 0 : i32
    %c0_i32_1 = arith.constant 0 : i32
    return %c0_i32, %c0_i32_0 : i32, i32
  }
  func.func @transform_7(%arg0: i32) -> (i32, i32) {
    %c0_i32 = arith.constant 0 : i32
    %c0_i32_0 = arith.constant 0 : i32
    %c0_i32_1 = arith.constant 0 : i32
    return %c0_i32, %c0_i32_0 : i32, i32
  }
  func.func @transform_8(%arg0: i32) -> (i32, i32) {
    %c0_i32 = arith.constant 0 : i32
    %c0_i32_0 = arith.constant 0 : i32
    %c0_i32_1 = arith.constant 0 : i32
    return %c0_i32, %c0_i32_0 : i32, i32
  }
  func.func @transform_9(%arg0: i32) -> (i32, i32) {
    %c0_i32 = arith.constant 0 : i32
    %c0_i32_0 = arith.constant 0 : i32
    %c0_i32_1 = arith.constant 0 : i32
    return %c0_i32, %c0_i32_0 : i32, i32
  }
  func.func @transform_10(%arg0: i32) -> (i32, i32) {
    %c0_i32 = arith.constant 0 : i32
    %c0_i32_0 = arith.constant 0 : i32
    %c0_i32_1 = arith.constant 0 : i32
    return %c0_i32, %c0_i32_0 : i32, i32
  }
  func.func @transform_11(%arg0: i32) -> (i32, i32) {
    %c0_i32 = arith.constant 0 : i32
    %c0_i32_0 = arith.constant 0 : i32
    %c0_i32_1 = arith.constant 0 : i32
    return %c0_i32, %c0_i32_0 : i32, i32
  }
  func.func @transform_12(%arg0: i32) -> (i32, i32) {
    %c0_i32 = arith.constant 0 : i32
    %c0_i32_0 = arith.constant 0 : i32
    %c0_i32_1 = arith.constant 0 : i32
    return %c0_i32, %c0_i32_0 : i32, i32
  }
  func.func @transform_13(%arg0: i32) -> (i32, i32) {
    %c0_i32 = arith.constant 0 : i32
    %c0_i32_0 = arith.constant 0 : i32
    %c0_i32_1 = arith.constant 0 : i32
    return %c0_i32, %c0_i32_0 : i32, i32
  }
  func.func @transform_14(%arg0: i32) -> (i32, i32) {
    %c0_i32 = arith.constant 0 : i32
    %c0_i32_0 = arith.constant 0 : i32
    return %arg0, %c0_i32 : i32, i32
  }
  func.func @transform_15(%arg0: i32) -> (i32, i32) {
    %c0_i32 = arith.constant 0 : i32
    %c0_i32_0 = arith.constant 0 : i32
    return %arg0, %c0_i32 : i32, i32
  }
}

</mosaic_0001>

<llo_original>
// kernel: tpu_custom_call.1
$region0: #{tpu_custom_call.1}
  #allocation0 [shape = 'u32[]', space=smem, size = 0x4, offset = 0x4, fixed_abs, tag = 'smem constant byte address 0x4 - core index']
  #allocation1 [shape = 'u32[72,128]{1,0:T(1,128)}', space=vmem, size = 0x9000, scoped, tag = 'internal scratch']
  %s0 = inlined_call_operand.hbm [shape: f32[16,896], index: 0, kind: input, shape index: {}]
  %s1 = inlined_call_operand.vmem [shape: f32[16,16], index: 1, kind: input, shape index: {}]
  %s2 = inlined_call_operand.hbm [shape: bf16[896,128], index: 2, kind: input, shape index: {}]
  %s3 = inlined_call_operand.vmem [shape: f32[1,128], index: 3, kind: input, shape index: {}]
  %s4 = inlined_call_operand.vmem [shape: bf16[128,64], index: 4, kind: input, shape index: {}]
  %s5 = inlined_call_operand.vmem [shape: f32[1,64], index: 5, kind: input, shape index: {}]
  %s6 = inlined_call_operand.vmem [shape: bf16[64,128], index: 6, kind: input, shape index: {}]
  %s7 = inlined_call_operand.vmem [shape: f32[1,128], index: 7, kind: input, shape index: {}]
  %s8 = inlined_call_operand.vmem [shape: bf16[16,64], index: 8, kind: input, shape index: {}]
  %s9 = inlined_call_operand.vmem [shape: f32[1,64], index: 9, kind: input, shape index: {}]
  %s10 = inlined_call_operand.vmem [shape: bf16[64,128], index: 10, kind: input, shape index: {}]
  %s11 = inlined_call_operand.vmem [shape: f32[1,128], index: 11, kind: input, shape index: {}]
  %s12 = inlined_call_operand.hbm [shape: bf16[128,896], index: 12, kind: input, shape index: {}]
  %s13 = inlined_call_operand.vmem [shape: f32[1,896], index: 13, kind: input, shape index: {}]
  %s14 = inlined_call_operand.hbm [shape: f32[16,896], index: 14, kind: output, shape index: {0}]
  %s15 = inlined_call_operand.hbm [shape: f32[16,128], index: 15, kind: output, shape index: {1}]
  %16 = xla_tuple %s14, %s15
  %s17 = sld [smem:[#allocation0]]
  $region86: #{tpu_custom_call.1} parent=0
    _
  %s19 = ssub.s32 1, %s17
  %s20 = scalar_select 0, %s19, %s17
  $region1: #{tpu_custom_call.1} parent=0
    #allocation2 [shape = 'u8[57344]{0}', space=vmem, size = 0xe000, scoped, tag = 'input window, operand 0, single buffered']
    #allocation3 [shape = 's32[1]{0}', space=sflag, size = 0x4, scoped, tag = 'scoped memory for tpu_custom_call.1']
    #allocation4 [shape = 's32[1]{0}', space=sflag, size = 0x4, scoped, tag = 'scoped memory for tpu_custom_call.1']
    #allocation5 [shape = 'u8[229376]{0}', space=vmem, size = 0x38000, scoped, tag = 'input window, operand 2, single buffered']
    #allocation6 [shape = 's32[1]{0}', space=sflag, size = 0x4, scoped, tag = 'scoped memory for tpu_custom_call.1']
    #allocation7 [shape = 'u8[229376]{0}', space=vmem, size = 0x38000, scoped, tag = 'input window, operand 12, single buffered']
    #allocation8 [shape = 'u8[57344]{0}', space=vmem, size = 0xe000, scoped, tag = 'output window, operand 0, single buffered']
    #allocation9 [shape = 'u8[8192]{0}', space=vmem, size = 0x2000, scoped, tag = 'output window, operand 1, single buffered']
    #allocation10 [shape = 's32[1]{0}', space=sflag, size = 0x4, scoped, tag = 'scoped memory for tpu_custom_call.1']
    %21 = vsyncpa [#allocation3], 0
    %22 = vsyncpa [#allocation6], 0
    %23 = vsyncpa [#allocation4], 0
    %24 = vsyncpa [#allocation10], 0
    // Predicated region
    $region2: #{tpu_custom_call.1} parent=1 // pred_check
      _
    $region3: #{tpu_custom_call.1} parent=1 // pred_check_branch
      %26 = sbr.rel (0) target = $region5
    $region4: #{tpu_custom_call.1} parent=1 // pred_region
      %28 = vsyncadd [#allocation3], 0
      %s29 = sshll.u32 %s0, 4
      %s30 = int_to_ptr.hbm [resolvable:$true] %s29
      %s31 = sshll.u32 [#allocation2], 4
      %s32 = int_to_ptr.vmem [resolvable:$true] %s31
      %37 = dma.hbm_to_vmem [thread:$0]  %s30, 1792, %s32, [#allocation3], 896, 896, 56
    $region5: #{tpu_custom_call.1} parent=1 // pred_fallthru
      _
    // Predicated region
    $region6: #{tpu_custom_call.1} parent=1 // pred_check
      _
    $region7: #{tpu_custom_call.1} parent=1 // pred_check_branch
      %39 = sbr.rel (0) target = $region9
    $region8: #{tpu_custom_call.1} parent=1 // pred_region
      _
    $region9: #{tpu_custom_call.1} parent=1 // pred_fallthru
      _
    // Predicated region
    $region10: #{tpu_custom_call.1} parent=1 // pred_check
      _
    $region11: #{tpu_custom_call.1} parent=1 // pred_check_branch
      %41 = sbr.rel (0) target = $region13
    $region12: #{tpu_custom_call.1} parent=1 // pred_region
      %43 = vsyncadd [#allocation6], 0
      %s44 = sshll.u32 %s2, 4
      %s45 = int_to_ptr.hbm [resolvable:$true] %s44
      %s46 = sshll.u32 [#allocation5], 4
      %s47 = int_to_ptr.vmem [resolvable:$true] %s46
      %52 = dma.hbm_to_vmem [thread:$0]  %s45, 7168, %s47, [#allocation6], 64, 64, 4
    $region13: #{tpu_custom_call.1} parent=1 // pred_fallthru
      _
    // Predicated region
    $region14: #{tpu_custom_call.1} parent=1 // pred_check
      _
    $region15: #{tpu_custom_call.1} parent=1 // pred_check_branch
      %54 = sbr.rel (0) target = $region17
    $region16: #{tpu_custom_call.1} parent=1 // pred_region
      _
    $region17: #{tpu_custom_call.1} parent=1 // pred_fallthru
      _
    // Predicated region
    $region18: #{tpu_custom_call.1} parent=1 // pred_check
      _
    $region19: #{tpu_custom_call.1} parent=1 // pred_check_branch
      %56 = sbr.rel (0) target = $region21
    $region20: #{tpu_custom_call.1} parent=1 // pred_region
      _
    $region21: #{tpu_custom_call.1} parent=1 // pred_fallthru
      _
    // Predicated region
    $region22: #{tpu_custom_call.1} parent=1 // pred_check
      _
    $region23: #{tpu_custom_call.1} parent=1 // pred_check_branch
      %58 = sbr.rel (0) target = $region25
    $region24: #{tpu_custom_call.1} parent=1 // pred_region
      _
    $region25: #{tpu_custom_call.1} parent=1 // pred_fallthru
      _
    // Predicated region
    $region26: #{tpu_custom_call.1} parent=1 // pred_check
      _
    $region27: #{tpu_custom_call.1} parent=1 // pred_check_branch
      %60 = sbr.rel (0) target = $region29
    $region28: #{tpu_custom_call.1} parent=1 // pred_region
      _
    $region29: #{tpu_custom_call.1} parent=1 // pred_fallthru
      _
    // Predicated region
    $region30: #{tpu_custom_call.1} parent=1 // pred_check
      _
    $region31: #{tpu_custom_call.1} parent=1 // pred_check_branch
      %62 = sbr.rel (0) target = $region33
    $region32: #{tpu_custom_call.1} parent=1 // pred_region
      _
    $region33: #{tpu_custom_call.1} parent=1 // pred_fallthru
      _
    // Predicated region
    $region34: #{tpu_custom_call.1} parent=1 // pred_check
      _
    $region35: #{tpu_custom_call.1} parent=1 // pred_check_branch
      %64 = sbr.rel (0) target = $region37
    $region36: #{tpu_custom_call.1} parent=1 // pred_region
      _
    $region37: #{tpu_custom_call.1} parent=1 // pred_fallthru
      _
    // Predicated region
    $region38: #{tpu_custom_call.1} parent=1 // pred_check
      _
    $region39: #{tpu_custom_call.1} parent=1 // pred_check_branch
      %66 = sbr.rel (0) target = $region41
    $region40: #{tpu_custom_call.1} parent=1 // pred_region
      _
    $region41: #{tpu_custom_call.1} parent=1 // pred_fallthru
      _
    // Predicated region
    $region42: #{tpu_custom_call.1} parent=1 // pred_check
      _
    $region43: #{tpu_custom_call.1} parent=1 // pred_check_branch
      %68 = sbr.rel (0) target = $region45
    $region44: #{tpu_custom_call.1} parent=1 // pred_region
      _
    $region45: #{tpu_custom_call.1} parent=1 // pred_fallthru
      _
    // Predicated region
    $region46: #{tpu_custom_call.1} parent=1 // pred_check
      _
    $region47: #{tpu_custom_call.1} parent=1 // pred_check_branch
      %70 = sbr.rel (0) target = $region49
    $region48: #{tpu_custom_call.1} parent=1 // pred_region
      _
    $region49: #{tpu_custom_call.1} parent=1 // pred_fallthru
      _
    // Predicated region
    $region50: #{tpu_custom_call.1} parent=1 // pred_check
      _
    $region51: #{tpu_custom_call.1} parent=1 // pred_check_branch
      %72 = sbr.rel (0) target = $region53
    $region52: #{tpu_custom_call.1} parent=1 // pred_region
      %74 = vsyncadd [#allocation6], 0
      %s75 = sshll.u32 %s12, 4
      %s76 = int_to_ptr.hbm [resolvable:$true] %s75
      %s77 = sshll.u32 [#allocation7], 4
      %s78 = int_to_ptr.vmem [resolvable:$true] %s77
      %83 = dma.hbm_to_vmem [thread:$0]  %s76, 7168, %s78, [#allocation6], 448, 448, 28
    $region53: #{tpu_custom_call.1} parent=1 // pred_fallthru
      _
    // Predicated region
    $region54: #{tpu_custom_call.1} parent=1 // pred_check
      _
    $region55: #{tpu_custom_call.1} parent=1 // pred_check_branch
      %85 = sbr.rel (0) target = $region57
    $region56: #{tpu_custom_call.1} parent=1 // pred_region
      _
    $region57: #{tpu_custom_call.1} parent=1 // pred_fallthru
      _
    // Predicated region
    $region58: #{tpu_custom_call.1} parent=1 // pred_check
      _
    $region59: #{tpu_custom_call.1} parent=1 // pred_check_branch
      %87 = sbr.rel (0) target = $region61
    $region60: #{tpu_custom_call.1} parent=1 // pred_region
      %89 = dma.done [#allocation3], 1792
    $region61: #{tpu_custom_call.1} parent=1 // pred_fallthru
      _
    // Predicated region
    $region62: #{tpu_custom_call.1} parent=1 // pred_check
      _
    $region63: #{tpu_custom_call.1} parent=1 // pred_check_branch
      %91 = sbr.rel (0) target = $region65
    $region64: #{tpu_custom_call.1} parent=1 // pred_region
      %93 = dma.done [#allocation6], 7168
    $region65: #{tpu_custom_call.1} parent=1 // pred_fallthru
      _
    // Predicated region
    $region66: #{tpu_custom_call.1} parent=1 // pred_check
      _
    $region67: #{tpu_custom_call.1} parent=1 // pred_check_branch
      %95 = sbr.rel (0) target = $region69
    $region68: #{tpu_custom_call.1} parent=1 // pred_region
      %97 = dma.done [#allocation6], 7168
    $region69: #{tpu_custom_call.1} parent=1 // pred_fallthru
      _
    %v99 = vld [vmem:[#allocation2] sm:$0xff]
    %v100 = vld [vmem:[#allocation2 + $0x8] sm:$0xff]
    %v101 = vld [vmem:[#allocation2 + $0x10] sm:$0xff]
    %v102 = vld [vmem:[#allocation2 + $0x18] sm:$0xff]
    %v103 = vld [vmem:[#allocation2 + $0x20] sm:$0xff]
    %v104 = vld [vmem:[#allocation2 + $0x28] sm:$0xff]
    %v105 = vld [vmem:[#allocation2 + $0x30] sm:$0xff]
    %v106 = vld [vmem:[#allocation2 + $0x38] sm:$0xff]
    %v107 = vld [vmem:[#allocation2 + $0x40] sm:$0xff]
    %v108 = vld [vmem:[#allocation2 + $0x48] sm:$0xff]
    %v109 = vld [vmem:[#allocation2 + $0x50] sm:$0xff]
    %v110 = vld [vmem:[#allocation2 + $0x58] sm:$0xff]
    %v111 = vld [vmem:[#allocation2 + $0x60] sm:$0xff]
    %v112 = vld [vmem:[#allocation2 + $0x68] sm:$0xff]
    %v113 = vpack.c.bf16 %v106, %v99
    %v114 = vpack.c.bf16 %v107, %v100
    %v115 = vpack.c.bf16 %v108, %v101
    %v116 = vpack.c.bf16 %v109, %v102
    %v117 = vpack.c.bf16 %v110, %v103
    %v118 = vpack.c.bf16 %v111, %v104
    %v119 = vpack.c.bf16 %v112, %v105
    %v120 = vld [vmem:[#allocation5] sm:$0xf]
    %v121 = vld [vmem:[#allocation5 + $0x4] sm:$0xf]
    %v122 = vld [vmem:[#allocation5 + $0x8] sm:$0xf]
    %v123 = vld [vmem:[#allocation5 + $0xc] sm:$0xf]
    %v124 = vld [vmem:[#allocation5 + $0x10] sm:$0xf]
    %v125 = vld [vmem:[#allocation5 + $0x14] sm:$0xf]
    %v126 = vld [vmem:[#allocation5 + $0x18] sm:$0xf]
    %v127 = vld [vmem:[#allocation5 + $0x1c] sm:$0xf]
    %v128 = vld [vmem:[#allocation5 + $0x20] sm:$0xf]
    %v129 = vld [vmem:[#allocation5 + $0x24] sm:$0xf]
    %v130 = vld [vmem:[#allocation5 + $0x28] sm:$0xf]
    %v131 = vld [vmem:[#allocation5 + $0x2c] sm:$0xf]
    %v132 = vld [vmem:[#allocation5 + $0x30] sm:$0xf]
    %v133 = vld [vmem:[#allocation5 + $0x34] sm:$0xf]
    %v134 = vld [vmem:[#allocation5 + $0x38] sm:$0xf]
    %v135 = vld [vmem:[#allocation5 + $0x3c] sm:$0xf]
    %v136 = vld [vmem:[#allocation5 + $0x40] sm:$0xf]
    %v137 = vld [vmem:[#allocation5 + $0x44] sm:$0xf]
    %v138 = vld [vmem:[#allocation5 + $0x48] sm:$0xf]
    %v139 = vld [vmem:[#allocation5 + $0x4c] sm:$0xf]
    %v140 = vld [vmem:[#allocation5 + $0x50] sm:$0xf]
    %v141 = vld [vmem:[#allocation5 + $0x54] sm:$0xf]
    %v142 = vld [vmem:[#allocation5 + $0x58] sm:$0xf]
    %v143 = vld [vmem:[#allocation5 + $0x5c] sm:$0xf]
    %v144 = vld [vmem:[#allocation5 + $0x60] sm:$0xf]
    %v145 = vld [vmem:[#allocation5 + $0x64] sm:$0xf]
    %v146 = vld [vmem:[#allocation5 + $0x68] sm:$0xf]
    %v147 = vld [vmem:[#allocation5 + $0x6c] sm:$0xf]
    %v148 = vld [vmem:[#allocation5 + $0x70] sm:$0xf]
    %v149 = vld [vmem:[#allocation5 + $0x74] sm:$0xf]
    %v150 = vld [vmem:[#allocation5 + $0x78] sm:$0xf]
    %v151 = vld [vmem:[#allocation5 + $0x7c] sm:$0xf]
    %v152 = vld [vmem:[#allocation5 + $0x80] sm:$0xf]
    %v153 = vld [vmem:[#allocation5 + $0x84] sm:$0xf]
    %v154 = vld [vmem:[#allocation5 + $0x88] sm:$0xf]
    %v155 = vld [vmem:[#allocation5 + $0x8c] sm:$0xf]
    %v156 = vld [vmem:[#allocation5 + $0x90] sm:$0xf]
    %v157 = vld [vmem:[#allocation5 + $0x94] sm:$0xf]
    %v158 = vld [vmem:[#allocation5 + $0x98] sm:$0xf]
    %v159 = vld [vmem:[#allocation5 + $0x9c] sm:$0xf]
    %v160 = vld [vmem:[#allocation5 + $0xa0] sm:$0xf]
    %v161 = vld [vmem:[#allocation5 + $0xa4] sm:$0xf]
    %v162 = vld [vmem:[#allocation5 + $0xa8] sm:$0xf]
    %v163 = vld [vmem:[#allocation5 + $0xac] sm:$0xf]
    %v164 = vld [vmem:[#allocation5 + $0xb0] sm:$0xf]
    %v165 = vld [vmem:[#allocation5 + $0xb4] sm:$0xf]
    %v166 = vld [vmem:[#allocation5 + $0xb8] sm:$0xf]
    %v167 = vld [vmem:[#allocation5 + $0xbc] sm:$0xf]
    %v168 = vld [vmem:[#allocation5 + $0xc0] sm:$0xf]
    %v169 = vld [vmem:[#allocation5 + $0xc4] sm:$0xf]
    %v170 = vld [vmem:[#allocation5 + $0xc8] sm:$0xf]
    %v171 = vld [vmem:[#allocation5 + $0xcc] sm:$0xf]
    %v172 = vld [vmem:[#allocation5 + $0xd0] sm:$0xf]
    %v173 = vld [vmem:[#allocation5 + $0xd4] sm:$0xf]
    %v174 = vld [vmem:[#allocation5 + $0xd8] sm:$0xf]
    %v175 = vld [vmem:[#allocation5 + $0xdc] sm:$0xf]
    %v176 = vld [vmem:[#allocation5 + $0xe0] sm:$0xf]
    %v177 = vld [vmem:[#allocation5 + $0xe4] sm:$0xf]
    %v178 = vld [vmem:[#allocation5 + $0xe8] sm:$0xf]
    %v179 = vld [vmem:[#allocation5 + $0xec] sm:$0xf]
    %v180 = vld [vmem:[#allocation5 + $0xf0] sm:$0xf]
    %v181 = vld [vmem:[#allocation5 + $0xf4] sm:$0xf]
    %v182 = vld [vmem:[#allocation5 + $0xf8] sm:$0xf]
    %v183 = vld [vmem:[#allocation5 + $0xfc] sm:$0xf]
    %v184 = vld [vmem:[#allocation5 + $0x100] sm:$0xf]
    %v185 = vld [vmem:[#allocation5 + $0x104] sm:$0xf]
    %v186 = vld [vmem:[#allocation5 + $0x108] sm:$0xf]
    %v187 = vld [vmem:[#allocation5 + $0x10c] sm:$0xf]
    %v188 = vld [vmem:[#allocation5 + $0x110] sm:$0xf]
    %v189 = vld [vmem:[#allocation5 + $0x114] sm:$0xf]
    %v190 = vld [vmem:[#allocation5 + $0x118] sm:$0xf]
    %v191 = vld [vmem:[#allocation5 + $0x11c] sm:$0xf]
    %v192 = vld [vmem:[#allocation5 + $0x120] sm:$0xf]
    %v193 = vld [vmem:[#allocation5 + $0x124] sm:$0xf]
    %v194 = vld [vmem:[#allocation5 + $0x128] sm:$0xf]
    %v195 = vld [vmem:[#allocation5 + $0x12c] sm:$0xf]
    %v196 = vld [vmem:[#allocation5 + $0x130] sm:$0xf]
    %v197 = vld [vmem:[#allocation5 + $0x134] sm:$0xf]
    %v198 = vld [vmem:[#allocation5 + $0x138] sm:$0xf]
    %v199 = vld [vmem:[#allocation5 + $0x13c] sm:$0xf]
    %v200 = vld [vmem:[#allocation5 + $0x140] sm:$0xf]
    %v201 = vld [vmem:[#allocation5 + $0x144] sm:$0xf]
    %v202 = vld [vmem:[#allocation5 + $0x148] sm:$0xf]
    %v203 = vld [vmem:[#allocation5 + $0x14c] sm:$0xf]
    %v204 = vld [vmem:[#allocation5 + $0x150] sm:$0xf]
    %v205 = vld [vmem:[#allocation5 + $0x154] sm:$0xf]
    %v206 = vld [vmem:[#allocation5 + $0x158] sm:$0xf]
    %v207 = vld [vmem:[#allocation5 + $0x15c] sm:$0xf]
    %v208 = vld [vmem:[#allocation5 + $0x160] sm:$0xf]
    %v209 = vld [vmem:[#allocation5 + $0x164] sm:$0xf]
    %v210 = vld [vmem:[#allocation5 + $0x168] sm:$0xf]
    %v211 = vld [vmem:[#allocation5 + $0x16c] sm:$0xf]
    %v212 = vld [vmem:[#allocation5 + $0x170] sm:$0xf]
    %v213 = vld [vmem:[#allocation5 + $0x174] sm:$0xf]
    %v214 = vld [vmem:[#allocation5 + $0x178] sm:$0xf]
    %v215 = vld [vmem:[#allocation5 + $0x17c] sm:$0xf]
    %v216 = vld [vmem:[#allocation5 + $0x180] sm:$0xf]
    %v217 = vld [vmem:[#allocation5 + $0x184] sm:$0xf]
    %v218 = vld [vmem:[#allocation5 + $0x188] sm:$0xf]
    %v219 = vld [vmem:[#allocation5 + $0x18c] sm:$0xf]
    %v220 = vld [vmem:[#allocation5 + $0x190] sm:$0xf]
    %v221 = vld [vmem:[#allocation5 + $0x194] sm:$0xf]
    %v222 = vld [vmem:[#allocation5 + $0x198] sm:$0xf]
    %v223 = vld [vmem:[#allocation5 + $0x19c] sm:$0xf]
    %v224 = vld [vmem:[#allocation5 + $0x1a0] sm:$0xf]
    %v225 = vld [vmem:[#allocation5 + $0x1a4] sm:$0xf]
    %v226 = vld [vmem:[#allocation5 + $0x1a8] sm:$0xf]
    %v227 = vld [vmem:[#allocation5 + $0x1ac] sm:$0xf]
    %v228 = vld [vmem:[#allocation5 + $0x1b0] sm:$0xf]
    %v229 = vld [vmem:[#allocation5 + $0x1b4] sm:$0xf]
    %v230 = vld [vmem:[#allocation5 + $0x1b8] sm:$0xf]
    %v231 = vld [vmem:[#allocation5 + $0x1bc] sm:$0xf]
    %v232 = vld [vmem:[%s3] sm:$0x1]
    %v234 = vperm.slane %v232, 0
    %v348 = vunpack.c.l.b16 %v120
    %v349 = vunpack.c.l.b16 %v121
    %v350 = vunpack.c.l.b16 %v122
    %v351 = vunpack.c.l.b16 %v123
    %v352 = vunpack.c.l.b16 %v124
    %v353 = vunpack.c.l.b16 %v125
    %v354 = vunpack.c.l.b16 %v126
    %v355 = vunpack.c.l.b16 %v127
    %v356 = vunpack.c.l.b16 %v128
    %v357 = vunpack.c.l.b16 %v129
    %v358 = vunpack.c.l.b16 %v130
    %v359 = vunpack.c.l.b16 %v131
    %v360 = vunpack.c.l.b16 %v132
    %v361 = vunpack.c.l.b16 %v133
    %v362 = vunpack.c.l.b16 %v134
    %v363 = vunpack.c.l.b16 %v135
    %v364 = vunpack.c.l.b16 %v136
    %v365 = vunpack.c.l.b16 %v137
    %v366 = vunpack.c.l.b16 %v138
    %v367 = vunpack.c.l.b16 %v139
    %v368 = vunpack.c.l.b16 %v140
    %v369 = vunpack.c.l.b16 %v141
    %v370 = vunpack.c.l.b16 %v142
    %v371 = vunpack.c.l.b16 %v143
    %v372 = vunpack.c.l.b16 %v144
    %v373 = vunpack.c.l.b16 %v145
    %v374 = vunpack.c.l.b16 %v146
    %v375 = vunpack.c.l.b16 %v147
    %v376 = vunpack.c.l.b16 %v148
    %v377 = vunpack.c.l.b16 %v149
    %v378 = vunpack.c.l.b16 %v150
    %v379 = vunpack.c.l.b16 %v151
    %v380 = vunpack.c.l.b16 %v152
    %v381 = vunpack.c.l.b16 %v153
    %v382 = vunpack.c.l.b16 %v154
    %v383 = vunpack.c.l.b16 %v155
    %v384 = vunpack.c.l.b16 %v156
    %v385 = vunpack.c.l.b16 %v157
    %v386 = vunpack.c.l.b16 %v158
    %v387 = vunpack.c.l.b16 %v159
    %v388 = vunpack.c.l.b16 %v160
    %v389 = vunpack.c.l.b16 %v161
    %v390 = vunpack.c.l.b16 %v162
    %v391 = vunpack.c.l.b16 %v163
    %v392 = vunpack.c.l.b16 %v164
    %v393 = vunpack.c.l.b16 %v165
    %v394 = vunpack.c.l.b16 %v166
    %v395 = vunpack.c.l.b16 %v167
    %v396 = vunpack.c.l.b16 %v168
    %v397 = vunpack.c.l.b16 %v169
    %v398 = vunpack.c.l.b16 %v170
    %v399 = vunpack.c.l.b16 %v171
    %v400 = vunpack.c.l.b16 %v172
    %v401 = vunpack.c.l.b16 %v173
    %v402 = vunpack.c.l.b16 %v174
    %v403 = vunpack.c.l.b16 %v175
    %v404 = vunpack.c.l.b16 %v176
    %v405 = vunpack.c.l.b16 %v177
    %v406 = vunpack.c.l.b16 %v178
    %v407 = vunpack.c.l.b16 %v179
    %v408 = vunpack.c.l.b16 %v180
    %v409 = vunpack.c.l.b16 %v181
    %v410 = vunpack.c.l.b16 %v182
    %v411 = vunpack.c.l.b16 %v183
    %v412 = vunpack.c.l.b16 %v184
    %v413 = vunpack.c.l.b16 %v185
    %v414 = vunpack.c.l.b16 %v186
    %v415 = vunpack.c.l.b16 %v187
    %v416 = vunpack.c.l.b16 %v188
    %v417 = vunpack.c.l.b16 %v189
    %v418 = vunpack.c.l.b16 %v190
    %v419 = vunpack.c.l.b16 %v191
    %v420 = vunpack.c.l.b16 %v192
    %v421 = vunpack.c.l.b16 %v193
    %v422 = vunpack.c.l.b16 %v194
    %v423 = vunpack.c.l.b16 %v195
    %v424 = vunpack.c.l.b16 %v196
    %v425 = vunpack.c.l.b16 %v197
    %v426 = vunpack.c.l.b16 %v198
    %v427 = vunpack.c.l.b16 %v199
    %v428 = vunpack.c.l.b16 %v200
    %v429 = vunpack.c.l.b16 %v201
    %v430 = vunpack.c.l.b16 %v202
    %v431 = vunpack.c.l.b16 %v203
    %v432 = vunpack.c.l.b16 %v204
    %v433 = vunpack.c.l.b16 %v205
    %v434 = vunpack.c.l.b16 %v206
    %v435 = vunpack.c.l.b16 %v207
    %v436 = vunpack.c.l.b16 %v208
    %v437 = vunpack.c.l.b16 %v209
    %v438 = vunpack.c.l.b16 %v210
    %v439 = vunpack.c.l.b16 %v211
    %v440 = vunpack.c.l.b16 %v212
    %v441 = vunpack.c.l.b16 %v213
    %v442 = vunpack.c.l.b16 %v214
    %v443 = vunpack.c.l.b16 %v215
    %v444 = vunpack.c.l.b16 %v216
    %v445 = vunpack.c.l.b16 %v217
    %v446 = vunpack.c.l.b16 %v218
    %v447 = vunpack.c.l.b16 %v219
    %v448 = vunpack.c.l.b16 %v220
    %v449 = vunpack.c.l.b16 %v221
    %v450 = vunpack.c.l.b16 %v222
    %v451 = vunpack.c.l.b16 %v223
    %v452 = vunpack.c.l.b16 %v224
    %v453 = vunpack.c.l.b16 %v225
    %v454 = vunpack.c.l.b16 %v226
    %v455 = vunpack.c.l.b16 %v227
    %v456 = vunpack.c.l.b16 %v228
    %v457 = vunpack.c.l.b16 %v229
    %v458 = vunpack.c.l.b16 %v230
    %v459 = vunpack.c.l.b16 %v231
    %v460 = vpack.c.b16 %v349, %v348
    %v461 = vpack.c.b16 %v351, %v350
    %v462 = vpack.c.b16 %v353, %v352
    %v463 = vpack.c.b16 %v355, %v354
    %v464 = vpack.c.b16 %v357, %v356
    %v465 = vpack.c.b16 %v359, %v358
    %v466 = vpack.c.b16 %v361, %v360
    %v467 = vpack.c.b16 %v363, %v362
    %v468 = vpack.c.b16 %v365, %v364
    %v469 = vpack.c.b16 %v367, %v366
    %v470 = vpack.c.b16 %v369, %v368
    %v471 = vpack.c.b16 %v371, %v370
    %v472 = vpack.c.b16 %v373, %v372
    %v473 = vpack.c.b16 %v375, %v374
    %v474 = vpack.c.b16 %v377, %v376
    %v475 = vpack.c.b16 %v379, %v378
    %v476 = vpack.c.b16 %v381, %v380
    %v477 = vpack.c.b16 %v383, %v382
    %v478 = vpack.c.b16 %v385, %v384
    %v479 = vpack.c.b16 %v387, %v386
    %v480 = vpack.c.b16 %v389, %v388
    %v481 = vpack.c.b16 %v391, %v390
    %v482 = vpack.c.b16 %v393, %v392
    %v483 = vpack.c.b16 %v395, %v394
    %v484 = vpack.c.b16 %v397, %v396
    %v485 = vpack.c.b16 %v399, %v398
    %v486 = vpack.c.b16 %v401, %v400
    %v487 = vpack.c.b16 %v403, %v402
    %v488 = vpack.c.b16 %v405, %v404
    %v489 = vpack.c.b16 %v407, %v406
    %v490 = vpack.c.b16 %v409, %v408
    %v491 = vpack.c.b16 %v411, %v410
    %v492 = vpack.c.b16 %v413, %v412
    %v493 = vpack.c.b16 %v415, %v414
    %v494 = vpack.c.b16 %v417, %v416
    %v495 = vpack.c.b16 %v419, %v418
    %v496 = vpack.c.b16 %v421, %v420
    %v497 = vpack.c.b16 %v423, %v422
    %v498 = vpack.c.b16 %v425, %v424
    %v499 = vpack.c.b16 %v427, %v426
    %v500 = vpack.c.b16 %v429, %v428
    %v501 = vpack.c.b16 %v431, %v430
    %v502 = vpack.c.b16 %v433, %v432
    %v503 = vpack.c.b16 %v435, %v434
    %v504 = vpack.c.b16 %v437, %v436
    %v505 = vpack.c.b16 %v439, %v438
    %v506 = vpack.c.b16 %v441, %v440
    %v507 = vpack.c.b16 %v443, %v442
    %v508 = vpack.c.b16 %v445, %v444
    %v509 = vpack.c.b16 %v447, %v446
    %v510 = vpack.c.b16 %v449, %v448
    %v511 = vpack.c.b16 %v451, %v450
    %v512 = vpack.c.b16 %v453, %v452
    %v513 = vpack.c.b16 %v455, %v454
    %v514 = vpack.c.b16 %v457, %v456
    %v515 = vpack.c.b16 %v459, %v458
    %572 = vmatpush.bf16.msra.mxu0 %v467
    %573 = vmatpush.bf16.msra.mxu0 %v466
    %574 = vmatpush.bf16.msra.mxu0 %v465
    %575 = vmatpush.bf16.msra.mxu0 %v464
    %576 = vmatpush.bf16.msra.mxu0 %v463
    %577 = vmatpush.bf16.msra.mxu0 %v462
    %578 = vmatpush.bf16.msra.mxu0 %v461
    %579 = vmatpush.bf16.msra.mxu0 %v460
    %580 = vmatmul.bf16.gmra.mxu0 %v113
    %v581 = vpop.f32.mrf.mxu0
    %v582 = vadd.f32 %v234, %v581
    %v583 = vpop.f32.mrf.mxu0
    %v584 = vadd.f32 %v234, %v583
    %585 = vdwg.mxu0
    %586 = vmatpush.bf16.msra.mxu0 %v475
    %587 = vmatpush.bf16.msra.mxu0 %v474
    %588 = vmatpush.bf16.msra.mxu0 %v473
    %589 = vmatpush.bf16.msra.mxu0 %v472
    %590 = vmatpush.bf16.msra.mxu0 %v471
    %591 = vmatpush.bf16.msra.mxu0 %v470
    %592 = vmatpush.bf16.msra.mxu0 %v469
    %593 = vmatpush.bf16.msra.mxu0 %v468
    %594 = vmatmul.bf16.gmra.mxu0 %v114
    %v595 = vpop.f32.mrf.mxu0
    %v596 = vadd.f32 %v582, %v595
    %v597 = vpop.f32.mrf.mxu0
    %v598 = vadd.f32 %v584, %v597
    %599 = vdwg.mxu0
    %600 = vmatpush.bf16.msra.mxu0 %v483
    %601 = vmatpush.bf16.msra.mxu0 %v482
    %602 = vmatpush.bf16.msra.mxu0 %v481
    %603 = vmatpush.bf16.msra.mxu0 %v480
    %604 = vmatpush.bf16.msra.mxu0 %v479
    %605 = vmatpush.bf16.msra.mxu0 %v478
    %606 = vmatpush.bf16.msra.mxu0 %v477
    %607 = vmatpush.bf16.msra.mxu0 %v476
    %608 = vmatmul.bf16.gmra.mxu0 %v115
    %v609 = vpop.f32.mrf.mxu0
    %v610 = vadd.f32 %v596, %v609
    %v611 = vpop.f32.mrf.mxu0
    %v612 = vadd.f32 %v598, %v611
    %613 = vdwg.mxu0
    %614 = vmatpush.bf16.msra.mxu0 %v491
    %615 = vmatpush.bf16.msra.mxu0 %v490
    %616 = vmatpush.bf16.msra.mxu0 %v489
    %617 = vmatpush.bf16.msra.mxu0 %v488
    %618 = vmatpush.bf16.msra.mxu0 %v487
    %619 = vmatpush.bf16.msra.mxu0 %v486
    %620 = vmatpush.bf16.msra.mxu0 %v485
    %621 = vmatpush.bf16.msra.mxu0 %v484
    %622 = vmatmul.bf16.gmra.mxu0 %v116
    %v623 = vpop.f32.mrf.mxu0
    %v624 = vadd.f32 %v610, %v623
    %v625 = vpop.f32.mrf.mxu0
    %v626 = vadd.f32 %v612, %v625
    %627 = vdwg.mxu0
    %628 = vmatpush.bf16.msra.mxu0 %v499
    %629 = vmatpush.bf16.msra.mxu0 %v498
    %630 = vmatpush.bf16.msra.mxu0 %v497
    %631 = vmatpush.bf16.msra.mxu0 %v496
    %632 = vmatpush.bf16.msra.mxu0 %v495
    %633 = vmatpush.bf16.msra.mxu0 %v494
    %634 = vmatpush.bf16.msra.mxu0 %v493
    %635 = vmatpush.bf16.msra.mxu0 %v492
    %636 = vmatmul.bf16.gmra.mxu0 %v117
    %v637 = vpop.f32.mrf.mxu0
    %v638 = vadd.f32 %v624, %v637
    %v639 = vpop.f32.mrf.mxu0
    %v640 = vadd.f32 %v626, %v639
    %641 = vdwg.mxu0
    %642 = vmatpush.bf16.msra.mxu0 %v507
    %643 = vmatpush.bf16.msra.mxu0 %v506
    %644 = vmatpush.bf16.msra.mxu0 %v505
    %645 = vmatpush.bf16.msra.mxu0 %v504
    %646 = vmatpush.bf16.msra.mxu0 %v503
    %647 = vmatpush.bf16.msra.mxu0 %v502
    %648 = vmatpush.bf16.msra.mxu0 %v501
    %649 = vmatpush.bf16.msra.mxu0 %v500
    %650 = vmatmul.bf16.gmra.mxu0 %v118
    %v651 = vpop.f32.mrf.mxu0
    %v652 = vadd.f32 %v638, %v651
    %v653 = vpop.f32.mrf.mxu0
    %v654 = vadd.f32 %v640, %v653
    %655 = vdwg.mxu0
    %656 = vmatpush.bf16.msra.mxu0 %v515
    %657 = vmatpush.bf16.msra.mxu0 %v514
    %658 = vmatpush.bf16.msra.mxu0 %v513
    %659 = vmatpush.bf16.msra.mxu0 %v512
    %660 = vmatpush.bf16.msra.mxu0 %v511
    %661 = vmatpush.bf16.msra.mxu0 %v510
    %662 = vmatpush.bf16.msra.mxu0 %v509
    %663 = vmatpush.bf16.msra.mxu0 %v508
    %664 = vmatmul.bf16.gmra.mxu0 %v119
    %v665 = vpop.f32.mrf.mxu0
    %v666 = vadd.f32 %v652, %v665
    %v667 = vpop.f32.mrf.mxu0
    %v668 = vadd.f32 %v654, %v667
    %669 = vdwg.mxu0
    %v670 = vmax.f32 %v666, 0.0
    %v671 = vmax.f32 %v668, 0.0
    %v672 = vpack.c.bf16 %v671, %v670
    %v673 = vld [vmem:[%s4] sm:$0xf]
    %v674 = vld [vmem:[%s4 + $0x4] sm:$0xf]
    %v675 = vld [vmem:[%s4 + $0x8] sm:$0xf]
    %v676 = vld [vmem:[%s4 + $0xc] sm:$0xf]
    %v677 = vld [vmem:[%s4 + $0x10] sm:$0xf]
    %v678 = vld [vmem:[%s4 + $0x14] sm:$0xf]
    %v679 = vld [vmem:[%s4 + $0x18] sm:$0xf]
    %v680 = vld [vmem:[%s4 + $0x1c] sm:$0xf]
    %v681 = vld [vmem:[%s4 + $0x20] sm:$0xf]
    %v682 = vld [vmem:[%s4 + $0x24] sm:$0xf]
    %v683 = vld [vmem:[%s4 + $0x28] sm:$0xf]
    %v684 = vld [vmem:[%s4 + $0x2c] sm:$0xf]
    %v685 = vld [vmem:[%s4 + $0x30] sm:$0xf]
    %v686 = vld [vmem:[%s4 + $0x34] sm:$0xf]
    %v687 = vld [vmem:[%s4 + $0x38] sm:$0xf]
    %v688 = vld [vmem:[%s4 + $0x3c] sm:$0xf]
    %v689 = vld [vmem:[%s5] sm:$0x1]
    %v691 = vperm.slane %v689, 0
    %v709 = vunpack.c.l.b16 %v673
    %v710 = vunpack.c.l.b16 %v674
    %v711 = vunpack.c.l.b16 %v675
    %v712 = vunpack.c.l.b16 %v676
    %v713 = vunpack.c.l.b16 %v677
    %v714 = vunpack.c.l.b16 %v678
    %v715 = vunpack.c.l.b16 %v679
    %v716 = vunpack.c.l.b16 %v680
    %v717 = vunpack.c.l.b16 %v681
    %v718 = vunpack.c.l.b16 %v682
    %v719 = vunpack.c.l.b16 %v683
    %v720 = vunpack.c.l.b16 %v684
    %v721 = vunpack.c.l.b16 %v685
    %v722 = vunpack.c.l.b16 %v686
    %v723 = vunpack.c.l.b16 %v687
    %v724 = vunpack.c.l.b16 %v688
    %v725 = vpack.c.b16 %v710, %v709
    %v726 = vpack.c.b16 %v712, %v711
    %v727 = vpack.c.b16 %v714, %v713
    %v728 = vpack.c.b16 %v716, %v715
    %v729 = vpack.c.b16 %v718, %v717
    %v730 = vpack.c.b16 %v720, %v719
    %v731 = vpack.c.b16 %v722, %v721
    %v732 = vpack.c.b16 %v724, %v723
    %741 = vmatpush.bf16.msra.mxu0 %v732
    %742 = vmatpush.bf16.msra.mxu0 %v731
    %743 = vmatpush.bf16.msra.mxu0 %v730
    %744 = vmatpush.bf16.msra.mxu0 %v729
    %745 = vmatpush.bf16.msra.mxu0 %v728
    %746 = vmatpush.bf16.msra.mxu0 %v727
    %747 = vmatpush.bf16.msra.mxu0 %v726
    %748 = vmatpush.bf16.msra.mxu0 %v725
    %749 = vmatmul.bf16.gmra.mxu0 %v672
    %v750 = vpop.f32.mrf.mxu0
    %v751 = vadd.f32 %v691, %v750
    %v752 = vpop.f32.mrf.mxu0
    %v753 = vadd.f32 %v691, %v752
    %754 = vdwg.mxu0
    %v755 = vmax.f32 %v751, 0.0
    %v756 = vmax.f32 %v753, 0.0
    %v757 = vpack.c.bf16 %v756, %v755
    %v758 = vld [vmem:[%s6] sm:$0xf]
    %v759 = vld [vmem:[%s6 + $0x4] sm:$0xf]
    %v760 = vld [vmem:[%s6 + $0x8] sm:$0xf]
    %v761 = vld [vmem:[%s6 + $0xc] sm:$0xf]
    %v762 = vld [vmem:[%s6 + $0x10] sm:$0xf]
    %v763 = vld [vmem:[%s6 + $0x14] sm:$0xf]
    %v764 = vld [vmem:[%s6 + $0x18] sm:$0xf]
    %v765 = vld [vmem:[%s6 + $0x1c] sm:$0xf]
    %v766 = vld [vmem:[%s7] sm:$0x1]
    %v768 = vperm.slane %v766, 0
    %v778 = vunpack.c.l.b16 %v758
    %v779 = vunpack.c.l.b16 %v759
    %v780 = vunpack.c.l.b16 %v760
    %v781 = vunpack.c.l.b16 %v761
    %v782 = vunpack.c.l.b16 %v762
    %v783 = vunpack.c.l.b16 %v763
    %v784 = vunpack.c.l.b16 %v764
    %v785 = vunpack.c.l.b16 %v765
    %v786 = vpack.c.b16 %v779, %v778
    %v787 = vpack.c.b16 %v781, %v780
    %v788 = vpack.c.b16 %v783, %v782
    %v789 = vpack.c.b16 %v785, %v784
    %vm794 = vcmask 523264
    %v796 = vsel %vm794, %v757, 0
    %798 = vmatpush.bf16.msra.mxu0 0
    %799 = vmatpush.bf16.msra.mxu0 0
    %800 = vmatpush.bf16.msra.mxu0 0
    %801 = vmatpush.bf16.msra.mxu0 0
    %802 = vmatpush.bf16.msra.mxu0 %v789
    %803 = vmatpush.bf16.msra.mxu0 %v788
    %804 = vmatpush.bf16.msra.mxu0 %v787
    %805 = vmatpush.bf16.msra.mxu0 %v786
    %806 = vmatmul.bf16.gmra.mxu0 %v796
    %v807 = vpop.f32.mrf.mxu0
    %v808 = vadd.f32 %v768, %v807
    %v809 = vpop.f32.mrf.mxu0
    %v810 = vadd.f32 %v768, %v809
    %811 = vdwg.mxu0
    %v812 = vld [vmem:[%s1] sm:$0xff]
    %v813 = vld [vmem:[%s1 + $0x8] sm:$0xff]
    %v814 = vmul.f32 %v808, 0.5
    %v815 = vmul.f32 %v810, 0.5
    %v816 = vmul.f32 %v814, 1.442695
    %v817 = vpow.pop %v816
    %v818 = vmul.f32 %v815, 1.442695
    %v819 = vpow.pop %v818
    %822 = vrot.lane.b32.xlu0 %v817, 112
    %v823 = vpop.permute.xlu0 %822
    %824 = vrot.lane.b32.xlu0 %v819, 112
    %v825 = vpop.permute.xlu0 %824
    %v828 = vmul.f32 %v812, %v823
    %v829 = vmul.f32 %v813, %v825
    %v830 = vadd.f32 %v828, %v808
    %v831 = vadd.f32 %v829, %v810
    %v832 = vpack.c.bf16 %v831, %v830
    %v833 = vld [vmem:[%s8] sm:$0xf]
    %v834 = vld [vmem:[%s8 + $0x4] sm:$0xf]
    %v835 = vld [vmem:[%s9] sm:$0x1]
    %v837 = vperm.slane %v835, 0
    %v841 = vunpack.c.l.b16 %v833
    %v842 = vunpack.c.l.b16 %v834
    %v843 = vpack.c.b16 %v842, %v841
    %vm845 = vcmask 130048
    %v847 = vsel %vm845, %v832, 0
    %849 = vmatpush.bf16.msra.mxu0 0
    %850 = vmatpush.bf16.msra.mxu0 0
    %851 = vmatpush.bf16.msra.mxu0 0
    %852 = vmatpush.bf16.msra.mxu0 0
    %853 = vmatpush.bf16.msra.mxu0 0
    %854 = vmatpush.bf16.msra.mxu0 0
    %855 = vmatpush.bf16.msra.mxu0 0
    %856 = vmatpush.bf16.msra.mxu0 %v843
    %857 = vmatmul.bf16.gmra.mxu0 %v847
    %v858 = vpop.f32.mrf.mxu0
    %v859 = vadd.f32 %v837, %v858
    %v860 = vpop.f32.mrf.mxu0
    %v861 = vadd.f32 %v837, %v860
    %862 = vdwg.mxu0
    %v863 = vmax.f32 %v859, 0.0
    %v864 = vmax.f32 %v861, 0.0
    %v865 = vpack.c.bf16 %v864, %v863
    %v866 = vld [vmem:[%s10] sm:$0xf]
    %v867 = vld [vmem:[%s10 + $0x4] sm:$0xf]
    %v868 = vld [vmem:[%s10 + $0x8] sm:$0xf]
    %v869 = vld [vmem:[%s10 + $0xc] sm:$0xf]
    %v870 = vld [vmem:[%s10 + $0x10] sm:$0xf]
    %v871 = vld [vmem:[%s10 + $0x14] sm:$0xf]
    %v872 = vld [vmem:[%s10 + $0x18] sm:$0xf]
    %v873 = vld [vmem:[%s10 + $0x1c] sm:$0xf]
    %v874 = vld [vmem:[%s11] sm:$0x1]
    %v876 = vperm.slane %v874, 0
    %v886 = vunpack.c.l.b16 %v866
    %v887 = vunpack.c.l.b16 %v867
    %v888 = vunpack.c.l.b16 %v868
    %v889 = vunpack.c.l.b16 %v869
    %v890 = vunpack.c.l.b16 %v870
    %v891 = vunpack.c.l.b16 %v871
    %v892 = vunpack.c.l.b16 %v872
    %v893 = vunpack.c.l.b16 %v873
    %v894 = vpack.c.b16 %v887, %v886
    %v895 = vpack.c.b16 %v889, %v888
    %v896 = vpack.c.b16 %v891, %v890
    %v897 = vpack.c.b16 %v893, %v892
    %v903 = vsel %vm794, %v865, 0
    %905 = vmatpush.bf16.msra.mxu0 0
    %906 = vmatpush.bf16.msra.mxu0 0
    %907 = vmatpush.bf16.msra.mxu0 0
    %908 = vmatpush.bf16.msra.mxu0 0
    %909 = vmatpush.bf16.msra.mxu0 %v897
    %910 = vmatpush.bf16.msra.mxu0 %v896
    %911 = vmatpush.bf16.msra.mxu0 %v895
    %912 = vmatpush.bf16.msra.mxu0 %v894
    %913 = vmatmul.bf16.gmra.mxu0 %v903
    %v914 = vpop.f32.mrf.mxu0
    %v915 = vadd.f32 %v876, %v914
    %v916 = vpop.f32.mrf.mxu0
    %v917 = vadd.f32 %v876, %v916
    %918 = vdwg.mxu0
    %v919 = vmax.f32 %v915, 0.0
    %v920 = vmax.f32 %v917, 0.0
    %v921 = vpack.c.bf16 %v920, %v919
    %v922 = vld [vmem:[#allocation7] sm:$0xff]
    %v923 = vld [vmem:[#allocation7 + $0x8] sm:$0xff]
    %v924 = vld [vmem:[#allocation7 + $0x10] sm:$0xff]
    %v925 = vld [vmem:[#allocation7 + $0x18] sm:$0xf]
    %v926 = vld [vmem:[#allocation7 + $0x1c] sm:$0xff]
    %v927 = vld [vmem:[#allocation7 + $0x24] sm:$0xff]
    %v928 = vld [vmem:[#allocation7 + $0x2c] sm:$0xff]
    %v929 = vld [vmem:[#allocation7 + $0x34] sm:$0xf]
    %v930 = vld [vmem:[#allocation7 + $0x38] sm:$0xff]
    %v931 = vld [vmem:[#allocation7 + $0x40] sm:$0xff]
    %v932 = vld [vmem:[#allocation7 + $0x48] sm:$0xff]
    %v933 = vld [vmem:[#allocation7 + $0x50] sm:$0xf]
    %v934 = vld [vmem:[#allocation7 + $0x54] sm:$0xff]
    %v935 = vld [vmem:[#allocation7 + $0x5c] sm:$0xff]
    %v936 = vld [vmem:[#allocation7 + $0x64] sm:$0xff]
    %v937 = vld [vmem:[#allocation7 + $0x6c] sm:$0xf]
    %v938 = vld [vmem:[#allocation7 + $0x70] sm:$0xff]
    %v939 = vld [vmem:[#allocation7 + $0x78] sm:$0xff]
    %v940 = vld [vmem:[#allocation7 + $0x80] sm:$0xff]
    %v941 = vld [vmem:[#allocation7 + $0x88] sm:$0xf]
    %v942 = vld [vmem:[#allocation7 + $0x8c] sm:$0xff]
    %v943 = vld [vmem:[#allocation7 + $0x94] sm:$0xff]
    %v944 = vld [vmem:[#allocation7 + $0x9c] sm:$0xff]
    %v945 = vld [vmem:[#allocation7 + $0xa4] sm:$0xf]
    %v946 = vld [vmem:[#allocation7 + $0xa8] sm:$0xff]
    %v947 = vld [vmem:[#allocation7 + $0xb0] sm:$0xff]
    %v948 = vld [vmem:[#allocation7 + $0xb8] sm:$0xff]
    %v949 = vld [vmem:[#allocation7 + $0xc0] sm:$0xf]
    %v950 = vld [vmem:[#allocation7 + $0xc4] sm:$0xff]
    %v951 = vld [vmem:[#allocation7 + $0xcc] sm:$0xff]
    %v952 = vld [vmem:[#allocation7 + $0xd4] sm:$0xff]
    %v953 = vld [vmem:[#allocation7 + $0xdc] sm:$0xf]
    %v954 = vld [vmem:[#allocation7 + $0xe0] sm:$0xff]
    %v955 = vld [vmem:[#allocation7 + $0xe8] sm:$0xff]
    %v956 = vld [vmem:[#allocation7 + $0xf0] sm:$0xff]
    %v957 = vld [vmem:[#allocation7 + $0xf8] sm:$0xf]
    %v958 = vld [vmem:[#allocation7 + $0xfc] sm:$0xff]
    %v959 = vld [vmem:[#allocation7 + $0x104] sm:$0xff]
    %v960 = vld [vmem:[#allocation7 + $0x10c] sm:$0xff]
    %v961 = vld [vmem:[#allocation7 + $0x114] sm:$0xf]
    %v962 = vld [vmem:[#allocation7 + $0x118] sm:$0xff]
    %v963 = vld [vmem:[#allocation7 + $0x120] sm:$0xff]
    %v964 = vld [vmem:[#allocation7 + $0x128] sm:$0xff]
    %v965 = vld [vmem:[#allocation7 + $0x130] sm:$0xf]
    %v966 = vld [vmem:[#allocation7 + $0x134] sm:$0xff]
    %v967 = vld [vmem:[#allocation7 + $0x13c] sm:$0xff]
    %v968 = vld [vmem:[#allocation7 + $0x144] sm:$0xff]
    %v969 = vld [vmem:[#allocation7 + $0x14c] sm:$0xf]
    %v970 = vld [vmem:[#allocation7 + $0x150] sm:$0xff]
    %v971 = vld [vmem:[#allocation7 + $0x158] sm:$0xff]
    %v972 = vld [vmem:[#allocation7 + $0x160] sm:$0xff]
    %v973 = vld [vmem:[#allocation7 + $0x168] sm:$0xf]
    %v974 = vld [vmem:[#allocation7 + $0x16c] sm:$0xff]
    %v975 = vld [vmem:[#allocation7 + $0x174] sm:$0xff]
    %v976 = vld [vmem:[#allocation7 + $0x17c] sm:$0xff]
    %v977 = vld [vmem:[#allocation7 + $0x184] sm:$0xf]
    %v978 = vld [vmem:[#allocation7 + $0x188] sm:$0xff]
    %v979 = vld [vmem:[#allocation7 + $0x190] sm:$0xff]
    %v980 = vld [vmem:[#allocation7 + $0x198] sm:$0xff]
    %v981 = vld [vmem:[#allocation7 + $0x1a0] sm:$0xf]
    %v982 = vld [vmem:[#allocation7 + $0x1a4] sm:$0xff]
    %v983 = vld [vmem:[#allocation7 + $0x1ac] sm:$0xff]
    %v984 = vld [vmem:[#allocation7 + $0x1b4] sm:$0xff]
    %v985 = vld [vmem:[#allocation7 + $0x1bc] sm:$0xf]
    %v986 = vld [vmem:[%s13] sm:$0xff]
    %v988 = vperm.slane %v986, 0
    %v989 = vperm.slane %v986, 1
    %v990 = vperm.slane %v986, 2
    %v991 = vperm.slane %v986, 3
    %v992 = vperm.slane %v986, 4
    %v993 = vperm.slane %v986, 5
    %v994 = vperm.slane %v986, 6
    %v1066 = vunpack.c.l.b16 %v922
    %v1067 = vunpack.c.h.b16 %v922
    %v1068 = vunpack.c.l.b16 %v923
    %v1069 = vunpack.c.h.b16 %v923
    %v1070 = vunpack.c.l.b16 %v924
    %v1071 = vunpack.c.h.b16 %v924
    %v1072 = vunpack.c.l.b16 %v925
    %v1073 = vunpack.c.l.b16 %v926
    %v1074 = vunpack.c.h.b16 %v926
    %v1075 = vunpack.c.l.b16 %v927
    %v1076 = vunpack.c.h.b16 %v927
    %v1077 = vunpack.c.l.b16 %v928
    %v1078 = vunpack.c.h.b16 %v928
    %v1079 = vunpack.c.l.b16 %v929
    %v1080 = vunpack.c.l.b16 %v930
    %v1081 = vunpack.c.h.b16 %v930
    %v1082 = vunpack.c.l.b16 %v931
    %v1083 = vunpack.c.h.b16 %v931
    %v1084 = vunpack.c.l.b16 %v932
    %v1085 = vunpack.c.h.b16 %v932
    %v1086 = vunpack.c.l.b16 %v933
    %v1087 = vunpack.c.l.b16 %v934
    %v1088 = vunpack.c.h.b16 %v934
    %v1089 = vunpack.c.l.b16 %v935
    %v1090 = vunpack.c.h.b16 %v935
    %v1091 = vunpack.c.l.b16 %v936
    %v1092 = vunpack.c.h.b16 %v936
    %v1093 = vunpack.c.l.b16 %v937
    %v1094 = vunpack.c.l.b16 %v938
    %v1095 = vunpack.c.h.b16 %v938
    %v1096 = vunpack.c.l.b16 %v939
    %v1097 = vunpack.c.h.b16 %v939
    %v1098 = vunpack.c.l.b16 %v940
    %v1099 = vunpack.c.h.b16 %v940
    %v1100 = vunpack.c.l.b16 %v941
    %v1101 = vunpack.c.l.b16 %v942
    %v1102 = vunpack.c.h.b16 %v942
    %v1103 = vunpack.c.l.b16 %v943
    %v1104 = vunpack.c.h.b16 %v943
    %v1105 = vunpack.c.l.b16 %v944
    %v1106 = vunpack.c.h.b16 %v944
    %v1107 = vunpack.c.l.b16 %v945
    %v1108 = vunpack.c.l.b16 %v946
    %v1109 = vunpack.c.h.b16 %v946
    %v1110 = vunpack.c.l.b16 %v947
    %v1111 = vunpack.c.h.b16 %v947
    %v1112 = vunpack.c.l.b16 %v948
    %v1113 = vunpack.c.h.b16 %v948
    %v1114 = vunpack.c.l.b16 %v949
    %v1115 = vunpack.c.l.b16 %v950
    %v1116 = vunpack.c.h.b16 %v950
    %v1117 = vunpack.c.l.b16 %v951
    %v1118 = vunpack.c.h.b16 %v951
    %v1119 = vunpack.c.l.b16 %v952
    %v1120 = vunpack.c.h.b16 %v952
    %v1121 = vunpack.c.l.b16 %v953
    %v1122 = vunpack.c.l.b16 %v954
    %v1123 = vunpack.c.h.b16 %v954
    %v1124 = vunpack.c.l.b16 %v955
    %v1125 = vunpack.c.h.b16 %v955
    %v1126 = vunpack.c.l.b16 %v956
    %v1127 = vunpack.c.h.b16 %v956
    %v1128 = vunpack.c.l.b16 %v957
    %v1129 = vunpack.c.l.b16 %v958
    %v1130 = vunpack.c.h.b16 %v958
    %v1131 = vunpack.c.l.b16 %v959
    %v1132 = vunpack.c.h.b16 %v959
    %v1133 = vunpack.c.l.b16 %v960
    %v1134 = vunpack.c.h.b16 %v960
    %v1135 = vunpack.c.l.b16 %v961
    %v1136 = vunpack.c.l.b16 %v962
    %v1137 = vunpack.c.h.b16 %v962
    %v1138 = vunpack.c.l.b16 %v963
    %v1139 = vunpack.c.h.b16 %v963
    %v1140 = vunpack.c.l.b16 %v964
    %v1141 = vunpack.c.h.b16 %v964
    %v1142 = vunpack.c.l.b16 %v965
    %v1143 = vunpack.c.l.b16 %v966
    %v1144 = vunpack.c.h.b16 %v966
    %v1145 = vunpack.c.l.b16 %v967
    %v1146 = vunpack.c.h.b16 %v967
    %v1147 = vunpack.c.l.b16 %v968
    %v1148 = vunpack.c.h.b16 %v968
    %v1149 = vunpack.c.l.b16 %v969
    %v1150 = vunpack.c.l.b16 %v970
    %v1151 = vunpack.c.h.b16 %v970
    %v1152 = vunpack.c.l.b16 %v971
    %v1153 = vunpack.c.h.b16 %v971
    %v1154 = vunpack.c.l.b16 %v972
    %v1155 = vunpack.c.h.b16 %v972
    %v1156 = vunpack.c.l.b16 %v973
    %v1157 = vunpack.c.l.b16 %v974
    %v1158 = vunpack.c.h.b16 %v974
    %v1159 = vunpack.c.l.b16 %v975
    %v1160 = vunpack.c.h.b16 %v975
    %v1161 = vunpack.c.l.b16 %v976
    %v1162 = vunpack.c.h.b16 %v976
    %v1163 = vunpack.c.l.b16 %v977
    %v1164 = vunpack.c.l.b16 %v978
    %v1165 = vunpack.c.h.b16 %v978
    %v1166 = vunpack.c.l.b16 %v979
    %v1167 = vunpack.c.h.b16 %v979
    %v1168 = vunpack.c.l.b16 %v980
    %v1169 = vunpack.c.h.b16 %v980
    %v1170 = vunpack.c.l.b16 %v981
    %v1171 = vunpack.c.l.b16 %v982
    %v1172 = vunpack.c.h.b16 %v982
    %v1173 = vunpack.c.l.b16 %v983
    %v1174 = vunpack.c.h.b16 %v983
    %v1175 = vunpack.c.l.b16 %v984
    %v1176 = vunpack.c.h.b16 %v984
    %v1177 = vunpack.c.l.b16 %v985
    %v1178 = vpack.c.b16 %v1073, %v1066
    %v1179 = vpack.c.b16 %v1074, %v1067
    %v1180 = vpack.c.b16 %v1075, %v1068
    %v1181 = vpack.c.b16 %v1076, %v1069
    %v1182 = vpack.c.b16 %v1077, %v1070
    %v1183 = vpack.c.b16 %v1078, %v1071
    %v1184 = vpack.c.b16 %v1079, %v1072
    %v1185 = vpack.c.b16 %v1087, %v1080
    %v1186 = vpack.c.b16 %v1088, %v1081
    %v1187 = vpack.c.b16 %v1089, %v1082
    %v1188 = vpack.c.b16 %v1090, %v1083
    %v1189 = vpack.c.b16 %v1091, %v1084
    %v1190 = vpack.c.b16 %v1092, %v1085
    %v1191 = vpack.c.b16 %v1093, %v1086
    %v1192 = vpack.c.b16 %v1101, %v1094
    %v1193 = vpack.c.b16 %v1102, %v1095
    %v1194 = vpack.c.b16 %v1103, %v1096
    %v1195 = vpack.c.b16 %v1104, %v1097
    %v1196 = vpack.c.b16 %v1105, %v1098
    %v1197 = vpack.c.b16 %v1106, %v1099
    %v1198 = vpack.c.b16 %v1107, %v1100
    %v1199 = vpack.c.b16 %v1115, %v1108
    %v1200 = vpack.c.b16 %v1116, %v1109
    %v1201 = vpack.c.b16 %v1117, %v1110
    %v1202 = vpack.c.b16 %v1118, %v1111
    %v1203 = vpack.c.b16 %v1119, %v1112
    %v1204 = vpack.c.b16 %v1120, %v1113
    %v1205 = vpack.c.b16 %v1121, %v1114
    %v1206 = vpack.c.b16 %v1129, %v1122
    %v1207 = vpack.c.b16 %v1130, %v1123
    %v1208 = vpack.c.b16 %v1131, %v1124
    %v1209 = vpack.c.b16 %v1132, %v1125
    %v1210 = vpack.c.b16 %v1133, %v1126
    %v1211 = vpack.c.b16 %v1134, %v1127
    %v1212 = vpack.c.b16 %v1135, %v1128
    %v1213 = vpack.c.b16 %v1143, %v1136
    %v1214 = vpack.c.b16 %v1144, %v1137
    %v1215 = vpack.c.b16 %v1145, %v1138
    %v1216 = vpack.c.b16 %v1146, %v1139
    %v1217 = vpack.c.b16 %v1147, %v1140
    %v1218 = vpack.c.b16 %v1148, %v1141
    %v1219 = vpack.c.b16 %v1149, %v1142
    %v1220 = vpack.c.b16 %v1157, %v1150
    %v1221 = vpack.c.b16 %v1158, %v1151
    %v1222 = vpack.c.b16 %v1159, %v1152
    %v1223 = vpack.c.b16 %v1160, %v1153
    %v1224 = vpack.c.b16 %v1161, %v1154
    %v1225 = vpack.c.b16 %v1162, %v1155
    %v1226 = vpack.c.b16 %v1163, %v1156
    %v1227 = vpack.c.b16 %v1171, %v1164
    %v1228 = vpack.c.b16 %v1172, %v1165
    %v1229 = vpack.c.b16 %v1173, %v1166
    %v1230 = vpack.c.b16 %v1174, %v1167
    %v1231 = vpack.c.b16 %v1175, %v1168
    %v1232 = vpack.c.b16 %v1176, %v1169
    %v1233 = vpack.c.b16 %v1177, %v1170
    %1290 = vmatpush.bf16.msra.mxu0 %v1227
    %1291 = vmatpush.bf16.msra.mxu0 %v1220
    %1292 = vmatpush.bf16.msra.mxu0 %v1213
    %1293 = vmatpush.bf16.msra.mxu0 %v1206
    %1294 = vmatpush.bf16.msra.mxu0 %v1199
    %1295 = vmatpush.bf16.msra.mxu0 %v1192
    %1296 = vmatpush.bf16.msra.mxu0 %v1185
    %1297 = vmatpush.bf16.msra.mxu0 %v1178
    %1298 = vmatmul.bf16.gmra.mxu0 %v921
    %v1299 = vpop.f32.mrf.mxu0
    %v1300 = vadd.f32 %v988, %v1299
    %v1301 = vpop.f32.mrf.mxu0
    %v1302 = vadd.f32 %v988, %v1301
    %1303 = vdwg.mxu0
    %1304 = vmatpush.bf16.msra.mxu0 %v1228
    %1305 = vmatpush.bf16.msra.mxu0 %v1221
    %1306 = vmatpush.bf16.msra.mxu0 %v1214
    %1307 = vmatpush.bf16.msra.mxu0 %v1207
    %1308 = vmatpush.bf16.msra.mxu0 %v1200
    %1309 = vmatpush.bf16.msra.mxu0 %v1193
    %1310 = vmatpush.bf16.msra.mxu0 %v1186
    %1311 = vmatpush.bf16.msra.mxu0 %v1179
    %1312 = vmatmul.bf16.gmra.mxu0 %v921
    %v1313 = vpop.f32.mrf.mxu0
    %v1314 = vadd.f32 %v989, %v1313
    %v1315 = vpop.f32.mrf.mxu0
    %v1316 = vadd.f32 %v989, %v1315
    %1317 = vdwg.mxu0
    %1318 = vmatpush.bf16.msra.mxu0 %v1229
    %1319 = vmatpush.bf16.msra.mxu0 %v1222
    %1320 = vmatpush.bf16.msra.mxu0 %v1215
    %1321 = vmatpush.bf16.msra.mxu0 %v1208
    %1322 = vmatpush.bf16.msra.mxu0 %v1201
    %1323 = vmatpush.bf16.msra.mxu0 %v1194
    %1324 = vmatpush.bf16.msra.mxu0 %v1187
    %1325 = vmatpush.bf16.msra.mxu0 %v1180
    %1326 = vmatmul.bf16.gmra.mxu0 %v921
    %v1327 = vpop.f32.mrf.mxu0
    %v1328 = vadd.f32 %v990, %v1327
    %v1329 = vpop.f32.mrf.mxu0
    %v1330 = vadd.f32 %v990, %v1329
    %1331 = vdwg.mxu0
    %1332 = vmatpush.bf16.msra.mxu0 %v1230
    %1333 = vmatpush.bf16.msra.mxu0 %v1223
    %1334 = vmatpush.bf16.msra.mxu0 %v1216
    %1335 = vmatpush.bf16.msra.mxu0 %v1209
    %1336 = vmatpush.bf16.msra.mxu0 %v1202
    %1337 = vmatpush.bf16.msra.mxu0 %v1195
    %1338 = vmatpush.bf16.msra.mxu0 %v1188
    %1339 = vmatpush.bf16.msra.mxu0 %v1181
    %1340 = vmatmul.bf16.gmra.mxu0 %v921
    %v1341 = vpop.f32.mrf.mxu0
    %v1342 = vadd.f32 %v991, %v1341
    %v1343 = vpop.f32.mrf.mxu0
    %v1344 = vadd.f32 %v991, %v1343
    %1345 = vdwg.mxu0
    %1346 = vmatpush.bf16.msra.mxu0 %v1231
    %1347 = vmatpush.bf16.msra.mxu0 %v1224
    %1348 = vmatpush.bf16.msra.mxu0 %v1217
    %1349 = vmatpush.bf16.msra.mxu0 %v1210
    %1350 = vmatpush.bf16.msra.mxu0 %v1203
    %1351 = vmatpush.bf16.msra.mxu0 %v1196
    %1352 = vmatpush.bf16.msra.mxu0 %v1189
    %1353 = vmatpush.bf16.msra.mxu0 %v1182
    %1354 = vmatmul.bf16.gmra.mxu0 %v921
    %v1355 = vpop.f32.mrf.mxu0
    %v1356 = vadd.f32 %v992, %v1355
    %v1357 = vpop.f32.mrf.mxu0
    %v1358 = vadd.f32 %v992, %v1357
    %1359 = vdwg.mxu0
    %1360 = vmatpush.bf16.msra.mxu0 %v1232
    %1361 = vmatpush.bf16.msra.mxu0 %v1225
    %1362 = vmatpush.bf16.msra.mxu0 %v1218
    %1363 = vmatpush.bf16.msra.mxu0 %v1211
    %1364 = vmatpush.bf16.msra.mxu0 %v1204
    %1365 = vmatpush.bf16.msra.mxu0 %v1197
    %1366 = vmatpush.bf16.msra.mxu0 %v1190
    %1367 = vmatpush.bf16.msra.mxu0 %v1183
    %1368 = vmatmul.bf16.gmra.mxu0 %v921
    %v1369 = vpop.f32.mrf.mxu0
    %v1370 = vadd.f32 %v993, %v1369
    %v1371 = vpop.f32.mrf.mxu0
    %v1372 = vadd.f32 %v993, %v1371
    %1373 = vdwg.mxu0
    %1374 = vmatpush.bf16.msra.mxu0 %v1233
    %1375 = vmatpush.bf16.msra.mxu0 %v1226
    %1376 = vmatpush.bf16.msra.mxu0 %v1219
    %1377 = vmatpush.bf16.msra.mxu0 %v1212
    %1378 = vmatpush.bf16.msra.mxu0 %v1205
    %1379 = vmatpush.bf16.msra.mxu0 %v1198
    %1380 = vmatpush.bf16.msra.mxu0 %v1191
    %1381 = vmatpush.bf16.msra.mxu0 %v1184
    %1382 = vmatmul.bf16.gmra.mxu0 %v921
    %v1383 = vpop.f32.mrf.mxu0
    %v1384 = vadd.f32 %v994, %v1383
    %v1385 = vpop.f32.mrf.mxu0
    %v1386 = vadd.f32 %v994, %v1385
    %1387 = vdwg.mxu0
    %v1388 = vxor.u32 %v1300, 2147483648
    %v1389 = vxor.u32 %v1314, 2147483648
    %v1390 = vxor.u32 %v1328, 2147483648
    %v1391 = vxor.u32 %v1342, 2147483648
    %v1392 = vxor.u32 %v1356, 2147483648
    %v1393 = vxor.u32 %v1370, 2147483648
    %v1394 = vxor.u32 %v1384, 2147483648
    %v1395 = vxor.u32 %v1302, 2147483648
    %v1396 = vxor.u32 %v1316, 2147483648
    %v1397 = vxor.u32 %v1330, 2147483648
    %v1398 = vxor.u32 %v1344, 2147483648
    %v1399 = vxor.u32 %v1358, 2147483648
    %v1400 = vxor.u32 %v1372, 2147483648
    %v1401 = vxor.u32 %v1386, 2147483648
    %v1402 = vmul.f32 %v1388, 1.442695
    %v1403 = vpow.pop %v1402
    %v1404 = vmul.f32 %v1389, 1.442695
    %v1405 = vpow.pop %v1404
    %v1406 = vmul.f32 %v1390, 1.442695
    %v1407 = vpow.pop %v1406
    %v1408 = vmul.f32 %v1391, 1.442695
    %v1409 = vpow.pop %v1408
    %v1410 = vmul.f32 %v1392, 1.442695
    %v1411 = vpow.pop %v1410
    %v1412 = vmul.f32 %v1393, 1.442695
    %v1413 = vpow.pop %v1412
    %v1414 = vmul.f32 %v1394, 1.442695
    %v1415 = vpow.pop %v1414
    %v1416 = vmul.f32 %v1395, 1.442695
    %v1417 = vpow.pop %v1416
    %v1418 = vmul.f32 %v1396, 1.442695
    %v1419 = vpow.pop %v1418
    %v1420 = vmul.f32 %v1397, 1.442695
    %v1421 = vpow.pop %v1420
    %v1422 = vmul.f32 %v1398, 1.442695
    %v1423 = vpow.pop %v1422
    %v1424 = vmul.f32 %v1399, 1.442695
    %v1425 = vpow.pop %v1424
    %v1426 = vmul.f32 %v1400, 1.442695
    %v1427 = vpow.pop %v1426
    %v1428 = vmul.f32 %v1401, 1.442695
    %v1429 = vpow.pop %v1428
    %v1430 = vadd.f32 %v1403, 1.0
    %v1431 = vadd.f32 %v1405, 1.0
    %v1432 = vadd.f32 %v1407, 1.0
    %v1433 = vadd.f32 %v1409, 1.0
    %v1434 = vadd.f32 %v1411, 1.0
    %v1435 = vadd.f32 %v1413, 1.0
    %v1436 = vadd.f32 %v1415, 1.0
    %v1437 = vadd.f32 %v1417, 1.0
    %v1438 = vadd.f32 %v1419, 1.0
    %v1439 = vadd.f32 %v1421, 1.0
    %v1440 = vadd.f32 %v1423, 1.0
    %v1441 = vadd.f32 %v1425, 1.0
    %v1442 = vadd.f32 %v1427, 1.0
    %v1443 = vadd.f32 %v1429, 1.0
    %v1444 = vrcp.pop %v1430
    %v1445 = vmul.f32 %v1430, %v1444
    %v1446 = vsub.f32 1.0, %v1445
    %v1447 = vmul.f32 %v1444, %v1446
    %v1448 = vadd.f32 %v1444, %v1447
    %vm1449 = vweird.f32 %v1430
    %vm1450 = vweird.f32 %v1444
    %vm1451 = vmor %vm1449, %vm1450
    %v1452 = vsel %vm1451, %v1444, %v1448
    %v1453 = vand.u32 2147483647, %v1430
    %vm1454 = vcmp.eq.f32.partialorder %v1453, 8.507059e+37
    %v1455 = vand.u32 %v1430, 2147483648
    %v1456 = vor.u32 1.1754944e-38, %v1455
    %v1457 = vsel %vm1454, %v1456, %v1452
    %v1458 = vmul.f32 1.0, %v1457
    %v1459 = vrcp.pop %v1431
    %v1460 = vmul.f32 %v1431, %v1459
    %v1461 = vsub.f32 1.0, %v1460
    %v1462 = vmul.f32 %v1459, %v1461
    %v1463 = vadd.f32 %v1459, %v1462
    %vm1464 = vweird.f32 %v1431
    %vm1465 = vweird.f32 %v1459
    %vm1466 = vmor %vm1464, %vm1465
    %v1467 = vsel %vm1466, %v1459, %v1463
    %v1468 = vand.u32 2147483647, %v1431
    %vm1469 = vcmp.eq.f32.partialorder %v1468, 8.507059e+37
    %v1470 = vand.u32 %v1431, 2147483648
    %v1471 = vor.u32 1.1754944e-38, %v1470
    %v1472 = vsel %vm1469, %v1471, %v1467
    %v1473 = vmul.f32 1.0, %v1472
    %v1474 = vrcp.pop %v1432
    %v1475 = vmul.f32 %v1432, %v1474
    %v1476 = vsub.f32 1.0, %v1475
    %v1477 = vmul.f32 %v1474, %v1476
    %v1478 = vadd.f32 %v1474, %v1477
    %vm1479 = vweird.f32 %v1432
    %vm1480 = vweird.f32 %v1474
    %vm1481 = vmor %vm1479, %vm1480
    %v1482 = vsel %vm1481, %v1474, %v1478
    %v1483 = vand.u32 2147483647, %v1432
    %vm1484 = vcmp.eq.f32.partialorder %v1483, 8.507059e+37
    %v1485 = vand.u32 %v1432, 2147483648
    %v1486 = vor.u32 1.1754944e-38, %v1485
    %v1487 = vsel %vm1484, %v1486, %v1482
    %v1488 = vmul.f32 1.0, %v1487
    %v1489 = vrcp.pop %v1433
    %v1490 = vmul.f32 %v1433, %v1489
    %v1491 = vsub.f32 1.0, %v1490
    %v1492 = vmul.f32 %v1489, %v1491
    %v1493 = vadd.f32 %v1489, %v1492
    %vm1494 = vweird.f32 %v1433
    %vm1495 = vweird.f32 %v1489
    %vm1496 = vmor %vm1494, %vm1495
    %v1497 = vsel %vm1496, %v1489, %v1493
    %v1498 = vand.u32 2147483647, %v1433
    %vm1499 = vcmp.eq.f32.partialorder %v1498, 8.507059e+37
    %v1500 = vand.u32 %v1433, 2147483648
    %v1501 = vor.u32 1.1754944e-38, %v1500
    %v1502 = vsel %vm1499, %v1501, %v1497
    %v1503 = vmul.f32 1.0, %v1502
    %v1504 = vrcp.pop %v1434
    %v1505 = vmul.f32 %v1434, %v1504
    %v1506 = vsub.f32 1.0, %v1505
    %v1507 = vmul.f32 %v1504, %v1506
    %v1508 = vadd.f32 %v1504, %v1507
    %vm1509 = vweird.f32 %v1434
    %vm1510 = vweird.f32 %v1504
    %vm1511 = vmor %vm1509, %vm1510
    %v1512 = vsel %vm1511, %v1504, %v1508
    %v1513 = vand.u32 2147483647, %v1434
    %vm1514 = vcmp.eq.f32.partialorder %v1513, 8.507059e+37
    %v1515 = vand.u32 %v1434, 2147483648
    %v1516 = vor.u32 1.1754944e-38, %v1515
    %v1517 = vsel %vm1514, %v1516, %v1512
    %v1518 = vmul.f32 1.0, %v1517
    %v1519 = vrcp.pop %v1435
    %v1520 = vmul.f32 %v1435, %v1519
    %v1521 = vsub.f32 1.0, %v1520
    %v1522 = vmul.f32 %v1519, %v1521
    %v1523 = vadd.f32 %v1519, %v1522
    %vm1524 = vweird.f32 %v1435
    %vm1525 = vweird.f32 %v1519
    %vm1526 = vmor %vm1524, %vm1525
    %v1527 = vsel %vm1526, %v1519, %v1523
    %v1528 = vand.u32 2147483647, %v1435
    %vm1529 = vcmp.eq.f32.partialorder %v1528, 8.507059e+37
    %v1530 = vand.u32 %v1435, 2147483648
    %v1531 = vor.u32 1.1754944e-38, %v1530
    %v1532 = vsel %vm1529, %v1531, %v1527
    %v1533 = vmul.f32 1.0, %v1532
    %v1534 = vrcp.pop %v1436
    %v1535 = vmul.f32 %v1436, %v1534
    %v1536 = vsub.f32 1.0, %v1535
    %v1537 = vmul.f32 %v1534, %v1536
    %v1538 = vadd.f32 %v1534, %v1537
    %vm1539 = vweird.f32 %v1436
    %vm1540 = vweird.f32 %v1534
    %vm1541 = vmor %vm1539, %vm1540
    %v1542 = vsel %vm1541, %v1534, %v1538
    %v1543 = vand.u32 2147483647, %v1436
    %vm1544 = vcmp.eq.f32.partialorder %v1543, 8.507059e+37
    %v1545 = vand.u32 %v1436, 2147483648
    %v1546 = vor.u32 1.1754944e-38, %v1545
    %v1547 = vsel %vm1544, %v1546, %v1542
    %v1548 = vmul.f32 1.0, %v1547
    %v1549 = vrcp.pop %v1437
    %v1550 = vmul.f32 %v1437, %v1549
    %v1551 = vsub.f32 1.0, %v1550
    %v1552 = vmul.f32 %v1549, %v1551
    %v1553 = vadd.f32 %v1549, %v1552
    %vm1554 = vweird.f32 %v1437
    %vm1555 = vweird.f32 %v1549
    %vm1556 = vmor %vm1554, %vm1555
    %v1557 = vsel %vm1556, %v1549, %v1553
    %v1558 = vand.u32 2147483647, %v1437
    %vm1559 = vcmp.eq.f32.partialorder %v1558, 8.507059e+37
    %v1560 = vand.u32 %v1437, 2147483648
    %v1561 = vor.u32 1.1754944e-38, %v1560
    %v1562 = vsel %vm1559, %v1561, %v1557
    %v1563 = vmul.f32 1.0, %v1562
    %v1564 = vrcp.pop %v1438
    %v1565 = vmul.f32 %v1438, %v1564
    %v1566 = vsub.f32 1.0, %v1565
    %v1567 = vmul.f32 %v1564, %v1566
    %v1568 = vadd.f32 %v1564, %v1567
    %vm1569 = vweird.f32 %v1438
    %vm1570 = vweird.f32 %v1564
    %vm1571 = vmor %vm1569, %vm1570
    %v1572 = vsel %vm1571, %v1564, %v1568
    %v1573 = vand.u32 2147483647, %v1438
    %vm1574 = vcmp.eq.f32.partialorder %v1573, 8.507059e+37
    %v1575 = vand.u32 %v1438, 2147483648
    %v1576 = vor.u32 1.1754944e-38, %v1575
    %v1577 = vsel %vm1574, %v1576, %v1572
    %v1578 = vmul.f32 1.0, %v1577
    %v1579 = vrcp.pop %v1439
    %v1580 = vmul.f32 %v1439, %v1579
    %v1581 = vsub.f32 1.0, %v1580
    %v1582 = vmul.f32 %v1579, %v1581
    %v1583 = vadd.f32 %v1579, %v1582
    %vm1584 = vweird.f32 %v1439
    %vm1585 = vweird.f32 %v1579
    %vm1586 = vmor %vm1584, %vm1585
    %v1587 = vsel %vm1586, %v1579, %v1583
    %v1588 = vand.u32 2147483647, %v1439
    %vm1589 = vcmp.eq.f32.partialorder %v1588, 8.507059e+37
    %v1590 = vand.u32 %v1439, 2147483648
    %v1591 = vor.u32 1.1754944e-38, %v1590
    %v1592 = vsel %vm1589, %v1591, %v1587
    %v1593 = vmul.f32 1.0, %v1592
    %v1594 = vrcp.pop %v1440
    %v1595 = vmul.f32 %v1440, %v1594
    %v1596 = vsub.f32 1.0, %v1595
    %v1597 = vmul.f32 %v1594, %v1596
    %v1598 = vadd.f32 %v1594, %v1597
    %vm1599 = vweird.f32 %v1440
    %vm1600 = vweird.f32 %v1594
    %vm1601 = vmor %vm1599, %vm1600
    %v1602 = vsel %vm1601, %v1594, %v1598
    %v1603 = vand.u32 2147483647, %v1440
    %vm1604 = vcmp.eq.f32.partialorder %v1603, 8.507059e+37
    %v1605 = vand.u32 %v1440, 2147483648
    %v1606 = vor.u32 1.1754944e-38, %v1605
    %v1607 = vsel %vm1604, %v1606, %v1602
    %v1608 = vmul.f32 1.0, %v1607
    %v1609 = vrcp.pop %v1441
    %v1610 = vmul.f32 %v1441, %v1609
    %v1611 = vsub.f32 1.0, %v1610
    %v1612 = vmul.f32 %v1609, %v1611
    %v1613 = vadd.f32 %v1609, %v1612
    %vm1614 = vweird.f32 %v1441
    %vm1615 = vweird.f32 %v1609
    %vm1616 = vmor %vm1614, %vm1615
    %v1617 = vsel %vm1616, %v1609, %v1613
    %v1618 = vand.u32 2147483647, %v1441
    %vm1619 = vcmp.eq.f32.partialorder %v1618, 8.507059e+37
    %v1620 = vand.u32 %v1441, 2147483648
    %v1621 = vor.u32 1.1754944e-38, %v1620
    %v1622 = vsel %vm1619, %v1621, %v1617
    %v1623 = vmul.f32 1.0, %v1622
    %v1624 = vrcp.pop %v1442
    %v1625 = vmul.f32 %v1442, %v1624
    %v1626 = vsub.f32 1.0, %v1625
    %v1627 = vmul.f32 %v1624, %v1626
    %v1628 = vadd.f32 %v1624, %v1627
    %vm1629 = vweird.f32 %v1442
    %vm1630 = vweird.f32 %v1624
    %vm1631 = vmor %vm1629, %vm1630
    %v1632 = vsel %vm1631, %v1624, %v1628
    %v1633 = vand.u32 2147483647, %v1442
    %vm1634 = vcmp.eq.f32.partialorder %v1633, 8.507059e+37
    %v1635 = vand.u32 %v1442, 2147483648
    %v1636 = vor.u32 1.1754944e-38, %v1635
    %v1637 = vsel %vm1634, %v1636, %v1632
    %v1638 = vmul.f32 1.0, %v1637
    %v1639 = vrcp.pop %v1443
    %v1640 = vmul.f32 %v1443, %v1639
    %v1641 = vsub.f32 1.0, %v1640
    %v1642 = vmul.f32 %v1639, %v1641
    %v1643 = vadd.f32 %v1639, %v1642
    %vm1644 = vweird.f32 %v1443
    %vm1645 = vweird.f32 %v1639
    %vm1646 = vmor %vm1644, %vm1645
    %v1647 = vsel %vm1646, %v1639, %v1643
    %v1648 = vand.u32 2147483647, %v1443
    %vm1649 = vcmp.eq.f32.partialorder %v1648, 8.507059e+37
    %v1650 = vand.u32 %v1443, 2147483648
    %v1651 = vor.u32 1.1754944e-38, %v1650
    %v1652 = vsel %vm1649, %v1651, %v1647
    %v1653 = vmul.f32 1.0, %v1652
    %1654 = vst [vmem:[#allocation8] sm:$0xff] %v1458
    %1655 = vst [vmem:[#allocation8 + $0x8] sm:$0xff] %v1473
    %1656 = vst [vmem:[#allocation8 + $0x10] sm:$0xff] %v1488
    %1657 = vst [vmem:[#allocation8 + $0x18] sm:$0xff] %v1503
    %1658 = vst [vmem:[#allocation8 + $0x20] sm:$0xff] %v1518
    %1659 = vst [vmem:[#allocation8 + $0x28] sm:$0xff] %v1533
    %1660 = vst [vmem:[#allocation8 + $0x30] sm:$0xff] %v1548
    %1661 = vst [vmem:[#allocation8 + $0x38] sm:$0xff] %v1563
    %1662 = vst [vmem:[#allocation8 + $0x40] sm:$0xff] %v1578
    %1663 = vst [vmem:[#allocation8 + $0x48] sm:$0xff] %v1593
    %1664 = vst [vmem:[#allocation8 + $0x50] sm:$0xff] %v1608
    %1665 = vst [vmem:[#allocation8 + $0x58] sm:$0xff] %v1623
    %1666 = vst [vmem:[#allocation8 + $0x60] sm:$0xff] %v1638
    %1667 = vst [vmem:[#allocation8 + $0x68] sm:$0xff] %v1653
    %1668 = vst [vmem:[#allocation9] sm:$0xff] %v808
    %1669 = vst [vmem:[#allocation9 + $0x8] sm:$0xff] %v810
    // Predicated region
    $region70: #{tpu_custom_call.1} parent=1 // pred_check
      _
    $region71: #{tpu_custom_call.1} parent=1 // pred_check_branch
      %1671 = sbr.rel (0) target = $region73
    $region72: #{tpu_custom_call.1} parent=1 // pred_region
      %1673 = vsyncadd [#allocation4], 0
      %s1674 = sshll.u32 [#allocation8], 4
      %s1675 = int_to_ptr.vmem [resolvable:$true] %s1674
      %s1676 = sshll.u32 %s14, 4
      %s1677 = int_to_ptr.hbm [resolvable:$true] %s1676
      %1682 = dma.vmem_to_hbm [thread:$0]  %s1675, 1792, %s1677, [#allocation4], 896, 896, 56
    $region73: #{tpu_custom_call.1} parent=1 // pred_fallthru
      _
    // Predicated region
    $region74: #{tpu_custom_call.1} parent=1 // pred_check
      _
    $region75: #{tpu_custom_call.1} parent=1 // pred_check_branch
      %1684 = sbr.rel (0) target = $region77
    $region76: #{tpu_custom_call.1} parent=1 // pred_region
      %1686 = vsyncadd [#allocation10], 0
      %s1687 = sshll.u32 [#allocation9], 4
      %s1688 = int_to_ptr.vmem [resolvable:$true] %s1687
      %s1689 = sshll.u32 %s15, 4
      %s1690 = int_to_ptr.hbm [resolvable:$true] %s1689
      %1695 = dma.vmem_to_hbm [thread:$0]  %s1688, 256, %s1690, [#allocation10], 128, 128, 8
    $region77: #{tpu_custom_call.1} parent=1 // pred_fallthru
      _
    // Predicated region
    $region78: #{tpu_custom_call.1} parent=1 // pred_check
      _
    $region79: #{tpu_custom_call.1} parent=1 // pred_check_branch
      %1697 = sbr.rel (0) target = $region81
    $region80: #{tpu_custom_call.1} parent=1 // pred_region
      %1699 = dma.done [#allocation4], 1792
    $region81: #{tpu_custom_call.1} parent=1 // pred_fallthru
      _
    // Predicated region
    $region82: #{tpu_custom_call.1} parent=1 // pred_check
      _
    $region83: #{tpu_custom_call.1} parent=1 // pred_check_branch
      %1701 = sbr.rel (0) target = $region85
    $region84: #{tpu_custom_call.1} parent=1 // pred_region
      %1703 = dma.done [#allocation10], 256
    $region85: #{tpu_custom_call.1} parent=1 // pred_fallthru
      _
    %1704 = vsyncpa [#allocation3], 1
    %1705 = vsyncpa [#allocation6], 1
    %1706 = vsyncpa [#allocation4], 1
    %1707 = vsyncpa [#allocation10], 1

// kernel: tpu_custom_call.1
$region0: #{tpu_custom_call.1}
  #allocation0 [shape = 'u32[]', space=smem, size = 0x4, offset = 0x4, fixed_abs, tag = 'smem constant byte address 0x4 - core index']
  #allocation1 [shape = 'u32[72,128]{1,0:T(1,128)}', space=vmem, size = 0x9000, scoped, tag = 'internal scratch']
  %s0 = inlined_call_operand.hbm [shape: f32[16,896], index: 0, kind: input, shape index: {}]
  %s1 = inlined_call_operand.vmem [shape: f32[16,16], index: 1, kind: input, shape index: {}]
  %s2 = inlined_call_operand.hbm [shape: bf16[896,128], index: 2, kind: input, shape index: {}]
  %s3 = inlined_call_operand.vmem [shape: f32[1,128], index: 3, kind: input, shape index: {}]
  %s4 = inlined_call_operand.vmem [shape: bf16[128,64], index: 4, kind: input, shape index: {}]
  %s5 = inlined_call_operand.vmem [shape: f32[1,64], index: 5, kind: input, shape index: {}]
  %s6 = inlined_call_operand.vmem [shape: bf16[64,128], index: 6, kind: input, shape index: {}]
  %s7 = inlined_call_operand.vmem [shape: f32[1,128], index: 7, kind: input, shape index: {}]
  %s8 = inlined_call_operand.vmem [shape: bf16[16,64], index: 8, kind: input, shape index: {}]
  %s9 = inlined_call_operand.vmem [shape: f32[1,64], index: 9, kind: input, shape index: {}]
  %s10 = inlined_call_operand.vmem [shape: bf16[64,128], index: 10, kind: input, shape index: {}]
  %s11 = inlined_call_operand.vmem [shape: f32[1,128], index: 11, kind: input, shape index: {}]
  %s12 = inlined_call_operand.hbm [shape: bf16[128,896], index: 12, kind: input, shape index: {}]
  %s13 = inlined_call_operand.vmem [shape: f32[1,896], index: 13, kind: input, shape index: {}]
  %s14 = inlined_call_operand.hbm [shape: f32[16,896], index: 14, kind: output, shape index: {0}]
  %s15 = inlined_call_operand.hbm [shape: f32[16,128], index: 15, kind: output, shape index: {1}]
  %16 = xla_tuple %s14, %s15
  %s17 = sld [smem:[#allocation0]]
  $region86: #{tpu_custom_call.1} parent=0
    _
  %s19 = ssub.s32 1, %s17
  %s20 = scalar_select 0, %s19, %s17
  $region1: #{tpu_custom_call.1} parent=0
    #allocation2 [shape = 'u8[57344]{0}', space=vmem, size = 0xe000, scoped, tag = 'input window, operand 0, single buffered']
    #allocation3 [shape = 's32[1]{0}', space=sflag, size = 0x4, scoped, tag = 'scoped memory for tpu_custom_call.1']
    #allocation4 [shape = 's32[1]{0}', space=sflag, size = 0x4, scoped, tag = 'scoped memory for tpu_custom_call.1']
    #allocation5 [shape = 'u8[229376]{0}', space=vmem, size = 0x38000, scoped, tag = 'input window, operand 2, single buffered']
    #allocation6 [shape = 's32[1]{0}', space=sflag, size = 0x4, scoped, tag = 'scoped memory for tpu_custom_call.1']
    #allocation7 [shape = 'u8[229376]{0}', space=vmem, size = 0x38000, scoped, tag = 'input window, operand 12, single buffered']
    #allocation8 [shape = 'u8[57344]{0}', space=vmem, size = 0xe000, scoped, tag = 'output window, operand 0, single buffered']
    #allocation9 [shape = 'u8[8192]{0}', space=vmem, size = 0x2000, scoped, tag = 'output window, operand 1, single buffered']
    #allocation10 [shape = 's32[1]{0}', space=sflag, size = 0x4, scoped, tag = 'scoped memory for tpu_custom_call.1']
    %21 = vsyncpa [#allocation3], 0
    %22 = vsyncpa [#allocation6], 0
    %23 = vsyncpa [#allocation4], 0
    %24 = vsyncpa [#allocation10], 0
    // Predicated region
    $region2: #{tpu_custom_call.1} parent=1 // pred_check
      _
    $region3: #{tpu_custom_call.1} parent=1 // pred_check_branch
      %26 = sbr.rel (0) target = $region5
    $region4: #{tpu_custom_call.1} parent=1 // pred_region
      %28 = vsyncadd [#allocation3], 0
      %s29 = sshll.u32 %s0, 4
      %s30 = int_to_ptr.hbm [resolvable:$true] %s29
      %s31 = sshll.u32 [#allocation2], 4
      %s32 = int_to_ptr.vmem [resolvable:$true] %s31
      %37 = dma.hbm_to_vmem [thread:$0]  %s30, 1792, %s32, [#allocation3], 896, 896, 56
    $region5: #{tpu_custom_call.1} parent=1 // pred_fallthru
      _
    // Predicated region
    $region6: #{tpu_custom_call.1} parent=1 // pred_check
      _
    $region7: #{tpu_custom_call.1} parent=1 // pred_check_branch
      %39 = sbr.rel (0) target = $region9
    $region8: #{tpu_custom_call.1} parent=1 // pred_region
      _
    $region9: #{tpu_custom_call.1} parent=1 // pred_fallthru
      _
    // Predicated region
    $region10: #{tpu_custom_call.1} parent=1 // pred_check
      _
    $region11: #{tpu_custom_call.1} parent=1 // pred_check_branch
      %41 = sbr.rel (0) target = $region13
    $region12: #{tpu_custom_call.1} parent=1 // pred_region
      %43 = vsyncadd [#allocation6], 0
      %s44 = sshll.u32 %s2, 4
      %s45 = int_to_ptr.hbm [resolvable:$true] %s44
      %s46 = sshll.u32 [#allocation5], 4
      %s47 = int_to_ptr.vmem [resolvable:$true] %s46
      %52 = dma.hbm_to_vmem [thread:$0]  %s45, 7168, %s47, [#allocation6], 64, 64, 4
    $region13: #{tpu_custom_call.1} parent=1 // pred_fallthru
      _
    // Predicated region
    $region14: #{tpu_custom_call.1} parent=1 // pred_check
      _
    $region15: #{tpu_custom_call.1} parent=1 // pred_check_branch
      %54 = sbr.rel (0) target = $region17
    $region16: #{tpu_custom_call.1} parent=1 // pred_region
      _
    $region17: #{tpu_custom_call.1} parent=1 // pred_fallthru
      _
    // Predicated region
    $region18: #{tpu_custom_call.1} parent=1 // pred_check
      _
    $region19: #{tpu_custom_call.1} parent=1 // pred_check_branch
      %56 = sbr.rel (0) target = $region21
    $region20: #{tpu_custom_call.1} parent=1 // pred_region
      _
    $region21: #{tpu_custom_call.1} parent=1 // pred_fallthru
      _
    // Predicated region
    $region22: #{tpu_custom_call.1} parent=1 // pred_check
      _
    $region23: #{tpu_custom_call.1} parent=1 // pred_check_branch
      %58 = sbr.rel (0) target = $region25
    $region24: #{tpu_custom_call.1} parent=1 // pred_region
      _
    $region25: #{tpu_custom_call.1} parent=1 // pred_fallthru
      _
    // Predicated region
    $region26: #{tpu_custom_call.1} parent=1 // pred_check
      _
    $region27: #{tpu_custom_call.1} parent=1 // pred_check_branch
      %60 = sbr.rel (0) target = $region29
    $region28: #{tpu_custom_call.1} parent=1 // pred_region
      _
    $region29: #{tpu_custom_call.1} parent=1 // pred_fallthru
      _
    // Predicated region
    $region30: #{tpu_custom_call.1} parent=1 // pred_check
      _
    $region31: #{tpu_custom_call.1} parent=1 // pred_check_branch
      %62 = sbr.rel (0) target = $region33
    $region32: #{tpu_custom_call.1} parent=1 // pred_region
      _
    $region33: #{tpu_custom_call.1} parent=1 // pred_fallthru
      _
    // Predicated region
    $region34: #{tpu_custom_call.1} parent=1 // pred_check
      _
    $region35: #{tpu_custom_call.1} parent=1 // pred_check_branch
      %64 = sbr.rel (0) target = $region37
    $region36: #{tpu_custom_call.1} parent=1 // pred_region
      _
    $region37: #{tpu_custom_call.1} parent=1 // pred_fallthru
      _
    // Predicated region
    $region38: #{tpu_custom_call.1} parent=1 // pred_check
      _
    $region39: #{tpu_custom_call.1} parent=1 // pred_check_branch
      %66 = sbr.rel (0) target = $region41
    $region40: #{tpu_custom_call.1} parent=1 // pred_region
      _
    $region41: #{tpu_custom_call.1} parent=1 // pred_fallthru
      _
    // Predicated region
    $region42: #{tpu_custom_call.1} parent=1 // pred_check
      _
    $region43: #{tpu_custom_call.1} parent=1 // pred_check_branch
      %68 = sbr.rel (0) target = $region45
    $region44: #{tpu_custom_call.1} parent=1 // pred_region
      _
    $region45: #{tpu_custom_call.1} parent=1 // pred_fallthru
      _
    // Predicated region
    $region46: #{tpu_custom_call.1} parent=1 // pred_check
      _
    $region47: #{tpu_custom_call.1} parent=1 // pred_check_branch
      %70 = sbr.rel (0) target = $region49
    $region48: #{tpu_custom_call.1} parent=1 // pred_region
      _
    $region49: #{tpu_custom_call.1} parent=1 // pred_fallthru
      _
    // Predicated region
    $region50: #{tpu_custom_call.1} parent=1 // pred_check
      _
    $region51: #{tpu_custom_call.1} parent=1 // pred_check_branch
      %72 = sbr.rel (0) target = $region53
    $region52: #{tpu_custom_call.1} parent=1 // pred_region
      %74 = vsyncadd [#allocation6], 0
      %s75 = sshll.u32 %s12, 4
      %s76 = int_to_ptr.hbm [resolvable:$true] %s75
      %s77 = sshll.u32 [#allocation7], 4
      %s78 = int_to_ptr.vmem [resolvable:$true] %s77
      %83 = dma.hbm_to_vmem [thread:$0]  %s76, 7168, %s78, [#allocation6], 448, 448, 28
    $region53: #{tpu_custom_call.1} parent=1 // pred_fallthru
      _
    // Predicated region
    $region54: #{tpu_custom_call.1} parent=1 // pred_check
      _
    $region55: #{tpu_custom_call.1} parent=1 // pred_check_branch
      %85 = sbr.rel (0) target = $region57
    $region56: #{tpu_custom_call.1} parent=1 // pred_region
      _
    $region57: #{tpu_custom_call.1} parent=1 // pred_fallthru
      _
    // Predicated region
    $region58: #{tpu_custom_call.1} parent=1 // pred_check
      _
    $region59: #{tpu_custom_call.1} parent=1 // pred_check_branch
      %87 = sbr.rel (0) target = $region61
    $region60: #{tpu_custom_call.1} parent=1 // pred_region
      %89 = dma.done [#allocation3], 1792
    $region61: #{tpu_custom_call.1} parent=1 // pred_fallthru
      _
    // Predicated region
    $region62: #{tpu_custom_call.1} parent=1 // pred_check
      _
    $region63: #{tpu_custom_call.1} parent=1 // pred_check_branch
      %91 = sbr.rel (0) target = $region65
    $region64: #{tpu_custom_call.1} parent=1 // pred_region
      %93 = dma.done [#allocation6], 7168
    $region65: #{tpu_custom_call.1} parent=1 // pred_fallthru
      _
    // Predicated region
    $region66: #{tpu_custom_call.1} parent=1 // pred_check
      _
    $region67: #{tpu_custom_call.1} parent=1 // pred_check_branch
      %95 = sbr.rel (0) target = $region69
    $region68: #{tpu_custom_call.1} parent=1 // pred_region
      %97 = dma.done [#allocation6], 7168
    $region69: #{tpu_custom_call.1} parent=1 // pred_fallthru
      _
    %v99 = vld [vmem:[#allocation2] sm:$0xff]
    %v100 = vld [vmem:[#allocation2 + $0x8] sm:$0xff]
    %v101 = vld [vmem:[#allocation2 + $0x10] sm:$0xff]
    %v102 = vld [vmem:[#allocation2 + $0x18] sm:$0xff]
    %v103 = vld [vmem:[#allocation2 + $0x20] sm:$0xff]
    %v104 = vld [vmem:[#allocation2 + $0x28] sm:$0xff]
    %v105 = vld [vmem:[#allocation2 + $0x30] sm:$0xff]
    %v106 = vld [vmem:[#allocation2 + $0x38] sm:$0xff]
    %v107 = vld [vmem:[#allocation2 + $0x40] sm:$0xff]
    %v108 = vld [vmem:[#allocation2 + $0x48] sm:$0xff]
    %v109 = vld [vmem:[#allocation2 + $0x50] sm:$0xff]
    %v110 = vld [vmem:[#allocation2 + $0x58] sm:$0xff]
    %v111 = vld [vmem:[#allocation2 + $0x60] sm:$0xff]
    %v112 = vld [vmem:[#allocation2 + $0x68] sm:$0xff]
    %v113 = vpack.c.bf16 %v106, %v99
    %v114 = vpack.c.bf16 %v107, %v100
    %v115 = vpack.c.bf16 %v108, %v101
    %v116 = vpack.c.bf16 %v109, %v102
    %v117 = vpack.c.bf16 %v110, %v103
    %v118 = vpack.c.bf16 %v111, %v104
    %v119 = vpack.c.bf16 %v112, %v105
    %v120 = vld [vmem:[#allocation5] sm:$0xf]
    %v121 = vld [vmem:[#allocation5 + $0x4] sm:$0xf]
    %v122 = vld [vmem:[#allocation5 + $0x8] sm:$0xf]
    %v123 = vld [vmem:[#allocation5 + $0xc] sm:$0xf]
    %v124 = vld [vmem:[#allocation5 + $0x10] sm:$0xf]
    %v125 = vld [vmem:[#allocation5 + $0x14] sm:$0xf]
    %v126 = vld [vmem:[#allocation5 + $0x18] sm:$0xf]
    %v127 = vld [vmem:[#allocation5 + $0x1c] sm:$0xf]
    %v128 = vld [vmem:[#allocation5 + $0x20] sm:$0xf]
    %v129 = vld [vmem:[#allocation5 + $0x24] sm:$0xf]
    %v130 = vld [vmem:[#allocation5 + $0x28] sm:$0xf]
    %v131 = vld [vmem:[#allocation5 + $0x2c] sm:$0xf]
    %v132 = vld [vmem:[#allocation5 + $0x30] sm:$0xf]
    %v133 = vld [vmem:[#allocation5 + $0x34] sm:$0xf]
    %v134 = vld [vmem:[#allocation5 + $0x38] sm:$0xf]
    %v135 = vld [vmem:[#allocation5 + $0x3c] sm:$0xf]
    %v136 = vld [vmem:[#allocation5 + $0x40] sm:$0xf]
    %v137 = vld [vmem:[#allocation5 + $0x44] sm:$0xf]
    %v138 = vld [vmem:[#allocation5 + $0x48] sm:$0xf]
    %v139 = vld [vmem:[#allocation5 + $0x4c] sm:$0xf]
    %v140 = vld [vmem:[#allocation5 + $0x50] sm:$0xf]
    %v141 = vld [vmem:[#allocation5 + $0x54] sm:$0xf]
    %v142 = vld [vmem:[#allocation5 + $0x58] sm:$0xf]
    %v143 = vld [vmem:[#allocation5 + $0x5c] sm:$0xf]
    %v144 = vld [vmem:[#allocation5 + $0x60] sm:$0xf]
    %v145 = vld [vmem:[#allocation5 + $0x64] sm:$0xf]
    %v146 = vld [vmem:[#allocation5 + $0x68] sm:$0xf]
    %v147 = vld [vmem:[#allocation5 + $0x6c] sm:$0xf]
    %v148 = vld [vmem:[#allocation5 + $0x70] sm:$0xf]
    %v149 = vld [vmem:[#allocation5 + $0x74] sm:$0xf]
    %v150 = vld [vmem:[#allocation5 + $0x78] sm:$0xf]
    %v151 = vld [vmem:[#allocation5 + $0x7c] sm:$0xf]
    %v152 = vld [vmem:[#allocation5 + $0x80] sm:$0xf]
    %v153 = vld [vmem:[#allocation5 + $0x84] sm:$0xf]
    %v154 = vld [vmem:[#allocation5 + $0x88] sm:$0xf]
    %v155 = vld [vmem:[#allocation5 + $0x8c] sm:$0xf]
    %v156 = vld [vmem:[#allocation5 + $0x90] sm:$0xf]
    %v157 = vld [vmem:[#allocation5 + $0x94] sm:$0xf]
    %v158 = vld [vmem:[#allocation5 + $0x98] sm:$0xf]
    %v159 = vld [vmem:[#allocation5 + $0x9c] sm:$0xf]
    %v160 = vld [vmem:[#allocation5 + $0xa0] sm:$0xf]
    %v161 = vld [vmem:[#allocation5 + $0xa4] sm:$0xf]
    %v162 = vld [vmem:[#allocation5 + $0xa8] sm:$0xf]
    %v163 = vld [vmem:[#allocation5 + $0xac] sm:$0xf]
    %v164 = vld [vmem:[#allocation5 + $0xb0] sm:$0xf]
    %v165 = vld [vmem:[#allocation5 + $0xb4] sm:$0xf]
    %v166 = vld [vmem:[#allocation5 + $0xb8] sm:$0xf]
    %v167 = vld [vmem:[#allocation5 + $0xbc] sm:$0xf]
    %v168 = vld [vmem:[#allocation5 + $0xc0] sm:$0xf]
    %v169 = vld [vmem:[#allocation5 + $0xc4] sm:$0xf]
    %v170 = vld [vmem:[#allocation5 + $0xc8] sm:$0xf]
    %v171 = vld [vmem:[#allocation5 + $0xcc] sm:$0xf]
    %v172 = vld [vmem:[#allocation5 + $0xd0] sm:$0xf]
    %v173 = vld [vmem:[#allocation5 + $0xd4] sm:$0xf]
    %v174 = vld [vmem:[#allocation5 + $0xd8] sm:$0xf]
    %v175 = vld [vmem:[#allocation5 + $0xdc] sm:$0xf]
    %v176 = vld [vmem:[#allocation5 + $0xe0] sm:$0xf]
    %v177 = vld [vmem:[#allocation5 + $0xe4] sm:$0xf]
    %v178 = vld [vmem:[#allocation5 + $0xe8] sm:$0xf]
    %v179 = vld [vmem:[#allocation5 + $0xec] sm:$0xf]
    %v180 = vld [vmem:[#allocation5 + $0xf0] sm:$0xf]
    %v181 = vld [vmem:[#allocation5 + $0xf4] sm:$0xf]
    %v182 = vld [vmem:[#allocation5 + $0xf8] sm:$0xf]
    %v183 = vld [vmem:[#allocation5 + $0xfc] sm:$0xf]
    %v184 = vld [vmem:[#allocation5 + $0x100] sm:$0xf]
    %v185 = vld [vmem:[#allocation5 + $0x104] sm:$0xf]
    %v186 = vld [vmem:[#allocation5 + $0x108] sm:$0xf]
    %v187 = vld [vmem:[#allocation5 + $0x10c] sm:$0xf]
    %v188 = vld [vmem:[#allocation5 + $0x110] sm:$0xf]
    %v189 = vld [vmem:[#allocation5 + $0x114] sm:$0xf]
    %v190 = vld [vmem:[#allocation5 + $0x118] sm:$0xf]
    %v191 = vld [vmem:[#allocation5 + $0x11c] sm:$0xf]
    %v192 = vld [vmem:[#allocation5 + $0x120] sm:$0xf]
    %v193 = vld [vmem:[#allocation5 + $0x124] sm:$0xf]
    %v194 = vld [vmem:[#allocation5 + $0x128] sm:$0xf]
    %v195 = vld [vmem:[#allocation5 + $0x12c] sm:$0xf]
    %v196 = vld [vmem:[#allocation5 + $0x130] sm:$0xf]
    %v197 = vld [vmem:[#allocation5 + $0x134] sm:$0xf]
    %v198 = vld [vmem:[#allocation5 + $0x138] sm:$0xf]
    %v199 = vld [vmem:[#allocation5 + $0x13c] sm:$0xf]
    %v200 = vld [vmem:[#allocation5 + $0x140] sm:$0xf]
    %v201 = vld [vmem:[#allocation5 + $0x144] sm:$0xf]
    %v202 = vld [vmem:[#allocation5 + $0x148] sm:$0xf]
    %v203 = vld [vmem:[#allocation5 + $0x14c] sm:$0xf]
    %v204 = vld [vmem:[#allocation5 + $0x150] sm:$0xf]
    %v205 = vld [vmem:[#allocation5 + $0x154] sm:$0xf]
    %v206 = vld [vmem:[#allocation5 + $0x158] sm:$0xf]
    %v207 = vld [vmem:[#allocation5 + $0x15c] sm:$0xf]
    %v208 = vld [vmem:[#allocation5 + $0x160] sm:$0xf]
    %v209 = vld [vmem:[#allocation5 + $0x164] sm:$0xf]
    %v210 = vld [vmem:[#allocation5 + $0x168] sm:$0xf]
    %v211 = vld [vmem:[#allocation5 + $0x16c] sm:$0xf]
    %v212 = vld [vmem:[#allocation5 + $0x170] sm:$0xf]
    %v213 = vld [vmem:[#allocation5 + $0x174] sm:$0xf]
    %v214 = vld [vmem:[#allocation5 + $0x178] sm:$0xf]
    %v215 = vld [vmem:[#allocation5 + $0x17c] sm:$0xf]
    %v216 = vld [vmem:[#allocation5 + $0x180] sm:$0xf]
    %v217 = vld [vmem:[#allocation5 + $0x184] sm:$0xf]
    %v218 = vld [vmem:[#allocation5 + $0x188] sm:$0xf]
    %v219 = vld [vmem:[#allocation5 + $0x18c] sm:$0xf]
    %v220 = vld [vmem:[#allocation5 + $0x190] sm:$0xf]
    %v221 = vld [vmem:[#allocation5 + $0x194] sm:$0xf]
    %v222 = vld [vmem:[#allocation5 + $0x198] sm:$0xf]
    %v223 = vld [vmem:[#allocation5 + $0x19c] sm:$0xf]
    %v224 = vld [vmem:[#allocation5 + $0x1a0] sm:$0xf]
    %v225 = vld [vmem:[#allocation5 + $0x1a4] sm:$0xf]
    %v226 = vld [vmem:[#allocation5 + $0x1a8] sm:$0xf]
    %v227 = vld [vmem:[#allocation5 + $0x1ac] sm:$0xf]
    %v228 = vld [vmem:[#allocation5 + $0x1b0] sm:$0xf]
    %v229 = vld [vmem:[#allocation5 + $0x1b4] sm:$0xf]
    %v230 = vld [vmem:[#allocation5 + $0x1b8] sm:$0xf]
    %v231 = vld [vmem:[#allocation5 + $0x1bc] sm:$0xf]
    %v232 = vld [vmem:[%s3] sm:$0x1]
    %v234 = vperm.slane %v232, 0
    %v348 = vunpack.c.l.b16 %v120
    %v349 = vunpack.c.l.b16 %v121
    %v350 = vunpack.c.l.b16 %v122
    %v351 = vunpack.c.l.b16 %v123
    %v352 = vunpack.c.l.b16 %v124
    %v353 = vunpack.c.l.b16 %v125
    %v354 = vunpack.c.l.b16 %v126
    %v355 = vunpack.c.l.b16 %v127
    %v356 = vunpack.c.l.b16 %v128
    %v357 = vunpack.c.l.b16 %v129
    %v358 = vunpack.c.l.b16 %v130
    %v359 = vunpack.c.l.b16 %v131
    %v360 = vunpack.c.l.b16 %v132
    %v361 = vunpack.c.l.b16 %v133
    %v362 = vunpack.c.l.b16 %v134
    %v363 = vunpack.c.l.b16 %v135
    %v364 = vunpack.c.l.b16 %v136
    %v365 = vunpack.c.l.b16 %v137
    %v366 = vunpack.c.l.b16 %v138
    %v367 = vunpack.c.l.b16 %v139
    %v368 = vunpack.c.l.b16 %v140
    %v369 = vunpack.c.l.b16 %v141
    %v370 = vunpack.c.l.b16 %v142
    %v371 = vunpack.c.l.b16 %v143
    %v372 = vunpack.c.l.b16 %v144
    %v373 = vunpack.c.l.b16 %v145
    %v374 = vunpack.c.l.b16 %v146
    %v375 = vunpack.c.l.b16 %v147
    %v376 = vunpack.c.l.b16 %v148
    %v377 = vunpack.c.l.b16 %v149
    %v378 = vunpack.c.l.b16 %v150
    %v379 = vunpack.c.l.b16 %v151
    %v380 = vunpack.c.l.b16 %v152
    %v381 = vunpack.c.l.b16 %v153
    %v382 = vunpack.c.l.b16 %v154
    %v383 = vunpack.c.l.b16 %v155
    %v384 = vunpack.c.l.b16 %v156
    %v385 = vunpack.c.l.b16 %v157
    %v386 = vunpack.c.l.b16 %v158
    %v387 = vunpack.c.l.b16 %v159
    %v388 = vunpack.c.l.b16 %v160
    %v389 = vunpack.c.l.b16 %v161
    %v390 = vunpack.c.l.b16 %v162
    %v391 = vunpack.c.l.b16 %v163
    %v392 = vunpack.c.l.b16 %v164
    %v393 = vunpack.c.l.b16 %v165
    %v394 = vunpack.c.l.b16 %v166
    %v395 = vunpack.c.l.b16 %v167
    %v396 = vunpack.c.l.b16 %v168
    %v397 = vunpack.c.l.b16 %v169
    %v398 = vunpack.c.l.b16 %v170
    %v399 = vunpack.c.l.b16 %v171
    %v400 = vunpack.c.l.b16 %v172
    %v401 = vunpack.c.l.b16 %v173
    %v402 = vunpack.c.l.b16 %v174
    %v403 = vunpack.c.l.b16 %v175
    %v404 = vunpack.c.l.b16 %v176
    %v405 = vunpack.c.l.b16 %v177
    %v406 = vunpack.c.l.b16 %v178
    %v407 = vunpack.c.l.b16 %v179
    %v408 = vunpack.c.l.b16 %v180
    %v409 = vunpack.c.l.b16 %v181
    %v410 = vunpack.c.l.b16 %v182
    %v411 = vunpack.c.l.b16 %v183
    %v412 = vunpack.c.l.b16 %v184
    %v413 = vunpack.c.l.b16 %v185
    %v414 = vunpack.c.l.b16 %v186
    %v415 = vunpack.c.l.b16 %v187
    %v416 = vunpack.c.l.b16 %v188
    %v417 = vunpack.c.l.b16 %v189
    %v418 = vunpack.c.l.b16 %v190
    %v419 = vunpack.c.l.b16 %v191
    %v420 = vunpack.c.l.b16 %v192
    %v421 = vunpack.c.l.b16 %v193
    %v422 = vunpack.c.l.b16 %v194
    %v423 = vunpack.c.l.b16 %v195
    %v424 = vunpack.c.l.b16 %v196
    %v425 = vunpack.c.l.b16 %v197
    %v426 = vunpack.c.l.b16 %v198
    %v427 = vunpack.c.l.b16 %v199
    %v428 = vunpack.c.l.b16 %v200
    %v429 = vunpack.c.l.b16 %v201
    %v430 = vunpack.c.l.b16 %v202
    %v431 = vunpack.c.l.b16 %v203
    %v432 = vunpack.c.l.b16 %v204
    %v433 = vunpack.c.l.b16 %v205
    %v434 = vunpack.c.l.b16 %v206
    %v435 = vunpack.c.l.b16 %v207
    %v436 = vunpack.c.l.b16 %v208
    %v437 = vunpack.c.l.b16 %v209
    %v438 = vunpack.c.l.b16 %v210
    %v439 = vunpack.c.l.b16 %v211
    %v440 = vunpack.c.l.b16 %v212
    %v441 = vunpack.c.l.b16 %v213
    %v442 = vunpack.c.l.b16 %v214
    %v443 = vunpack.c.l.b16 %v215
    %v444 = vunpack.c.l.b16 %v216
    %v445 = vunpack.c.l.b16 %v217
    %v446 = vunpack.c.l.b16 %v218
    %v447 = vunpack.c.l.b16 %v219
    %v448 = vunpack.c.l.b16 %v220
    %v449 = vunpack.c.l.b16 %v221
    %v450 = vunpack.c.l.b16 %v222
    %v451 = vunpack.c.l.b16 %v223
    %v452 = vunpack.c.l.b16 %v224
    %v453 = vunpack.c.l.b16 %v225
    %v454 = vunpack.c.l.b16 %v226
    %v455 = vunpack.c.l.b16 %v227
    %v456 = vunpack.c.l.b16 %v228
    %v457 = vunpack.c.l.b16 %v229
    %v458 = vunpack.c.l.b16 %v230
    %v459 = vunpack.c.l.b16 %v231
    %v460 = vpack.c.b16 %v349, %v348
    %v461 = vpack.c.b16 %v351, %v350
    %v462 = vpack.c.b16 %v353, %v352
    %v463 = vpack.c.b16 %v355, %v354
    %v464 = vpack.c.b16 %v357, %v356
    %v465 = vpack.c.b16 %v359, %v358
    %v466 = vpack.c.b16 %v361, %v360
    %v467 = vpack.c.b16 %v363, %v362
    %v468 = vpack.c.b16 %v365, %v364
    %v469 = vpack.c.b16 %v367, %v366
    %v470 = vpack.c.b16 %v369, %v368
    %v471 = vpack.c.b16 %v371, %v370
    %v472 = vpack.c.b16 %v373, %v372
    %v473 = vpack.c.b16 %v375, %v374
    %v474 = vpack.c.b16 %v377, %v376
    %v475 = vpack.c.b16 %v379, %v378
    %v476 = vpack.c.b16 %v381, %v380
    %v477 = vpack.c.b16 %v383, %v382
    %v478 = vpack.c.b16 %v385, %v384
    %v479 = vpack.c.b16 %v387, %v386
    %v480 = vpack.c.b16 %v389, %v388
    %v481 = vpack.c.b16 %v391, %v390
    %v482 = vpack.c.b16 %v393, %v392
    %v483 = vpack.c.b16 %v395, %v394
    %v484 = vpack.c.b16 %v397, %v396
    %v485 = vpack.c.b16 %v399, %v398
    %v486 = vpack.c.b16 %v401, %v400
    %v487 = vpack.c.b16 %v403, %v402
    %v488 = vpack.c.b16 %v405, %v404
    %v489 = vpack.c.b16 %v407, %v406
    %v490 = vpack.c.b16 %v409, %v408
    %v491 = vpack.c.b16 %v411, %v410
    %v492 = vpack.c.b16 %v413, %v412
    %v493 = vpack.c.b16 %v415, %v414
    %v494 = vpack.c.b16 %v417, %v416
    %v495 = vpack.c.b16 %v419, %v418
    %v496 = vpack.c.b16 %v421, %v420
    %v497 = vpack.c.b16 %v423, %v422
    %v498 = vpack.c.b16 %v425, %v424
    %v499 = vpack.c.b16 %v427, %v426
    %v500 = vpack.c.b16 %v429, %v428
    %v501 = vpack.c.b16 %v431, %v430
    %v502 = vpack.c.b16 %v433, %v432
    %v503 = vpack.c.b16 %v435, %v434
    %v504 = vpack.c.b16 %v437, %v436
    %v505 = vpack.c.b16 %v439, %v438
    %v506 = vpack.c.b16 %v441, %v440
    %v507 = vpack.c.b16 %v443, %v442
    %v508 = vpack.c.b16 %v445, %v444
    %v509 = vpack.c.b16 %v447, %v446
    %v510 = vpack.c.b16 %v449, %v448
    %v511 = vpack.c.b16 %v451, %v450
    %v512 = vpack.c.b16 %v453, %v452
    %v513 = vpack.c.b16 %v455, %v454
    %v514 = vpack.c.b16 %v457, %v456
    %v515 = vpack.c.b16 %v459, %v458
    %572 = vmatpush.bf16.msra.mxu0 %v467
    %573 = vmatpush.bf16.msra.mxu0 %v466
    %574 = vmatpush.bf16.msra.mxu0 %v465
    %575 = vmatpush.bf16.msra.mxu0 %v464
    %576 = vmatpush.bf16.msra.mxu0 %v463
    %577 = vmatpush.bf16.msra.mxu0 %v462
    %578 = vmatpush.bf16.msra.mxu0 %v461
    %579 = vmatpush.bf16.msra.mxu0 %v460
    %580 = vmatmul.bf16.gmra.mxu0 %v113
    %v581 = vpop.f32.mrf.mxu0
    %v582 = vadd.f32 %v234, %v581
    %v583 = vpop.f32.mrf.mxu0
    %v584 = vadd.f32 %v234, %v583
    %585 = vdwg.mxu0
    %586 = vmatpush.bf16.msra.mxu0 %v475
    %587 = vmatpush.bf16.msra.mxu0 %v474
    %588 = vmatpush.bf16.msra.mxu0 %v473
    %589 = vmatpush.bf16.msra.mxu0 %v472
    %590 = vmatpush.bf16.msra.mxu0 %v471
    %591 = vmatpush.bf16.msra.mxu0 %v470
    %592 = vmatpush.bf16.msra.mxu0 %v469
    %593 = vmatpush.bf16.msra.mxu0 %v468
    %594 = vmatmul.bf16.gmra.mxu0 %v114
    %v595 = vpop.f32.mrf.mxu0
    %v596 = vadd.f32 %v582, %v595
    %v597 = vpop.f32.mrf.mxu0
    %v598 = vadd.f32 %v584, %v597
    %599 = vdwg.mxu0
    %600 = vmatpush.bf16.msra.mxu0 %v483
    %601 = vmatpush.bf16.msra.mxu0 %v482
    %602 = vmatpush.bf16.msra.mxu0 %v481
    %603 = vmatpush.bf16.msra.mxu0 %v480
    %604 = vmatpush.bf16.msra.mxu0 %v479
    %605 = vmatpush.bf16.msra.mxu0 %v478
    %606 = vmatpush.bf16.msra.mxu0 %v477
    %607 = vmatpush.bf16.msra.mxu0 %v476
    %608 = vmatmul.bf16.gmra.mxu0 %v115
    %v609 = vpop.f32.mrf.mxu0
    %v610 = vadd.f32 %v596, %v609
    %v611 = vpop.f32.mrf.mxu0
    %v612 = vadd.f32 %v598, %v611
    %613 = vdwg.mxu0
    %614 = vmatpush.bf16.msra.mxu0 %v491
    %615 = vmatpush.bf16.msra.mxu0 %v490
    %616 = vmatpush.bf16.msra.mxu0 %v489
    %617 = vmatpush.bf16.msra.mxu0 %v488
    %618 = vmatpush.bf16.msra.mxu0 %v487
    %619 = vmatpush.bf16.msra.mxu0 %v486
    %620 = vmatpush.bf16.msra.mxu0 %v485
    %621 = vmatpush.bf16.msra.mxu0 %v484
    %622 = vmatmul.bf16.gmra.mxu0 %v116
    %v623 = vpop.f32.mrf.mxu0
    %v624 = vadd.f32 %v610, %v623
    %v625 = vpop.f32.mrf.mxu0
    %v626 = vadd.f32 %v612, %v625
    %627 = vdwg.mxu0
    %628 = vmatpush.bf16.msra.mxu0 %v499
    %629 = vmatpush.bf16.msra.mxu0 %v498
    %630 = vmatpush.bf16.msra.mxu0 %v497
    %631 = vmatpush.bf16.msra.mxu0 %v496
    %632 = vmatpush.bf16.msra.mxu0 %v495
    %633 = vmatpush.bf16.msra.mxu0 %v494
    %634 = vmatpush.bf16.msra.mxu0 %v493
    %635 = vmatpush.bf16.msra.mxu0 %v492
    %636 = vmatmul.bf16.gmra.mxu0 %v117
    %v637 = vpop.f32.mrf.mxu0
    %v638 = vadd.f32 %v624, %v637
    %v639 = vpop.f32.mrf.mxu0
    %v640 = vadd.f32 %v626, %v639
    %641 = vdwg.mxu0
    %642 = vmatpush.bf16.msra.mxu0 %v507
    %643 = vmatpush.bf16.msra.mxu0 %v506
    %644 = vmatpush.bf16.msra.mxu0 %v505
    %645 = vmatpush.bf16.msra.mxu0 %v504
    %646 = vmatpush.bf16.msra.mxu0 %v503
    %647 = vmatpush.bf16.msra.mxu0 %v502
    %648 = vmatpush.bf16.msra.mxu0 %v501
    %649 = vmatpush.bf16.msra.mxu0 %v500
    %650 = vmatmul.bf16.gmra.mxu0 %v118
    %v651 = vpop.f32.mrf.mxu0
    %v652 = vadd.f32 %v638, %v651
    %v653 = vpop.f32.mrf.mxu0
    %v654 = vadd.f32 %v640, %v653
    %655 = vdwg.mxu0
    %656 = vmatpush.bf16.msra.mxu0 %v515
    %657 = vmatpush.bf16.msra.mxu0 %v514
    %658 = vmatpush.bf16.msra.mxu0 %v513
    %659 = vmatpush.bf16.msra.mxu0 %v512
    %660 = vmatpush.bf16.msra.mxu0 %v511
    %661 = vmatpush.bf16.msra.mxu0 %v510
    %662 = vmatpush.bf16.msra.mxu0 %v509
    %663 = vmatpush.bf16.msra.mxu0 %v508
    %664 = vmatmul.bf16.gmra.mxu0 %v119
    %v665 = vpop.f32.mrf.mxu0
    %v666 = vadd.f32 %v652, %v665
    %v667 = vpop.f32.mrf.mxu0
    %v668 = vadd.f32 %v654, %v667
    %669 = vdwg.mxu0
    %v670 = vmax.f32 %v666, 0.0
    %v671 = vmax.f32 %v668, 0.0
    %v672 = vpack.c.bf16 %v671, %v670
    %v673 = vld [vmem:[%s4] sm:$0xf]
    %v674 = vld [vmem:[%s4 + $0x4] sm:$0xf]
    %v675 = vld [vmem:[%s4 + $0x8] sm:$0xf]
    %v676 = vld [vmem:[%s4 + $0xc] sm:$0xf]
    %v677 = vld [vmem:[%s4 + $0x10] sm:$0xf]
    %v678 = vld [vmem:[%s4 + $0x14] sm:$0xf]
    %v679 = vld [vmem:[%s4 + $0x18] sm:$0xf]
    %v680 = vld [vmem:[%s4 + $0x1c] sm:$0xf]
    %v681 = vld [vmem:[%s4 + $0x20] sm:$0xf]
    %v682 = vld [vmem:[%s4 + $0x24] sm:$0xf]
    %v683 = vld [vmem:[%s4 + $0x28] sm:$0xf]
    %v684 = vld [vmem:[%s4 + $0x2c] sm:$0xf]
    %v685 = vld [vmem:[%s4 + $0x30] sm:$0xf]
    %v686 = vld [vmem:[%s4 + $0x34] sm:$0xf]
    %v687 = vld [vmem:[%s4 + $0x38] sm:$0xf]
    %v688 = vld [vmem:[%s4 + $0x3c] sm:$0xf]
    %v689 = vld [vmem:[%s5] sm:$0x1]
    %v691 = vperm.slane %v689, 0
    %v709 = vunpack.c.l.b16 %v673
    %v710 = vunpack.c.l.b16 %v674
    %v711 = vunpack.c.l.b16 %v675
    %v712 = vunpack.c.l.b16 %v676
    %v713 = vunpack.c.l.b16 %v677
    %v714 = vunpack.c.l.b16 %v678
    %v715 = vunpack.c.l.b16 %v679
    %v716 = vunpack.c.l.b16 %v680
    %v717 = vunpack.c.l.b16 %v681
    %v718 = vunpack.c.l.b16 %v682
    %v719 = vunpack.c.l.b16 %v683
    %v720 = vunpack.c.l.b16 %v684
    %v721 = vunpack.c.l.b16 %v685
    %v722 = vunpack.c.l.b16 %v686
    %v723 = vunpack.c.l.b16 %v687
    %v724 = vunpack.c.l.b16 %v688
    %v725 = vpack.c.b16 %v710, %v709
    %v726 = vpack.c.b16 %v712, %v711
    %v727 = vpack.c.b16 %v714, %v713
    %v728 = vpack.c.b16 %v716, %v715
    %v729 = vpack.c.b16 %v718, %v717
    %v730 = vpack.c.b16 %v720, %v719
    %v731 = vpack.c.b16 %v722, %v721
    %v732 = vpack.c.b16 %v724, %v723
    %741 = vmatpush.bf16.msra.mxu0 %v732
    %742 = vmatpush.bf16.msra.mxu0 %v731
    %743 = vmatpush.bf16.msra.mxu0 %v730
    %744 = vmatpush.bf16.msra.mxu0 %v729
    %745 = vmatpush.bf16.msra.mxu0 %v728
    %746 = vmatpush.bf16.msra.mxu0 %v727
    %747 = vmatpush.bf16.msra.mxu0 %v726
    %748 = vmatpush.bf16.msra.mxu0 %v725
    %749 = vmatmul.bf16.gmra.mxu0 %v672
    %v750 = vpop.f32.mrf.mxu0
    %v751 = vadd.f32 %v691, %v750
    %v752 = vpop.f32.mrf.mxu0
    %v753 = vadd.f32 %v691, %v752
    %754 = vdwg.mxu0
    %v755 = vmax.f32 %v751, 0.0
    %v756 = vmax.f32 %v753, 0.0
    %v757 = vpack.c.bf16 %v756, %v755
    %v758 = vld [vmem:[%s6] sm:$0xf]
    %v759 = vld [vmem:[%s6 + $0x4] sm:$0xf]
    %v760 = vld [vmem:[%s6 + $0x8] sm:$0xf]
    %v761 = vld [vmem:[%s6 + $0xc] sm:$0xf]
    %v762 = vld [vmem:[%s6 + $0x10] sm:$0xf]
    %v763 = vld [vmem:[%s6 + $0x14] sm:$0xf]
    %v764 = vld [vmem:[%s6 + $0x18] sm:$0xf]
    %v765 = vld [vmem:[%s6 + $0x1c] sm:$0xf]
    %v766 = vld [vmem:[%s7] sm:$0x1]
    %v768 = vperm.slane %v766, 0
    %v778 = vunpack.c.l.b16 %v758
    %v779 = vunpack.c.l.b16 %v759
    %v780 = vunpack.c.l.b16 %v760
    %v781 = vunpack.c.l.b16 %v761
    %v782 = vunpack.c.l.b16 %v762
    %v783 = vunpack.c.l.b16 %v763
    %v784 = vunpack.c.l.b16 %v764
    %v785 = vunpack.c.l.b16 %v765
    %v786 = vpack.c.b16 %v779, %v778
    %v787 = vpack.c.b16 %v781, %v780
    %v788 = vpack.c.b16 %v783, %v782
    %v789 = vpack.c.b16 %v785, %v784
    %vm794 = vcmask 523264
    %v796 = vsel %vm794, %v757, 0
    %798 = vmatpush.bf16.msra.mxu0 0
    %799 = vmatpush.bf16.msra.mxu0 0
    %800 = vmatpush.bf16.msra.mxu0 0
    %801 = vmatpush.bf16.msra.mxu0 0
    %802 = vmatpush.bf16.msra.mxu0 %v789
    %803 = vmatpush.bf16.msra.mxu0 %v788
    %804 = vmatpush.bf16.msra.mxu0 %v787
    %805 = vmatpush.bf16.msra.mxu0 %v786
    %806 = vmatmul.bf16.gmra.mxu0 %v796
    %v807 = vpop.f32.mrf.mxu0
    %v808 = vadd.f32 %v768, %v807
    %v809 = vpop.f32.mrf.mxu0
    %v810 = vadd.f32 %v768, %v809
    %811 = vdwg.mxu0
    %v812 = vld [vmem:[%s1] sm:$0xff]
    %v813 = vld [vmem:[%s1 + $0x8] sm:$0xff]
    %v814 = vmul.f32 %v808, 0.5
    %v815 = vmul.f32 %v810, 0.5
    %v816 = vmul.f32 %v814, 1.442695
    %v817 = vpow.pop %v816
    %v818 = vmul.f32 %v815, 1.442695
    %v819 = vpow.pop %v818
    %822 = vrot.lane.b32.xlu0 %v817, 112
    %v823 = vpop.permute.xlu0 %822
    %824 = vrot.lane.b32.xlu0 %v819, 112
    %v825 = vpop.permute.xlu0 %824
    %v828 = vmul.f32 %v812, %v823
    %v829 = vmul.f32 %v813, %v825
    %v830 = vadd.f32 %v828, %v808
    %v831 = vadd.f32 %v829, %v810
    %v832 = vpack.c.bf16 %v831, %v830
    %v833 = vld [vmem:[%s8] sm:$0xf]
    %v834 = vld [vmem:[%s8 + $0x4] sm:$0xf]
    %v835 = vld [vmem:[%s9] sm:$0x1]
    %v837 = vperm.slane %v835, 0
    %v841 = vunpack.c.l.b16 %v833
    %v842 = vunpack.c.l.b16 %v834
    %v843 = vpack.c.b16 %v842, %v841
    %vm845 = vcmask 130048
    %v847 = vsel %vm845, %v832, 0
    %849 = vmatpush.bf16.msra.mxu0 0
    %850 = vmatpush.bf16.msra.mxu0 0
    %851 = vmatpush.bf16.msra.mxu0 0
    %852 = vmatpush.bf16.msra.mxu0 0
    %853 = vmatpush.bf16.msra.mxu0 0
    %854 = vmatpush.bf16.msra.mxu0 0
    %855 = vmatpush.bf16.msra.mxu0 0
    %856 = vmatpush.bf16.msra.mxu0 %v843
    %857 = vmatmul.bf16.gmra.mxu0 %v847
    %v858 = vpop.f32.mrf.mxu0
    %v859 = vadd.f32 %v837, %v858
    %v860 = vpop.f32.mrf.mxu0
    %v861 = vadd.f32 %v837, %v860
    %862 = vdwg.mxu0
    %v863 = vmax.f32 %v859, 0.0
    %v864 = vmax.f32 %v861, 0.0
    %v865 = vpack.c.bf16 %v864, %v863
    %v866 = vld [vmem:[%s10] sm:$0xf]
    %v867 = vld [vmem:[%s10 + $0x4] sm:$0xf]
    %v868 = vld [vmem:[%s10 + $0x8] sm:$0xf]
    %v869 = vld [vmem:[%s10 + $0xc] sm:$0xf]
    %v870 = vld [vmem:[%s10 + $0x10] sm:$0xf]
    %v871 = vld [vmem:[%s10 + $0x14] sm:$0xf]
    %v872 = vld [vmem:[%s10 + $0x18] sm:$0xf]
    %v873 = vld [vmem:[%s10 + $0x1c] sm:$0xf]
    %v874 = vld [vmem:[%s11] sm:$0x1]
    %v876 = vperm.slane %v874, 0
    %v886 = vunpack.c.l.b16 %v866
    %v887 = vunpack.c.l.b16 %v867
    %v888 = vunpack.c.l.b16 %v868
    %v889 = vunpack.c.l.b16 %v869
    %v890 = vunpack.c.l.b16 %v870
    %v891 = vunpack.c.l.b16 %v871
    %v892 = vunpack.c.l.b16 %v872
    %v893 = vunpack.c.l.b16 %v873
    %v894 = vpack.c.b16 %v887, %v886
    %v895 = vpack.c.b16 %v889, %v888
    %v896 = vpack.c.b16 %v891, %v890
    %v897 = vpack.c.b16 %v893, %v892
    %v903 = vsel %vm794, %v865, 0
    %905 = vmatpush.bf16.msra.mxu0 0
    %906 = vmatpush.bf16.msra.mxu0 0
    %907 = vmatpush.bf16.msra.mxu0 0
    %908 = vmatpush.bf16.msra.mxu0 0
    %909 = vmatpush.bf16.msra.mxu0 %v897
    %910 = vmatpush.bf16.msra.mxu0 %v896
    %911 = vmatpush.bf16.msra.mxu0 %v895
    %912 = vmatpush.bf16.msra.mxu0 %v894
    %913 = vmatmul.bf16.gmra.mxu0 %v903
    %v914 = vpop.f32.mrf.mxu0
    %v915 = vadd.f32 %v876, %v914
    %v916 = vpop.f32.mrf.mxu0
    %v917 = vadd.f32 %v876, %v916
    %918 = vdwg.mxu0
    %v919 = vmax.f32 %v915, 0.0
    %v920 = vmax.f32 %v917, 0.0
    %v921 = vpack.c.bf16 %v920, %v919
    %v922 = vld [vmem:[#allocation7] sm:$0xff]
    %v923 = vld [vmem:[#allocation7 + $0x8] sm:$0xff]
    %v924 = vld [vmem:[#allocation7 + $0x10] sm:$0xff]
    %v925 = vld [vmem:[#allocation7 + $0x18] sm:$0xf]
    %v926 = vld [vmem:[#allocation7 + $0x1c] sm:$0xff]
    %v927 = vld [vmem:[#allocation7 + $0x24] sm:$0xff]
    %v928 = vld [vmem:[#allocation7 + $0x2c] sm:$0xff]
    %v929 = vld [vmem:[#allocation7 + $0x34] sm:$0xf]
    %v930 = vld [vmem:[#allocation7 + $0x38] sm:$0xff]
    %v931 = vld [vmem:[#allocation7 + $0x40] sm:$0xff]
    %v932 = vld [vmem:[#allocation7 + $0x48] sm:$0xff]
    %v933 = vld [vmem:[#allocation7 + $0x50] sm:$0xf]
    %v934 = vld [vmem:[#allocation7 + $0x54] sm:$0xff]
    %v935 = vld [vmem:[#allocation7 + $0x5c] sm:$0xff]
    %v936 = vld [vmem:[#allocation7 + $0x64] sm:$0xff]
    %v937 = vld [vmem:[#allocation7 + $0x6c] sm:$0xf]
    %v938 = vld [vmem:[#allocation7 + $0x70] sm:$0xff]
    %v939 = vld [vmem:[#allocation7 + $0x78] sm:$0xff]
    %v940 = vld [vmem:[#allocation7 + $0x80] sm:$0xff]
    %v941 = vld [vmem:[#allocation7 + $0x88] sm:$0xf]
    %v942 = vld [vmem:[#allocation7 + $0x8c] sm:$0xff]
    %v943 = vld [vmem:[#allocation7 + $0x94] sm:$0xff]
    %v944 = vld [vmem:[#allocation7 + $0x9c] sm:$0xff]
    %v945 = vld [vmem:[#allocation7 + $0xa4] sm:$0xf]
    %v946 = vld [vmem:[#allocation7 + $0xa8] sm:$0xff]
    %v947 = vld [vmem:[#allocation7 + $0xb0] sm:$0xff]
    %v948 = vld [vmem:[#allocation7 + $0xb8] sm:$0xff]
    %v949 = vld [vmem:[#allocation7 + $0xc0] sm:$0xf]
    %v950 = vld [vmem:[#allocation7 + $0xc4] sm:$0xff]
    %v951 = vld [vmem:[#allocation7 + $0xcc] sm:$0xff]
    %v952 = vld [vmem:[#allocation7 + $0xd4] sm:$0xff]
    %v953 = vld [vmem:[#allocation7 + $0xdc] sm:$0xf]
    %v954 = vld [vmem:[#allocation7 + $0xe0] sm:$0xff]
    %v955 = vld [vmem:[#allocation7 + $0xe8] sm:$0xff]
    %v956 = vld [vmem:[#allocation7 + $0xf0] sm:$0xff]
    %v957 = vld [vmem:[#allocation7 + $0xf8] sm:$0xf]
    %v958 = vld [vmem:[#allocation7 + $0xfc] sm:$0xff]
    %v959 = vld [vmem:[#allocation7 + $0x104] sm:$0xff]
    %v960 = vld [vmem:[#allocation7 + $0x10c] sm:$0xff]
    %v961 = vld [vmem:[#allocation7 + $0x114] sm:$0xf]
    %v962 = vld [vmem:[#allocation7 + $0x118] sm:$0xff]
    %v963 = vld [vmem:[#allocation7 + $0x120] sm:$0xff]
    %v964 = vld [vmem:[#allocation7 + $0x128] sm:$0xff]
    %v965 = vld [vmem:[#allocation7 + $0x130] sm:$0xf]
    %v966 = vld [vmem:[#allocation7 + $0x134] sm:$0xff]
    %v967 = vld [vmem:[#allocation7 + $0x13c] sm:$0xff]
    %v968 = vld [vmem:[#allocation7 + $0x144] sm:$0xff]
    %v969 = vld [vmem:[#allocation7 + $0x14c] sm:$0xf]
    %v970 = vld [vmem:[#allocation7 + $0x150] sm:$0xff]
    %v971 = vld [vmem:[#allocation7 + $0x158] sm:$0xff]
    %v972 = vld [vmem:[#allocation7 + $0x160] sm:$0xff]
    %v973 = vld [vmem:[#allocation7 + $0x168] sm:$0xf]
    %v974 = vld [vmem:[#allocation7 + $0x16c] sm:$0xff]
    %v975 = vld [vmem:[#allocation7 + $0x174] sm:$0xff]
    %v976 = vld [vmem:[#allocation7 + $0x17c] sm:$0xff]
    %v977 = vld [vmem:[#allocation7 + $0x184] sm:$0xf]
    %v978 = vld [vmem:[#allocation7 + $0x188] sm:$0xff]
    %v979 = vld [vmem:[#allocation7 + $0x190] sm:$0xff]
    %v980 = vld [vmem:[#allocation7 + $0x198] sm:$0xff]
    %v981 = vld [vmem:[#allocation7 + $0x1a0] sm:$0xf]
    %v982 = vld [vmem:[#allocation7 + $0x1a4] sm:$0xff]
    %v983 = vld [vmem:[#allocation7 + $0x1ac] sm:$0xff]
    %v984 = vld [vmem:[#allocation7 + $0x1b4] sm:$0xff]
    %v985 = vld [vmem:[#allocation7 + $0x1bc] sm:$0xf]
    %v986 = vld [vmem:[%s13] sm:$0xff]
    %v988 = vperm.slane %v986, 0
    %v989 = vperm.slane %v986, 1
    %v990 = vperm.slane %v986, 2
    %v991 = vperm.slane %v986, 3
    %v992 = vperm.slane %v986, 4
    %v993 = vperm.slane %v986, 5
    %v994 = vperm.slane %v986, 6
    %v1066 = vunpack.c.l.b16 %v922
    %v1067 = vunpack.c.h.b16 %v922
    %v1068 = vunpack.c.l.b16 %v923
    %v1069 = vunpack.c.h.b16 %v923
    %v1070 = vunpack.c.l.b16 %v924
    %v1071 = vunpack.c.h.b16 %v924
    %v1072 = vunpack.c.l.b16 %v925
    %v1073 = vunpack.c.l.b16 %v926
    %v1074 = vunpack.c.h.b16 %v926
    %v1075 = vunpack.c.l.b16 %v927
    %v1076 = vunpack.c.h.b16 %v927
    %v1077 = vunpack.c.l.b16 %v928
    %v1078 = vunpack.c.h.b16 %v928
    %v1079 = vunpack.c.l.b16 %v929
    %v1080 = vunpack.c.l.b16 %v930
    %v1081 = vunpack.c.h.b16 %v930
    %v1082 = vunpack.c.l.b16 %v931
    %v1083 = vunpack.c.h.b16 %v931
    %v1084 = vunpack.c.l.b16 %v932
    %v1085 = vunpack.c.h.b16 %v932
    %v1086 = vunpack.c.l.b16 %v933
    %v1087 = vunpack.c.l.b16 %v934
    %v1088 = vunpack.c.h.b16 %v934
    %v1089 = vunpack.c.l.b16 %v935
    %v1090 = vunpack.c.h.b16 %v935
    %v1091 = vunpack.c.l.b16 %v936
    %v1092 = vunpack.c.h.b16 %v936
    %v1093 = vunpack.c.l.b16 %v937
    %v1094 = vunpack.c.l.b16 %v938
    %v1095 = vunpack.c.h.b16 %v938
    %v1096 = vunpack.c.l.b16 %v939
    %v1097 = vunpack.c.h.b16 %v939
    %v1098 = vunpack.c.l.b16 %v940
    %v1099 = vunpack.c.h.b16 %v940
    %v1100 = vunpack.c.l.b16 %v941
    %v1101 = vunpack.c.l.b16 %v942
    %v1102 = vunpack.c.h.b16 %v942
    %v1103 = vunpack.c.l.b16 %v943
    %v1104 = vunpack.c.h.b16 %v943
    %v1105 = vunpack.c.l.b16 %v944
    %v1106 = vunpack.c.h.b16 %v944
    %v1107 = vunpack.c.l.b16 %v945
    %v1108 = vunpack.c.l.b16 %v946
    %v1109 = vunpack.c.h.b16 %v946
    %v1110 = vunpack.c.l.b16 %v947
    %v1111 = vunpack.c.h.b16 %v947
    %v1112 = vunpack.c.l.b16 %v948
    %v1113 = vunpack.c.h.b16 %v948
    %v1114 = vunpack.c.l.b16 %v949
    %v1115 = vunpack.c.l.b16 %v950
    %v1116 = vunpack.c.h.b16 %v950
    %v1117 = vunpack.c.l.b16 %v951
    %v1118 = vunpack.c.h.b16 %v951
    %v1119 = vunpack.c.l.b16 %v952
    %v1120 = vunpack.c.h.b16 %v952
    %v1121 = vunpack.c.l.b16 %v953
    %v1122 = vunpack.c.l.b16 %v954
    %v1123 = vunpack.c.h.b16 %v954
    %v1124 = vunpack.c.l.b16 %v955
    %v1125 = vunpack.c.h.b16 %v955
    %v1126 = vunpack.c.l.b16 %v956
    %v1127 = vunpack.c.h.b16 %v956
    %v1128 = vunpack.c.l.b16 %v957
    %v1129 = vunpack.c.l.b16 %v958
    %v1130 = vunpack.c.h.b16 %v958
    %v1131 = vunpack.c.l.b16 %v959
    %v1132 = vunpack.c.h.b16 %v959
    %v1133 = vunpack.c.l.b16 %v960
    %v1134 = vunpack.c.h.b16 %v960
    %v1135 = vunpack.c.l.b16 %v961
    %v1136 = vunpack.c.l.b16 %v962
    %v1137 = vunpack.c.h.b16 %v962
    %v1138 = vunpack.c.l.b16 %v963
    %v1139 = vunpack.c.h.b16 %v963
    %v1140 = vunpack.c.l.b16 %v964
    %v1141 = vunpack.c.h.b16 %v964
    %v1142 = vunpack.c.l.b16 %v965
    %v1143 = vunpack.c.l.b16 %v966
    %v1144 = vunpack.c.h.b16 %v966
    %v1145 = vunpack.c.l.b16 %v967
    %v1146 = vunpack.c.h.b16 %v967
    %v1147 = vunpack.c.l.b16 %v968
    %v1148 = vunpack.c.h.b16 %v968
    %v1149 = vunpack.c.l.b16 %v969
    %v1150 = vunpack.c.l.b16 %v970
    %v1151 = vunpack.c.h.b16 %v970
    %v1152 = vunpack.c.l.b16 %v971
    %v1153 = vunpack.c.h.b16 %v971
    %v1154 = vunpack.c.l.b16 %v972
    %v1155 = vunpack.c.h.b16 %v972
    %v1156 = vunpack.c.l.b16 %v973
    %v1157 = vunpack.c.l.b16 %v974
    %v1158 = vunpack.c.h.b16 %v974
    %v1159 = vunpack.c.l.b16 %v975
    %v1160 = vunpack.c.h.b16 %v975
    %v1161 = vunpack.c.l.b16 %v976
    %v1162 = vunpack.c.h.b16 %v976
    %v1163 = vunpack.c.l.b16 %v977
    %v1164 = vunpack.c.l.b16 %v978
    %v1165 = vunpack.c.h.b16 %v978
    %v1166 = vunpack.c.l.b16 %v979
    %v1167 = vunpack.c.h.b16 %v979
    %v1168 = vunpack.c.l.b16 %v980
    %v1169 = vunpack.c.h.b16 %v980
    %v1170 = vunpack.c.l.b16 %v981
    %v1171 = vunpack.c.l.b16 %v982
    %v1172 = vunpack.c.h.b16 %v982
    %v1173 = vunpack.c.l.b16 %v983
    %v1174 = vunpack.c.h.b16 %v983
    %v1175 = vunpack.c.l.b16 %v984
    %v1176 = vunpack.c.h.b16 %v984
    %v1177 = vunpack.c.l.b16 %v985
    %v1178 = vpack.c.b16 %v1073, %v1066
    %v1179 = vpack.c.b16 %v1074, %v1067
    %v1180 = vpack.c.b16 %v1075, %v1068
    %v1181 = vpack.c.b16 %v1076, %v1069
    %v1182 = vpack.c.b16 %v1077, %v1070
    %v1183 = vpack.c.b16 %v1078, %v1071
    %v1184 = vpack.c.b16 %v1079, %v1072
    %v1185 = vpack.c.b16 %v1087, %v1080
    %v1186 = vpack.c.b16 %v1088, %v1081
    %v1187 = vpack.c.b16 %v1089, %v1082
    %v1188 = vpack.c.b16 %v1090, %v1083
    %v1189 = vpack.c.b16 %v1091, %v1084
    %v1190 = vpack.c.b16 %v1092, %v1085
    %v1191 = vpack.c.b16 %v1093, %v1086
    %v1192 = vpack.c.b16 %v1101, %v1094
    %v1193 = vpack.c.b16 %v1102, %v1095
    %v1194 = vpack.c.b16 %v1103, %v1096
    %v1195 = vpack.c.b16 %v1104, %v1097
    %v1196 = vpack.c.b16 %v1105, %v1098
    %v1197 = vpack.c.b16 %v1106, %v1099
    %v1198 = vpack.c.b16 %v1107, %v1100
    %v1199 = vpack.c.b16 %v1115, %v1108
    %v1200 = vpack.c.b16 %v1116, %v1109
    %v1201 = vpack.c.b16 %v1117, %v1110
    %v1202 = vpack.c.b16 %v1118, %v1111
    %v1203 = vpack.c.b16 %v1119, %v1112
    %v1204 = vpack.c.b16 %v1120, %v1113
    %v1205 = vpack.c.b16 %v1121, %v1114
    %v1206 = vpack.c.b16 %v1129, %v1122
    %v1207 = vpack.c.b16 %v1130, %v1123
    %v1208 = vpack.c.b16 %v1131, %v1124
    %v1209 = vpack.c.b16 %v1132, %v1125
    %v1210 = vpack.c.b16 %v1133, %v1126
    %v1211 = vpack.c.b16 %v1134, %v1127
    %v1212 = vpack.c.b16 %v1135, %v1128
    %v1213 = vpack.c.b16 %v1143, %v1136
    %v1214 = vpack.c.b16 %v1144, %v1137
    %v1215 = vpack.c.b16 %v1145, %v1138
    %v1216 = vpack.c.b16 %v1146, %v1139
    %v1217 = vpack.c.b16 %v1147, %v1140
    %v1218 = vpack.c.b16 %v1148, %v1141
    %v1219 = vpack.c.b16 %v1149, %v1142
    %v1220 = vpack.c.b16 %v1157, %v1150
    %v1221 = vpack.c.b16 %v1158, %v1151
    %v1222 = vpack.c.b16 %v1159, %v1152
    %v1223 = vpack.c.b16 %v1160, %v1153
    %v1224 = vpack.c.b16 %v1161, %v1154
    %v1225 = vpack.c.b16 %v1162, %v1155
    %v1226 = vpack.c.b16 %v1163, %v1156
    %v1227 = vpack.c.b16 %v1171, %v1164
    %v1228 = vpack.c.b16 %v1172, %v1165
    %v1229 = vpack.c.b16 %v1173, %v1166
    %v1230 = vpack.c.b16 %v1174, %v1167
    %v1231 = vpack.c.b16 %v1175, %v1168
    %v1232 = vpack.c.b16 %v1176, %v1169
    %v1233 = vpack.c.b16 %v1177, %v1170
    %1290 = vmatpush.bf16.msra.mxu0 %v1227
    %1291 = vmatpush.bf16.msra.mxu0 %v1220
    %1292 = vmatpush.bf16.msra.mxu0 %v1213
    %1293 = vmatpush.bf16.msra.mxu0 %v1206
    %1294 = vmatpush.bf16.msra.mxu0 %v1199
    %1295 = vmatpush.bf16.msra.mxu0 %v1192
    %1296 = vmatpush.bf16.msra.mxu0 %v1185
    %1297 = vmatpush.bf16.msra.mxu0 %v1178
    %1298 = vmatmul.bf16.gmra.mxu0 %v921
    %v1299 = vpop.f32.mrf.mxu0
    %v1300 = vadd.f32 %v988, %v1299
    %v1301 = vpop.f32.mrf.mxu0
    %v1302 = vadd.f32 %v988, %v1301
    %1303 = vdwg.mxu0
    %1304 = vmatpush.bf16.msra.mxu0 %v1228
    %1305 = vmatpush.bf16.msra.mxu0 %v1221
    %1306 = vmatpush.bf16.msra.mxu0 %v1214
    %1307 = vmatpush.bf16.msra.mxu0 %v1207
    %1308 = vmatpush.bf16.msra.mxu0 %v1200
    %1309 = vmatpush.bf16.msra.mxu0 %v1193
    %1310 = vmatpush.bf16.msra.mxu0 %v1186
    %1311 = vmatpush.bf16.msra.mxu0 %v1179
    %1312 = vmatmul.bf16.gmra.mxu0 %v921
    %v1313 = vpop.f32.mrf.mxu0
    %v1314 = vadd.f32 %v989, %v1313
    %v1315 = vpop.f32.mrf.mxu0
    %v1316 = vadd.f32 %v989, %v1315
    %1317 = vdwg.mxu0
    %1318 = vmatpush.bf16.msra.mxu0 %v1229
    %1319 = vmatpush.bf16.msra.mxu0 %v1222
    %1320 = vmatpush.bf16.msra.mxu0 %v1215
    %1321 = vmatpush.bf16.msra.mxu0 %v1208
    %1322 = vmatpush.bf16.msra.mxu0 %v1201
    %1323 = vmatpush.bf16.msra.mxu0 %v1194
    %1324 = vmatpush.bf16.msra.mxu0 %v1187
    %1325 = vmatpush.bf16.msra.mxu0 %v1180
    %1326 = vmatmul.bf16.gmra.mxu0 %v921
    %v1327 = vpop.f32.mrf.mxu0
    %v1328 = vadd.f32 %v990, %v1327
    %v1329 = vpop.f32.mrf.mxu0
    %v1330 = vadd.f32 %v990, %v1329
    %1331 = vdwg.mxu0
    %1332 = vmatpush.bf16.msra.mxu0 %v1230
    %1333 = vmatpush.bf16.msra.mxu0 %v1223
    %1334 = vmatpush.bf16.msra.mxu0 %v1216
    %1335 = vmatpush.bf16.msra.mxu0 %v1209
    %1336 = vmatpush.bf16.msra.mxu0 %v1202
    %1337 = vmatpush.bf16.msra.mxu0 %v1195
    %1338 = vmatpush.bf16.msra.mxu0 %v1188
    %1339 = vmatpush.bf16.msra.mxu0 %v1181
    %1340 = vmatmul.bf16.gmra.mxu0 %v921
    %v1341 = vpop.f32.mrf.mxu0
    %v1342 = vadd.f32 %v991, %v1341
    %v1343 = vpop.f32.mrf.mxu0
    %v1344 = vadd.f32 %v991, %v1343
    %1345 = vdwg.mxu0
    %1346 = vmatpush.bf16.msra.mxu0 %v1231
    %1347 = vmatpush.bf16.msra.mxu0 %v1224
    %1348 = vmatpush.bf16.msra.mxu0 %v1217
    %1349 = vmatpush.bf16.msra.mxu0 %v1210
    %1350 = vmatpush.bf16.msra.mxu0 %v1203
    %1351 = vmatpush.bf16.msra.mxu0 %v1196
    %1352 = vmatpush.bf16.msra.mxu0 %v1189
    %1353 = vmatpush.bf16.msra.mxu0 %v1182
    %1354 = vmatmul.bf16.gmra.mxu0 %v921
    %v1355 = vpop.f32.mrf.mxu0
    %v1356 = vadd.f32 %v992, %v1355
    %v1357 = vpop.f32.mrf.mxu0
    %v1358 = vadd.f32 %v992, %v1357
    %1359 = vdwg.mxu0
    %1360 = vmatpush.bf16.msra.mxu0 %v1232
    %1361 = vmatpush.bf16.msra.mxu0 %v1225
    %1362 = vmatpush.bf16.msra.mxu0 %v1218
    %1363 = vmatpush.bf16.msra.mxu0 %v1211
    %1364 = vmatpush.bf16.msra.mxu0 %v1204
    %1365 = vmatpush.bf16.msra.mxu0 %v1197
    %1366 = vmatpush.bf16.msra.mxu0 %v1190
    %1367 = vmatpush.bf16.msra.mxu0 %v1183
    %1368 = vmatmul.bf16.gmra.mxu0 %v921
    %v1369 = vpop.f32.mrf.mxu0
    %v1370 = vadd.f32 %v993, %v1369
    %v1371 = vpop.f32.mrf.mxu0
    %v1372 = vadd.f32 %v993, %v1371
    %1373 = vdwg.mxu0
    %1374 = vmatpush.bf16.msra.mxu0 %v1233
    %1375 = vmatpush.bf16.msra.mxu0 %v1226
    %1376 = vmatpush.bf16.msra.mxu0 %v1219
    %1377 = vmatpush.bf16.msra.mxu0 %v1212
    %1378 = vmatpush.bf16.msra.mxu0 %v1205
    %1379 = vmatpush.bf16.msra.mxu0 %v1198
    %1380 = vmatpush.bf16.msra.mxu0 %v1191
    %1381 = vmatpush.bf16.msra.mxu0 %v1184
    %1382 = vmatmul.bf16.gmra.mxu0 %v921
    %v1383 = vpop.f32.mrf.mxu0
    %v1384 = vadd.f32 %v994, %v1383
    %v1385 = vpop.f32.mrf.mxu0
    %v1386 = vadd.f32 %v994, %v1385
    %1387 = vdwg.mxu0
    %v1388 = vxor.u32 %v1300, 2147483648
    %v1389 = vxor.u32 %v1314, 2147483648
    %v1390 = vxor.u32 %v1328, 2147483648
    %v1391 = vxor.u32 %v1342, 2147483648
    %v1392 = vxor.u32 %v1356, 2147483648
    %v1393 = vxor.u32 %v1370, 2147483648
    %v1394 = vxor.u32 %v1384, 2147483648
    %v1395 = vxor.u32 %v1302, 2147483648
    %v1396 = vxor.u32 %v1316, 2147483648
    %v1397 = vxor.u32 %v1330, 2147483648
    %v1398 = vxor.u32 %v1344, 2147483648
    %v1399 = vxor.u32 %v1358, 2147483648
    %v1400 = vxor.u32 %v1372, 2147483648
    %v1401 = vxor.u32 %v1386, 2147483648
    %v1402 = vmul.f32 %v1388, 1.442695
    %v1403 = vpow.pop %v1402
    %v1404 = vmul.f32 %v1389, 1.442695
    %v1405 = vpow.pop %v1404
    %v1406 = vmul.f32 %v1390, 1.442695
    %v1407 = vpow.pop %v1406
    %v1408 = vmul.f32 %v1391, 1.442695
    %v1409 = vpow.pop %v1408
    %v1410 = vmul.f32 %v1392, 1.442695
    %v1411 = vpow.pop %v1410
    %v1412 = vmul.f32 %v1393, 1.442695
    %v1413 = vpow.pop %v1412
    %v1414 = vmul.f32 %v1394, 1.442695
    %v1415 = vpow.pop %v1414
    %v1416 = vmul.f32 %v1395, 1.442695
    %v1417 = vpow.pop %v1416
    %v1418 = vmul.f32 %v1396, 1.442695
    %v1419 = vpow.pop %v1418
    %v1420 = vmul.f32 %v1397, 1.442695
    %v1421 = vpow.pop %v1420
    %v1422 = vmul.f32 %v1398, 1.442695
    %v1423 = vpow.pop %v1422
    %v1424 = vmul.f32 %v1399, 1.442695
    %v1425 = vpow.pop %v1424
    %v1426 = vmul.f32 %v1400, 1.442695
    %v1427 = vpow.pop %v1426
    %v1428 = vmul.f32 %v1401, 1.442695
    %v1429 = vpow.pop %v1428
    %v1430 = vadd.f32 %v1403, 1.0
    %v1431 = vadd.f32 %v1405, 1.0
    %v1432 = vadd.f32 %v1407, 1.0
    %v1433 = vadd.f32 %v1409, 1.0
    %v1434 = vadd.f32 %v1411, 1.0
    %v1435 = vadd.f32 %v1413, 1.0
    %v1436 = vadd.f32 %v1415, 1.0
    %v1437 = vadd.f32 %v1417, 1.0
    %v1438 = vadd.f32 %v1419, 1.0
    %v1439 = vadd.f32 %v1421, 1.0
    %v1440 = vadd.f32 %v1423, 1.0
    %v1441 = vadd.f32 %v1425, 1.0
    %v1442 = vadd.f32 %v1427, 1.0
    %v1443 = vadd.f32 %v1429, 1.0
    %v1444 = vrcp.pop %v1430
    %v1445 = vmul.f32 %v1430, %v1444
    %v1446 = vsub.f32 1.0, %v1445
    %v1447 = vmul.f32 %v1444, %v1446
    %v1448 = vadd.f32 %v1444, %v1447
    %vm1449 = vweird.f32 %v1430
    %vm1450 = vweird.f32 %v1444
    %vm1451 = vmor %vm1449, %vm1450
    %v1452 = vsel %vm1451, %v1444, %v1448
    %v1453 = vand.u32 2147483647, %v1430
    %vm1454 = vcmp.eq.f32.partialorder %v1453, 8.507059e+37
    %v1455 = vand.u32 %v1430, 2147483648
    %v1456 = vor.u32 1.1754944e-38, %v1455
    %v1457 = vsel %vm1454, %v1456, %v1452
    %v1458 = vmul.f32 1.0, %v1457
    %v1459 = vrcp.pop %v1431
    %v1460 = vmul.f32 %v1431, %v1459
    %v1461 = vsub.f32 1.0, %v1460
    %v1462 = vmul.f32 %v1459, %v1461
    %v1463 = vadd.f32 %v1459, %v1462
    %vm1464 = vweird.f32 %v1431
    %vm1465 = vweird.f32 %v1459
    %vm1466 = vmor %vm1464, %vm1465
    %v1467 = vsel %vm1466, %v1459, %v1463
    %v1468 = vand.u32 2147483647, %v1431
    %vm1469 = vcmp.eq.f32.partialorder %v1468, 8.507059e+37
    %v1470 = vand.u32 %v1431, 2147483648
    %v1471 = vor.u32 1.1754944e-38, %v1470
    %v1472 = vsel %vm1469, %v1471, %v1467
    %v1473 = vmul.f32 1.0, %v1472
    %v1474 = vrcp.pop %v1432
    %v1475 = vmul.f32 %v1432, %v1474
    %v1476 = vsub.f32 1.0, %v1475
    %v1477 = vmul.f32 %v1474, %v1476
    %v1478 = vadd.f32 %v1474, %v1477
    %vm1479 = vweird.f32 %v1432
    %vm1480 = vweird.f32 %v1474
    %vm1481 = vmor %vm1479, %vm1480
    %v1482 = vsel %vm1481, %v1474, %v1478
    %v1483 = vand.u32 2147483647, %v1432
    %vm1484 = vcmp.eq.f32.partialorder %v1483, 8.507059e+37
    %v1485 = vand.u32 %v1432, 2147483648
    %v1486 = vor.u32 1.1754944e-38, %v1485
    %v1487 = vsel %vm1484, %v1486, %v1482
    %v1488 = vmul.f32 1.0, %v1487
    %v1489 = vrcp.pop %v1433
    %v1490 = vmul.f32 %v1433, %v1489
    %v1491 = vsub.f32 1.0, %v1490
    %v1492 = vmul.f32 %v1489, %v1491
    %v1493 = vadd.f32 %v1489, %v1492
    %vm1494 = vweird.f32 %v1433
    %vm1495 = vweird.f32 %v1489
    %vm1496 = vmor %vm1494, %vm1495
    %v1497 = vsel %vm1496, %v1489, %v1493
    %v1498 = vand.u32 2147483647, %v1433
    %vm1499 = vcmp.eq.f32.partialorder %v1498, 8.507059e+37
    %v1500 = vand.u32 %v1433, 2147483648
    %v1501 = vor.u32 1.1754944e-38, %v1500
    %v1502 = vsel %vm1499, %v1501, %v1497
    %v1503 = vmul.f32 1.0, %v1502
    %v1504 = vrcp.pop %v1434
    %v1505 = vmul.f32 %v1434, %v1504
    %v1506 = vsub.f32 1.0, %v1505
    %v1507 = vmul.f32 %v1504, %v1506
    %v1508 = vadd.f32 %v1504, %v1507
    %vm1509 = vweird.f32 %v1434
    %vm1510 = vweird.f32 %v1504
    %vm1511 = vmor %vm1509, %vm1510
    %v1512 = vsel %vm1511, %v1504, %v1508
    %v1513 = vand.u32 2147483647, %v1434
    %vm1514 = vcmp.eq.f32.partialorder %v1513, 8.507059e+37
    %v1515 = vand.u32 %v1434, 2147483648
    %v1516 = vor.u32 1.1754944e-38, %v1515
    %v1517 = vsel %vm1514, %v1516, %v1512
    %v1518 = vmul.f32 1.0, %v1517
    %v1519 = vrcp.pop %v1435
    %v1520 = vmul.f32 %v1435, %v1519
    %v1521 = vsub.f32 1.0, %v1520
    %v1522 = vmul.f32 %v1519, %v1521
    %v1523 = vadd.f32 %v1519, %v1522
    %vm1524 = vweird.f32 %v1435
    %vm1525 = vweird.f32 %v1519
    %vm1526 = vmor %vm1524, %vm1525
    %v1527 = vsel %vm1526, %v1519, %v1523
    %v1528 = vand.u32 2147483647, %v1435
    %vm1529 = vcmp.eq.f32.partialorder %v1528, 8.507059e+37
    %v1530 = vand.u32 %v1435, 2147483648
    %v1531 = vor.u32 1.1754944e-38, %v1530
    %v1532 = vsel %vm1529, %v1531, %v1527
    %v1533 = vmul.f32 1.0, %v1532
    %v1534 = vrcp.pop %v1436
    %v1535 = vmul.f32 %v1436, %v1534
    %v1536 = vsub.f32 1.0, %v1535
    %v1537 = vmul.f32 %v1534, %v1536
    %v1538 = vadd.f32 %v1534, %v1537
    %vm1539 = vweird.f32 %v1436
    %vm1540 = vweird.f32 %v1534
    %vm1541 = vmor %vm1539, %vm1540
    %v1542 = vsel %vm1541, %v1534, %v1538
    %v1543 = vand.u32 2147483647, %v1436
    %vm1544 = vcmp.eq.f32.partialorder %v1543, 8.507059e+37
    %v1545 = vand.u32 %v1436, 2147483648
    %v1546 = vor.u32 1.1754944e-38, %v1545
    %v1547 = vsel %vm1544, %v1546, %v1542
    %v1548 = vmul.f32 1.0, %v1547
    %v1549 = vrcp.pop %v1437
    %v1550 = vmul.f32 %v1437, %v1549
    %v1551 = vsub.f32 1.0, %v1550
    %v1552 = vmul.f32 %v1549, %v1551
    %v1553 = vadd.f32 %v1549, %v1552
    %vm1554 = vweird.f32 %v1437
    %vm1555 = vweird.f32 %v1549
    %vm1556 = vmor %vm1554, %vm1555
    %v1557 = vsel %vm1556, %v1549, %v1553
    %v1558 = vand.u32 2147483647, %v1437
    %vm1559 = vcmp.eq.f32.partialorder %v1558, 8.507059e+37
    %v1560 = vand.u32 %v1437, 2147483648
    %v1561 = vor.u32 1.1754944e-38, %v1560
    %v1562 = vsel %vm1559, %v1561, %v1557
    %v1563 = vmul.f32 1.0, %v1562
    %v1564 = vrcp.pop %v1438
    %v1565 = vmul.f32 %v1438, %v1564
    %v1566 = vsub.f32 1.0, %v1565
    %v1567 = vmul.f32 %v1564, %v1566
    %v1568 = vadd.f32 %v1564, %v1567
    %vm1569 = vweird.f32 %v1438
    %vm1570 = vweird.f32 %v1564
    %vm1571 = vmor %vm1569, %vm1570
    %v1572 = vsel %vm1571, %v1564, %v1568
    %v1573 = vand.u32 2147483647, %v1438
    %vm1574 = vcmp.eq.f32.partialorder %v1573, 8.507059e+37
    %v1575 = vand.u32 %v1438, 2147483648
    %v1576 = vor.u32 1.1754944e-38, %v1575
    %v1577 = vsel %vm1574, %v1576, %v1572
    %v1578 = vmul.f32 1.0, %v1577
    %v1579 = vrcp.pop %v1439
    %v1580 = vmul.f32 %v1439, %v1579
    %v1581 = vsub.f32 1.0, %v1580
    %v1582 = vmul.f32 %v1579, %v1581
    %v1583 = vadd.f32 %v1579, %v1582
    %vm1584 = vweird.f32 %v1439
    %vm1585 = vweird.f32 %v1579
    %vm1586 = vmor %vm1584, %vm1585
    %v1587 = vsel %vm1586, %v1579, %v1583
    %v1588 = vand.u32 2147483647, %v1439
    %vm1589 = vcmp.eq.f32.partialorder %v1588, 8.507059e+37
    %v1590 = vand.u32 %v1439, 2147483648
    %v1591 = vor.u32 1.1754944e-38, %v1590
    %v1592 = vsel %vm1589, %v1591, %v1587
    %v1593 = vmul.f32 1.0, %v1592
    %v1594 = vrcp.pop %v1440
    %v1595 = vmul.f32 %v1440, %v1594
    %v1596 = vsub.f32 1.0, %v1595
    %v1597 = vmul.f32 %v1594, %v1596
    %v1598 = vadd.f32 %v1594, %v1597
    %vm1599 = vweird.f32 %v1440
    %vm1600 = vweird.f32 %v1594
    %vm1601 = vmor %vm1599, %vm1600
    %v1602 = vsel %vm1601, %v1594, %v1598
    %v1603 = vand.u32 2147483647, %v1440
    %vm1604 = vcmp.eq.f32.partialorder %v1603, 8.507059e+37
    %v1605 = vand.u32 %v1440, 2147483648
    %v1606 = vor.u32 1.1754944e-38, %v1605
    %v1607 = vsel %vm1604, %v1606, %v1602
    %v1608 = vmul.f32 1.0, %v1607
    %v1609 = vrcp.pop %v1441
    %v1610 = vmul.f32 %v1441, %v1609
    %v1611 = vsub.f32 1.0, %v1610
    %v1612 = vmul.f32 %v1609, %v1611
    %v1613 = vadd.f32 %v1609, %v1612
    %vm1614 = vweird.f32 %v1441
    %vm1615 = vweird.f32 %v1609
    %vm1616 = vmor %vm1614, %vm1615
    %v1617 = vsel %vm1616, %v1609, %v1613
    %v1618 = vand.u32 2147483647, %v1441
    %vm1619 = vcmp.eq.f32.partialorder %v1618, 8.507059e+37
    %v1620 = vand.u32 %v1441, 2147483648
    %v1621 = vor.u32 1.1754944e-38, %v1620
    %v1622 = vsel %vm1619, %v1621, %v1617
    %v1623 = vmul.f32 1.0, %v1622
    %v1624 = vrcp.pop %v1442
    %v1625 = vmul.f32 %v1442, %v1624
    %v1626 = vsub.f32 1.0, %v1625
    %v1627 = vmul.f32 %v1624, %v1626
    %v1628 = vadd.f32 %v1624, %v1627
    %vm1629 = vweird.f32 %v1442
    %vm1630 = vweird.f32 %v1624
    %vm1631 = vmor %vm1629, %vm1630
    %v1632 = vsel %vm1631, %v1624, %v1628
    %v1633 = vand.u32 2147483647, %v1442
    %vm1634 = vcmp.eq.f32.partialorder %v1633, 8.507059e+37
    %v1635 = vand.u32 %v1442, 2147483648
    %v1636 = vor.u32 1.1754944e-38, %v1635
    %v1637 = vsel %vm1634, %v1636, %v1632
    %v1638 = vmul.f32 1.0, %v1637
    %v1639 = vrcp.pop %v1443
    %v1640 = vmul.f32 %v1443, %v1639
    %v1641 = vsub.f32 1.0, %v1640
    %v1642 = vmul.f32 %v1639, %v1641
    %v1643 = vadd.f32 %v1639, %v1642
    %vm1644 = vweird.f32 %v1443
    %vm1645 = vweird.f32 %v1639
    %vm1646 = vmor %vm1644, %vm1645
    %v1647 = vsel %vm1646, %v1639, %v1643
    %v1648 = vand.u32 2147483647, %v1443
    %vm1649 = vcmp.eq.f32.partialorder %v1648, 8.507059e+37
    %v1650 = vand.u32 %v1443, 2147483648
    %v1651 = vor.u32 1.1754944e-38, %v1650
    %v1652 = vsel %vm1649, %v1651, %v1647
    %v1653 = vmul.f32 1.0, %v1652
    %1654 = vst [vmem:[#allocation8] sm:$0xff] %v1458
    %1655 = vst [vmem:[#allocation8 + $0x8] sm:$0xff] %v1473
    %1656 = vst [vmem:[#allocation8 + $0x10] sm:$0xff] %v1488
    %1657 = vst [vmem:[#allocation8 + $0x18] sm:$0xff] %v1503
    %1658 = vst [vmem:[#allocation8 + $0x20] sm:$0xff] %v1518
    %1659 = vst [vmem:[#allocation8 + $0x28] sm:$0xff] %v1533
    %1660 = vst [vmem:[#allocation8 + $0x30] sm:$0xff] %v1548
    %1661 = vst [vmem:[#allocation8 + $0x38] sm:$0xff] %v1563
    %1662 = vst [vmem:[#allocation8 + $0x40] sm:$0xff] %v1578
    %1663 = vst [vmem:[#allocation8 + $0x48] sm:$0xff] %v1593
    %1664 = vst [vmem:[#allocation8 + $0x50] sm:$0xff] %v1608
    %1665 = vst [vmem:[#allocation8 + $0x58] sm:$0xff] %v1623
    %1666 = vst [vmem:[#allocation8 + $0x60] sm:$0xff] %v1638
    %1667 = vst [vmem:[#allocation8 + $0x68] sm:$0xff] %v1653
    %1668 = vst [vmem:[#allocation9] sm:$0xff] %v808
    %1669 = vst [vmem:[#allocation9 + $0x8] sm:$0xff] %v810
    // Predicated region
    $region70: #{tpu_custom_call.1} parent=1 // pred_check
      _
    $region71: #{tpu_custom_call.1} parent=1 // pred_check_branch
      %1671 = sbr.rel (0) target = $region73
    $region72: #{tpu_custom_call.1} parent=1 // pred_region
      %1673 = vsyncadd [#allocation4], 0
      %s1674 = sshll.u32 [#allocation8], 4
      %s1675 = int_to_ptr.vmem [resolvable:$true] %s1674
      %s1676 = sshll.u32 %s14, 4
      %s1677 = int_to_ptr.hbm [resolvable:$true] %s1676
      %1682 = dma.vmem_to_hbm [thread:$0]  %s1675, 1792, %s1677, [#allocation4], 896, 896, 56
    $region73: #{tpu_custom_call.1} parent=1 // pred_fallthru
      _
    // Predicated region
    $region74: #{tpu_custom_call.1} parent=1 // pred_check
      _
    $region75: #{tpu_custom_call.1} parent=1 // pred_check_branch
      %1684 = sbr.rel (0) target = $region77
    $region76: #{tpu_custom_call.1} parent=1 // pred_region
      %1686 = vsyncadd [#allocation10], 0
      %s1687 = sshll.u32 [#allocation9], 4
      %s1688 = int_to_ptr.vmem [resolvable:$true] %s1687
      %s1689 = sshll.u32 %s15, 4
      %s1690 = int_to_ptr.hbm [resolvable:$true] %s1689
      %1695 = dma.vmem_to_hbm [thread:$0]  %s1688, 256, %s1690, [#allocation10], 128, 128, 8
    $region77: #{tpu_custom_call.1} parent=1 // pred_fallthru
      _
    // Predicated region
    $region78: #{tpu_custom_call.1} parent=1 // pred_check
      _
    $region79: #{tpu_custom_call.1} parent=1 // pred_check_branch
      %1697 = sbr.rel (0) target = $region81
    $region80: #{tpu_custom_call.1} parent=1 // pred_region
      %1699 = dma.done [#allocation4], 1792
    $region81: #{tpu_custom_call.1} parent=1 // pred_fallthru
      _
    // Predicated region
    $region82: #{tpu_custom_call.1} parent=1 // pred_check
      _
    $region83: #{tpu_custom_call.1} parent=1 // pred_check_branch
      %1701 = sbr.rel (0) target = $region85
    $region84: #{tpu_custom_call.1} parent=1 // pred_region
      %1703 = dma.done [#allocation10], 256
    $region85: #{tpu_custom_call.1} parent=1 // pred_fallthru
      _
    %1704 = vsyncpa [#allocation3], 1
    %1705 = vsyncpa [#allocation6], 1
    %1706 = vsyncpa [#allocation4], 1
    %1707 = vsyncpa [#allocation10], 1

</llo_original>
